<compile_context>
chip_gen: v7x
topology: tpu7x:2x2x1
jax: 0.10.0
libtpu: 0.0.40
codegen_flags: <defaults>
</compile_context>

<pallas_src>
import functools

import jax
import jax.numpy as jnp
import numpy as np
from jax.experimental import pallas as pl
from jax.experimental.pallas import tpu as pltpu


# ---------------------------------------------------------------------------
# In-kernel helpers
# ---------------------------------------------------------------------------
def _layernorm(z, w, b, eps=1e-5):
    mu = jnp.mean(z, axis=-1, keepdims=True)
    var = jnp.mean((z - mu) ** 2, axis=-1, keepdims=True)   # biased, like torch
    return (z - mu) * jax.lax.rsqrt(var + eps) * w + b


def _gelu(z):
    # TODO(synk): PyTorch nn.GELU() uses the exact erf form; erf lowering in Mosaic
    # is not guaranteed, so the tanh approximation is used (max abs dev ~1e-3).
    c = jnp.float32(0.7978845608028654)  # sqrt(2/pi)
    return 0.5 * z * (1.0 + jnp.tanh(c * (z + 0.044715 * z * z * z)))


# ---------------------------------------------------------------------------
# Pallas kernel: one grid step == `block_b` batch elements, everything in VMEM.
# ---------------------------------------------------------------------------
def encoder_kernel(x_ref,
                   ln1w_ref, ln1b_ref,
                   wqkv_ref, bqkv_ref, wo_ref, bo_ref,
                   ln2w_ref, ln2b_ref,
                   w1_ref, b1_ref, w2_ref, b2_ref,
                   out_ref,
                   qkv_ref, attn_ref,
                   *, n_tokens, n_pad, head, block_b, heads_per_group):
    cdt = x_ref.dtype                       # MXU operand dtype (f32 or bf16)
    x = x_ref[...].astype(jnp.float32)      # (block_b * n_pad, F)
    f = x.shape[-1]
    d = f // head
    gw = heads_per_group * d                # lane width of one context store
    n_groups = head // heads_per_group
    # Exact reciprocal on the f32 path; EUP approx (~1e-3 rel err) on bf16 path.
    approx_recip = cdt != jnp.float32

    # ---------------- MSA branch: msa(LN1(x)) + x ----------------
    h = _layernorm(x, ln1w_ref[...], ln1b_ref[...])

    # Fused QKV projection: one (M, F) x (F, 3F) matmul keeps the MXU fed.  The
    # 1/sqrt(F) scale is already folded into the q columns of wqkv/bqkv.  Result
    # is written ONCE, in the compute dtype, to a VMEM scratch so the attention
    # loop below re-loads row slices via pl.ds with no per-head casts.
    qkv_ref[...] = (jnp.dot(h.astype(cdt), wqkv_ref[...],
                            preferred_element_type=jnp.float32)
                    + bqkv_ref[...]).astype(cdt)

    # Key-padding mask, only materialized when tokens were padded to a multiple of 8.
    if n_pad != n_tokens:
        kmask = jax.lax.broadcasted_iota(jnp.int32, (n_pad, n_pad), 1) < n_tokens

    # Per-(batch, head-group) attention.  lax.fori_loop over the batch elements
    # bounds vreg live ranges; the head loop stays a static Python loop so every
    # lane offset is static (no dynamic lane slicing / relayouts).  Head contexts
    # are grouped so each attn_ref store is lane-dense (gw == 128 when possible,
    # else the full row width) and stored in cdt so the Wo matmul needs no cast.
    def attn_body(bb, carry):
        r0 = pl.multiple_of(bb * n_pad, 8)
        qkv_b = qkv_ref[pl.ds(r0, n_pad), :]            # (n_pad, 3F), cdt
        for g in range(n_groups):
            c0 = g * gw
            ctxs = []
            for hh in range(heads_per_group):
                lo = c0 + hh * d
                qh = qkv_b[:, lo:lo + d]                          # (n_pad, d)
                kh = qkv_b[:, f + lo:f + lo + d]
                vh = qkv_b[:, 2 * f + lo:2 * f + lo + d]
                s = jax.lax.dot_general(qh, kh, (((1,), (1,)), ((), ())),
                                        preferred_element_type=jnp.float32)
                if n_pad != n_tokens:
                    s = jnp.where(kmask, s, jnp.float32(-1e30))   # mask pad keys
                s = s - jnp.max(s, axis=-1, keepdims=True)
                p = jnp.exp(s)
                p = p * pl.reciprocal(jnp.sum(p, axis=-1, keepdims=True),
                                      approx=approx_recip)
                ctxs.append(jnp.dot(p.astype(cdt), vh,
                                    preferred_element_type=jnp.float32))
            ctx = ctxs[0] if heads_per_group == 1 else jnp.concatenate(ctxs, axis=-1)
            attn_ref[pl.ds(r0, n_pad), c0:c0 + gw] = ctx.astype(attn_ref.dtype)
        return carry

    jax.lax.fori_loop(0, block_b, attn_body, 0, unroll=min(2, block_b))

    msa = jnp.dot(attn_ref[...], wo_ref[...],
                  preferred_element_type=jnp.float32) + bo_ref[...]
    out1 = msa + x

    # ---------------- MLP branch: mlp(LN2(out1)) + out1 ----------------
    # TODO(synk): on v7x (64 MiB VMEM) at ViT-Base sizes, tile the mlp_hidden dim
    # (column-tile w1 / row-tile w2 with an inner pl.loop) to bound the f32
    # (rows, mlp_hidden) intermediate; not needed on v5e/v6e (128 MiB).
    h2 = _layernorm(out1, ln2w_ref[...], ln2b_ref[...])
    m = jnp.dot(h2.astype(cdt), w1_ref[...],
                preferred_element_type=jnp.float32) + b1_ref[...]
    m = _gelu(m)
    m = jnp.dot(m.astype(cdt), w2_ref[...],
                preferred_element_type=jnp.float32) + b2_ref[...]
    m = _gelu(m)   # the module's nn.Sequential applies GELU after BOTH linears

    out_ref[...] = (m + out1).astype(out_ref.dtype)


# ---------------------------------------------------------------------------
# Wrapper
# ---------------------------------------------------------------------------
def _vmem_capacity_bytes():
    try:
        return int(pltpu.get_tpu_info().vmem_capacity_bytes)
    except Exception:
        return 128 * 1024 * 1024   # v5e/v6e capacity as a safe fallback


def transformer_encoder(x, params, head, *, block_b=None):
    b, n, f = x.shape
    cdt = x.dtype
    f32 = jnp.float32
    d = f // head

    # Pad tokens so every (block_b * n_pad, F) block satisfies the sublane-8 rule
    # (e.g. ViT's N=197 -> 200); padded key columns are masked in the kernel and
    # padded output rows are sliced off below.
    n_pad = ((n + 7) // 8) * 8
    if n_pad != n:
        x = jnp.pad(x, ((0, 0), (0, n_pad - n), (0, 0)))

    # --- per-generation budgets --------------------------------------------------
    cap = _vmem_capacity_bytes()
    # Leave headroom for compiler internal scratch + pipeline buffers:
    #   v7x (64 MiB/TC) -> ~48 MiB; v5e/v6e (128 MiB) -> ~100 MiB.
    vmem_limit = max(32 * 1024 * 1024,
                     min(cap - 16 * 1024 * 1024, 100 * 1024 * 1024))
    # Bigger M tiles amortize the ~0.35 us per-grid-step overhead where VMEM allows.
    row_cap = 512 if cap <= 64 * 1024 * 1024 else 1024

    if block_b is None:
        # Largest divisor of B with block_b*n_pad <= row_cap, capped at B//2 so the
        # grid has >= 2 steps and "parallel" can shard across both v7x TensorCores
        # (near-zero cost on single-TC v5e/v6e).
        max_bb = max(1, b // 2)
        block_b = 1
        for cand in range(1, max_bb + 1):
            if b % cand == 0 and cand * n_pad <= row_cap:
                block_b = cand
    rows = block_b * n_pad

    # Head grouping for lane-dense attention stores: smallest group whose width is
    # a multiple of 128 lanes (d=64 -> 2 heads), else one full-row group.
    heads_per_group = head
    for cand in range(1, head + 1):
        if head % cand == 0 and (cand * d) % 128 == 0:
            heads_per_group = cand
            break

    # --- parameter packing -------------------------------------------------------
    # Fused QKV weight/bias with the 1/sqrt(F) softmax scale folded into q's columns
    # (one-time O(F^2) wrapper cost instead of an (M, F) VPU multiply per grid step).
    # NOTE: v6e/v7x MXUs are 2x256^2 -> keep F / 3F / mlp_hidden multiples of 256
    # where possible (ViT-Base 768/2304/3072 already are).
    scale = 1.0 / (f ** 0.5)
    wqkv = jnp.concatenate([params["wq"] * scale, params["wk"], params["wv"]],
                           axis=1).astype(cdt)
    bqkv = jnp.concatenate([params["bq"] * scale, params["bk"], params["bv"]],
                           axis=1).astype(f32)
    flat_args = [
        x.reshape(b * n_pad, f),
        params["ln1_w"].astype(f32), params["ln1_b"].astype(f32),
        wqkv, bqkv,
        params["wo"].astype(cdt), params["bo"].astype(f32),
        params["ln2_w"].astype(f32), params["ln2_b"].astype(f32),
        params["w1"].astype(cdt), params["b1"].astype(f32),
        params["w2"].astype(cdt), params["b2"].astype(f32),
    ]

    def resident_spec(a):
        # Grid-invariant index_map (DMA'd once) + single-buffered: double-buffering
        # weights that never change across the grid would just waste VMEM.
        return pl.BlockSpec(a.shape, lambda i: (0, 0), pipeline_mode=pl.Buffered(1))

    in_specs = [pl.BlockSpec((rows, f), lambda i: (i, 0))]
    in_specs += [resident_spec(a) for a in flat_args[1:]]

    grid_spec = pltpu.PrefetchScalarGridSpec(
        num_scalar_prefetch=0,
        grid=(b // block_b,),
        in_specs=in_specs,
        out_specs=pl.BlockSpec((rows, f), lambda i: (i, 0)),
        scratch_shapes=[pltpu.VMEM((rows, 3 * f), cdt),   # fused qkv (compute dtype)
                        pltpu.VMEM((rows, f), cdt)],      # per-head contexts
    )

    out2d = pl.pallas_call(
        functools.partial(encoder_kernel, n_tokens=n, n_pad=n_pad, head=head,
                          block_b=block_b, heads_per_group=heads_per_group),
        out_shape=jax.ShapeDtypeStruct((b * n_pad, f), cdt),
        grid_spec=grid_spec,
        compiler_params=pltpu.CompilerParams(
            dimension_semantics=("parallel",),
            vmem_limit_bytes=vmem_limit,
        ),
    )(*flat_args)
    out = out2d.reshape(b, n_pad, f)
    return out[:, :n, :] if n_pad != n else out


# ---------------------------------------------------------------------------
# Pure-JAX reference (mirrors the PyTorch forward) for a correctness check.
# ---------------------------------------------------------------------------
def reference(x, p, head):
    def ln(z, w, b):
        mu = z.mean(-1, keepdims=True)
        var = ((z - mu) ** 2).mean(-1, keepdims=True)
        return (z - mu) / jnp.sqrt(var + 1e-5) * w + b

    b_, n, f = x.shape
    d = f // head
    h = ln(x, p["ln1_w"], p["ln1_b"])
    q = (h @ p["wq"] + p["bq"]).reshape(b_, n, head, d).transpose(0, 2, 1, 3)
    k = (h @ p["wk"] + p["bk"]).reshape(b_, n, head, d).transpose(0, 2, 1, 3)
    v = (h @ p["wv"] + p["bv"]).reshape(b_, n, head, d).transpose(0, 2, 1, 3)
    score = jax.nn.softmax(jnp.einsum('bhif,bhjf->bhij', q, k) / (f ** 0.5), axis=-1)
    attn = jnp.einsum('bhij,bhjf->bihf', score, v).reshape(b_, n, f)
    o = attn @ p["wo"] + p["bo"]
    out1 = o + x
    h2 = ln(out1, p["ln2_w"], p["ln2_b"])
    m = _gelu(h2 @ p["w1"] + p["b1"])
    m = _gelu(m @ p["w2"] + p["b2"])
    return m + out1


# ---------------------------------------------------------------------------
if __name__ == "__main__":
    B, N, F, HEAD, MLP_HIDDEN = 2, 8, 32, 8, 64

    key = jax.random.PRNGKey(0)
    ks = jax.random.split(key, 16)

    def w(k, shape, scale=0.05):
        return jax.random.normal(k, shape, jnp.float32) * scale

    params = {
        "ln1_w": jnp.ones((1, F), jnp.float32),
        "ln1_b": jnp.zeros((1, F), jnp.float32),
        "wq": w(ks[0], (F, F)), "bq": w(ks[1], (1, F)),
        "wk": w(ks[2], (F, F)), "bk": w(ks[3], (1, F)),
        "wv": w(ks[4], (F, F)), "bv": w(ks[5], (1, F)),
        "wo": w(ks[6], (F, F)), "bo": w(ks[7], (1, F)),
        "ln2_w": jnp.ones((1, F), jnp.float32),
        "ln2_b": jnp.zeros((1, F), jnp.float32),
        "w1": w(ks[8], (F, MLP_HIDDEN)), "b1": w(ks[9], (1, MLP_HIDDEN)),
        "w2": w(ks[10], (MLP_HIDDEN, F)), "b2": w(ks[11], (1, F)),
    }

    x = jax.random.normal(ks[15], (B, N, F), jnp.float32)
    ref = reference(x, params, HEAD)

    # f32 path (exact softmax reciprocal on this path).
    out = jax.block_until_ready(transformer_encoder(x, params, HEAD))
    assert out.shape == (B, N, F)
    np.testing.assert_allclose(np.asarray(out), np.asarray(ref), atol=2e-3, rtol=2e-3)

    # bf16 weights/activations with f32 accumulation (looser tolerance; approx recip).
    out_bf16 = jax.block_until_ready(
        transformer_encoder(x.astype(jnp.bfloat16), params, HEAD))
    assert out_bf16.shape == (B, N, F) and out_bf16.dtype == jnp.bfloat16
    np.testing.assert_allclose(np.asarray(out_bf16.astype(jnp.float32)),
                               np.asarray(ref), atol=5e-2, rtol=5e-2)

    # Token count not a multiple of 8 -> exercises the padding + key-mask path.
    N_ODD = 6
    x_odd = jax.random.normal(ks[14], (B, N_ODD, F), jnp.float32)
    ref_odd = reference(x_odd, params, HEAD)
    out_odd = jax.block_until_ready(transformer_encoder(x_odd, params, HEAD))
    assert out_odd.shape == (B, N_ODD, F)
    np.testing.assert_allclose(np.asarray(out_odd), np.asarray(ref_odd),
                               atol=2e-3, rtol=2e-3)

    print("KERNEL_OK")
</pallas_src>

<mosaic_0001>
module attributes {stable_mosaic.version = 11 : i64} {
  func.func @encoder_kernel(%arg0: i32, %arg1: memref<8x32xf32, #tpu.memory_space<vmem>>, %arg2: memref<1x32xf32, #tpu.memory_space<vmem>>, %arg3: memref<1x32xf32, #tpu.memory_space<vmem>>, %arg4: memref<32x96xf32, #tpu.memory_space<vmem>>, %arg5: memref<1x96xf32, #tpu.memory_space<vmem>>, %arg6: memref<32x32xf32, #tpu.memory_space<vmem>>, %arg7: memref<1x32xf32, #tpu.memory_space<vmem>>, %arg8: memref<1x32xf32, #tpu.memory_space<vmem>>, %arg9: memref<1x32xf32, #tpu.memory_space<vmem>>, %arg10: memref<32x64xf32, #tpu.memory_space<vmem>>, %arg11: memref<1x64xf32, #tpu.memory_space<vmem>>, %arg12: memref<64x32xf32, #tpu.memory_space<vmem>>, %arg13: memref<1x32xf32, #tpu.memory_space<vmem>>, %arg14: memref<8x32xf32, #tpu.memory_space<vmem>>, %arg15: memref<8x96xf32, #tpu.memory_space<vmem>>, %arg16: memref<8x32xf32, #tpu.memory_space<vmem>>) attributes {dimension_semantics = [#tpu.dimension_semantics<parallel>], iteration_bounds = array<i64: 2>, scalar_prefetch = 0 : i64, scratch_operands = 2 : i64, tpu.core_type = #tpu.core_type<tc>, window_params = [{transform_indices = @transform_0, window_bounds = array<i64: 8, 32>}, {pipeline_mode = #tpu.pipeline_mode<synchronous>, transform_indices = @transform_1, window_bounds = array<i64: 1, 32>}, {pipeline_mode = #tpu.pipeline_mode<synchronous>, transform_indices = @transform_2, window_bounds = array<i64: 1, 32>}, {pipeline_mode = #tpu.pipeline_mode<synchronous>, transform_indices = @transform_3, window_bounds = array<i64: 32, 96>}, {pipeline_mode = #tpu.pipeline_mode<synchronous>, transform_indices = @transform_4, window_bounds = array<i64: 1, 96>}, {pipeline_mode = #tpu.pipeline_mode<synchronous>, transform_indices = @transform_5, window_bounds = array<i64: 32, 32>}, {pipeline_mode = #tpu.pipeline_mode<synchronous>, transform_indices = @transform_6, window_bounds = array<i64: 1, 32>}, {pipeline_mode = #tpu.pipeline_mode<synchronous>, transform_indices = @transform_7, window_bounds = array<i64: 1, 32>}, {pipeline_mode = #tpu.pipeline_mode<synchronous>, transform_indices = @transform_8, window_bounds = array<i64: 1, 32>}, {pipeline_mode = #tpu.pipeline_mode<synchronous>, transform_indices = @transform_9, window_bounds = array<i64: 32, 64>}, {pipeline_mode = #tpu.pipeline_mode<synchronous>, transform_indices = @transform_10, window_bounds = array<i64: 1, 64>}, {pipeline_mode = #tpu.pipeline_mode<synchronous>, transform_indices = @transform_11, window_bounds = array<i64: 64, 32>}, {pipeline_mode = #tpu.pipeline_mode<synchronous>, transform_indices = @transform_12, window_bounds = array<i64: 1, 32>}, {transform_indices = @transform_13, window_bounds = array<i64: 8, 32>}]} {
    %c0 = arith.constant 0 : index
    %c0_0 = arith.constant 0 : index
    %0 = vector.load %arg1[%c0, %c0_0] : memref<8x32xf32, #tpu.memory_space<vmem>>, vector<8x32xf32>
    %c0_1 = arith.constant 0 : index
    %c0_2 = arith.constant 0 : index
    %1 = vector.load %arg2[%c0_1, %c0_2] : memref<1x32xf32, #tpu.memory_space<vmem>>, vector<1x32xf32>
    %c0_3 = arith.constant 0 : index
    %c0_4 = arith.constant 0 : index
    %2 = vector.load %arg3[%c0_3, %c0_4] : memref<1x32xf32, #tpu.memory_space<vmem>>, vector<1x32xf32>
    %cst = arith.constant dense<0.000000e+00> : vector<8xf32>
    %3 = vector.multi_reduction <add>, %0, %cst [1] : vector<8x32xf32> to vector<8xf32>
    %4 = vector.shape_cast %3 : vector<8xf32> to vector<8x1xf32>
    %cst_5 = arith.constant 3.200000e+01 : f32
    %5 = vector.broadcast %cst_5 : f32 to vector<8x1xf32>
    %6 = arith.divf %4, %5 : vector<8x1xf32>
    %7 = vector.broadcast %6 : vector<8x1xf32> to vector<8x32xf32>
    %8 = arith.subf %0, %7 : vector<8x32xf32>
    %9 = arith.mulf %8, %8 : vector<8x32xf32>
    %cst_6 = arith.constant dense<0.000000e+00> : vector<8xf32>
    %10 = vector.multi_reduction <add>, %9, %cst_6 [1] : vector<8x32xf32> to vector<8xf32>
    %11 = vector.shape_cast %10 : vector<8xf32> to vector<8x1xf32>
    %cst_7 = arith.constant 3.200000e+01 : f32
    %12 = vector.broadcast %cst_7 : f32 to vector<8x1xf32>
    %13 = arith.divf %11, %12 : vector<8x1xf32>
    %14 = vector.broadcast %6 : vector<8x1xf32> to vector<8x32xf32>
    %15 = arith.subf %0, %14 : vector<8x32xf32>
    %cst_8 = arith.constant 9.99999974E-6 : f32
    %16 = vector.broadcast %cst_8 : f32 to vector<8x1xf32>
    %17 = arith.addf %13, %16 : vector<8x1xf32>
    %18 = math.rsqrt %17 : vector<8x1xf32>
    %19 = vector.broadcast %18 : vector<8x1xf32> to vector<8x32xf32>
    %20 = arith.mulf %15, %19 : vector<8x32xf32>
    %21 = vector.broadcast %1 : vector<1x32xf32> to vector<8x32xf32>
    %22 = arith.mulf %20, %21 : vector<8x32xf32>
    %23 = vector.broadcast %2 : vector<1x32xf32> to vector<8x32xf32>
    %24 = arith.addf %22, %23 : vector<8x32xf32>
    %c0_9 = arith.constant 0 : index
    %c0_10 = arith.constant 0 : index
    %25 = vector.load %arg4[%c0_9, %c0_10] : memref<32x96xf32, #tpu.memory_space<vmem>>, vector<32x96xf32>
    %cst_11 = arith.constant dense<0.000000e+00> : vector<8x96xf32>
    %26 = tpu.matmul %24, %25, %cst_11 {dimension_numbers = #tpu.dot_dimension_numbers<[1], [0], [0], [1], [0, 0, 1, 1], [], []>} : vector<8x32xf32>, vector<32x96xf32>, vector<8x96xf32> -> vector<8x96xf32>
    %c0_12 = arith.constant 0 : index
    %c0_13 = arith.constant 0 : index
    %27 = vector.load %arg5[%c0_12, %c0_13] : memref<1x96xf32, #tpu.memory_space<vmem>>, vector<1x96xf32>
    %28 = vector.broadcast %27 : vector<1x96xf32> to vector<8x96xf32>
    %29 = arith.addf %26, %28 : vector<8x96xf32>
    %c0_14 = arith.constant 0 : index
    %c0_15 = arith.constant 0 : index
    %30 = vector.load %arg15[%c0_14, %c0_15] : memref<8x96xf32, #tpu.memory_space<vmem>>, vector<8x96xf32>
    tpu.vector_store %arg15[%c0_14, %c0_15], %29 {strides = array<i32>} : memref<8x96xf32, #tpu.memory_space<vmem>>, vector<8x96xf32>,
    %c0_i32 = arith.constant 0 : i32
    %c8_i32 = arith.constant 8 : i32
    %31 = arith.muli %c0_i32, %c8_i32 : i32
    %32 = tpu.assume_multiple %31, 8 : i32
    %33 = arith.index_cast %32 : i32 to index
    %c0_16 = arith.constant 0 : index
    %34 = vector.load %arg15[%33, %c0_16] : memref<8x96xf32, #tpu.memory_space<vmem>>, vector<8x96xf32>
    %35 = vector.extract_strided_slice %34 {offsets = [0, 0], sizes = [8, 4], strides = [1, 1]} : vector<8x96xf32> to vector<8x4xf32>
    %36 = vector.extract_strided_slice %34 {offsets = [0, 32], sizes = [8, 4], strides = [1, 1]} : vector<8x96xf32> to vector<8x4xf32>
    %37 = vector.extract_strided_slice %34 {offsets = [0, 64], sizes = [8, 4], strides = [1, 1]} : vector<8x96xf32> to vector<8x4xf32>
    %cst_17 = arith.constant dense<0.000000e+00> : vector<8x8xf32>
    %38 = tpu.matmul %35, %36, %cst_17 {dimension_numbers = #tpu.dot_dimension_numbers<[1], [1], [0], [0], [0, 0, 1, 0], [], []>} : vector<8x4xf32>, vector<8x4xf32>, vector<8x8xf32> -> vector<8x8xf32>
    %cst_18 = arith.constant dense<0xFF800000> : vector<8xf32>
    %39 = vector.multi_reduction <maximumf>, %38, %cst_18 [1] : vector<8x8xf32> to vector<8xf32>
    %40 = vector.shape_cast %39 : vector<8xf32> to vector<8x1xf32>
    %41 = vector.broadcast %40 : vector<8x1xf32> to vector<8x8xf32>
    %42 = arith.subf %38, %41 : vector<8x8xf32>
    %43 = math.exp %42 : vector<8x8xf32>
    %cst_19 = arith.constant dense<0.000000e+00> : vector<8xf32>
    %44 = vector.multi_reduction <add>, %43, %cst_19 [1] : vector<8x8xf32> to vector<8xf32>
    %45 = vector.shape_cast %44 : vector<8xf32> to vector<8x1xf32>
    %46 = tpu.reciprocal %45 : vector<8x1xf32> -> vector<8x1xf32>
    %47 = vector.broadcast %46 : vector<8x1xf32> to vector<8x8xf32>
    %48 = arith.mulf %43, %47 : vector<8x8xf32>
    %cst_20 = arith.constant dense<0.000000e+00> : vector<8x4xf32>
    %49 = tpu.matmul %48, %37, %cst_20 {dimension_numbers = #tpu.dot_dimension_numbers<[1], [0], [0], [1], [0, 0, 1, 1], [], []>} : vector<8x8xf32>, vector<8x4xf32>, vector<8x4xf32> -> vector<8x4xf32>
    %50 = vector.extract_strided_slice %34 {offsets = [0, 4], sizes = [8, 4], strides = [1, 1]} : vector<8x96xf32> to vector<8x4xf32>
    %51 = vector.extract_strided_slice %34 {offsets = [0, 36], sizes = [8, 4], strides = [1, 1]} : vector<8x96xf32> to vector<8x4xf32>
    %52 = vector.extract_strided_slice %34 {offsets = [0, 68], sizes = [8, 4], strides = [1, 1]} : vector<8x96xf32> to vector<8x4xf32>
    %cst_21 = arith.constant dense<0.000000e+00> : vector<8x8xf32>
    %53 = tpu.matmul %50, %51, %cst_21 {dimension_numbers = #tpu.dot_dimension_numbers<[1], [1], [0], [0], [0, 0, 1, 0], [], []>} : vector<8x4xf32>, vector<8x4xf32>, vector<8x8xf32> -> vector<8x8xf32>
    %cst_22 = arith.constant dense<0xFF800000> : vector<8xf32>
    %54 = vector.multi_reduction <maximumf>, %53, %cst_22 [1] : vector<8x8xf32> to vector<8xf32>
    %55 = vector.shape_cast %54 : vector<8xf32> to vector<8x1xf32>
    %56 = vector.broadcast %55 : vector<8x1xf32> to vector<8x8xf32>
    %57 = arith.subf %53, %56 : vector<8x8xf32>
    %58 = math.exp %57 : vector<8x8xf32>
    %cst_23 = arith.constant dense<0.000000e+00> : vector<8xf32>
    %59 = vector.multi_reduction <add>, %58, %cst_23 [1] : vector<8x8xf32> to vector<8xf32>
    %60 = vector.shape_cast %59 : vector<8xf32> to vector<8x1xf32>
    %61 = tpu.reciprocal %60 : vector<8x1xf32> -> vector<8x1xf32>
    %62 = vector.broadcast %61 : vector<8x1xf32> to vector<8x8xf32>
    %63 = arith.mulf %58, %62 : vector<8x8xf32>
    %cst_24 = arith.constant dense<0.000000e+00> : vector<8x4xf32>
    %64 = tpu.matmul %63, %52, %cst_24 {dimension_numbers = #tpu.dot_dimension_numbers<[1], [0], [0], [1], [0, 0, 1, 1], [], []>} : vector<8x8xf32>, vector<8x4xf32>, vector<8x4xf32> -> vector<8x4xf32>
    %65 = vector.extract_strided_slice %34 {offsets = [0, 8], sizes = [8, 4], strides = [1, 1]} : vector<8x96xf32> to vector<8x4xf32>
    %66 = vector.extract_strided_slice %34 {offsets = [0, 40], sizes = [8, 4], strides = [1, 1]} : vector<8x96xf32> to vector<8x4xf32>
    %67 = vector.extract_strided_slice %34 {offsets = [0, 72], sizes = [8, 4], strides = [1, 1]} : vector<8x96xf32> to vector<8x4xf32>
    %cst_25 = arith.constant dense<0.000000e+00> : vector<8x8xf32>
    %68 = tpu.matmul %65, %66, %cst_25 {dimension_numbers = #tpu.dot_dimension_numbers<[1], [1], [0], [0], [0, 0, 1, 0], [], []>} : vector<8x4xf32>, vector<8x4xf32>, vector<8x8xf32> -> vector<8x8xf32>
    %cst_26 = arith.constant dense<0xFF800000> : vector<8xf32>
    %69 = vector.multi_reduction <maximumf>, %68, %cst_26 [1] : vector<8x8xf32> to vector<8xf32>
    %70 = vector.shape_cast %69 : vector<8xf32> to vector<8x1xf32>
    %71 = vector.broadcast %70 : vector<8x1xf32> to vector<8x8xf32>
    %72 = arith.subf %68, %71 : vector<8x8xf32>
    %73 = math.exp %72 : vector<8x8xf32>
    %cst_27 = arith.constant dense<0.000000e+00> : vector<8xf32>
    %74 = vector.multi_reduction <add>, %73, %cst_27 [1] : vector<8x8xf32> to vector<8xf32>
    %75 = vector.shape_cast %74 : vector<8xf32> to vector<8x1xf32>
    %76 = tpu.reciprocal %75 : vector<8x1xf32> -> vector<8x1xf32>
    %77 = vector.broadcast %76 : vector<8x1xf32> to vector<8x8xf32>
    %78 = arith.mulf %73, %77 : vector<8x8xf32>
    %cst_28 = arith.constant dense<0.000000e+00> : vector<8x4xf32>
    %79 = tpu.matmul %78, %67, %cst_28 {dimension_numbers = #tpu.dot_dimension_numbers<[1], [0], [0], [1], [0, 0, 1, 1], [], []>} : vector<8x8xf32>, vector<8x4xf32>, vector<8x4xf32> -> vector<8x4xf32>
    %80 = vector.extract_strided_slice %34 {offsets = [0, 12], sizes = [8, 4], strides = [1, 1]} : vector<8x96xf32> to vector<8x4xf32>
    %81 = vector.extract_strided_slice %34 {offsets = [0, 44], sizes = [8, 4], strides = [1, 1]} : vector<8x96xf32> to vector<8x4xf32>
    %82 = vector.extract_strided_slice %34 {offsets = [0, 76], sizes = [8, 4], strides = [1, 1]} : vector<8x96xf32> to vector<8x4xf32>
    %cst_29 = arith.constant dense<0.000000e+00> : vector<8x8xf32>
    %83 = tpu.matmul %80, %81, %cst_29 {dimension_numbers = #tpu.dot_dimension_numbers<[1], [1], [0], [0], [0, 0, 1, 0], [], []>} : vector<8x4xf32>, vector<8x4xf32>, vector<8x8xf32> -> vector<8x8xf32>
    %cst_30 = arith.constant dense<0xFF800000> : vector<8xf32>
    %84 = vector.multi_reduction <maximumf>, %83, %cst_30 [1] : vector<8x8xf32> to vector<8xf32>
    %85 = vector.shape_cast %84 : vector<8xf32> to vector<8x1xf32>
    %86 = vector.broadcast %85 : vector<8x1xf32> to vector<8x8xf32>
    %87 = arith.subf %83, %86 : vector<8x8xf32>
    %88 = math.exp %87 : vector<8x8xf32>
    %cst_31 = arith.constant dense<0.000000e+00> : vector<8xf32>
    %89 = vector.multi_reduction <add>, %88, %cst_31 [1] : vector<8x8xf32> to vector<8xf32>
    %90 = vector.shape_cast %89 : vector<8xf32> to vector<8x1xf32>
    %91 = tpu.reciprocal %90 : vector<8x1xf32> -> vector<8x1xf32>
    %92 = vector.broadcast %91 : vector<8x1xf32> to vector<8x8xf32>
    %93 = arith.mulf %88, %92 : vector<8x8xf32>
    %cst_32 = arith.constant dense<0.000000e+00> : vector<8x4xf32>
    %94 = tpu.matmul %93, %82, %cst_32 {dimension_numbers = #tpu.dot_dimension_numbers<[1], [0], [0], [1], [0, 0, 1, 1], [], []>} : vector<8x8xf32>, vector<8x4xf32>, vector<8x4xf32> -> vector<8x4xf32>
    %95 = vector.extract_strided_slice %34 {offsets = [0, 16], sizes = [8, 4], strides = [1, 1]} : vector<8x96xf32> to vector<8x4xf32>
    %96 = vector.extract_strided_slice %34 {offsets = [0, 48], sizes = [8, 4], strides = [1, 1]} : vector<8x96xf32> to vector<8x4xf32>
    %97 = vector.extract_strided_slice %34 {offsets = [0, 80], sizes = [8, 4], strides = [1, 1]} : vector<8x96xf32> to vector<8x4xf32>
    %cst_33 = arith.constant dense<0.000000e+00> : vector<8x8xf32>
    %98 = tpu.matmul %95, %96, %cst_33 {dimension_numbers = #tpu.dot_dimension_numbers<[1], [1], [0], [0], [0, 0, 1, 0], [], []>} : vector<8x4xf32>, vector<8x4xf32>, vector<8x8xf32> -> vector<8x8xf32>
    %cst_34 = arith.constant dense<0xFF800000> : vector<8xf32>
    %99 = vector.multi_reduction <maximumf>, %98, %cst_34 [1] : vector<8x8xf32> to vector<8xf32>
    %100 = vector.shape_cast %99 : vector<8xf32> to vector<8x1xf32>
    %101 = vector.broadcast %100 : vector<8x1xf32> to vector<8x8xf32>
    %102 = arith.subf %98, %101 : vector<8x8xf32>
    %103 = math.exp %102 : vector<8x8xf32>
    %cst_35 = arith.constant dense<0.000000e+00> : vector<8xf32>
    %104 = vector.multi_reduction <add>, %103, %cst_35 [1] : vector<8x8xf32> to vector<8xf32>
    %105 = vector.shape_cast %104 : vector<8xf32> to vector<8x1xf32>
    %106 = tpu.reciprocal %105 : vector<8x1xf32> -> vector<8x1xf32>
    %107 = vector.broadcast %106 : vector<8x1xf32> to vector<8x8xf32>
    %108 = arith.mulf %103, %107 : vector<8x8xf32>
    %cst_36 = arith.constant dense<0.000000e+00> : vector<8x4xf32>
    %109 = tpu.matmul %108, %97, %cst_36 {dimension_numbers = #tpu.dot_dimension_numbers<[1], [0], [0], [1], [0, 0, 1, 1], [], []>} : vector<8x8xf32>, vector<8x4xf32>, vector<8x4xf32> -> vector<8x4xf32>
    %110 = vector.extract_strided_slice %34 {offsets = [0, 20], sizes = [8, 4], strides = [1, 1]} : vector<8x96xf32> to vector<8x4xf32>
    %111 = vector.extract_strided_slice %34 {offsets = [0, 52], sizes = [8, 4], strides = [1, 1]} : vector<8x96xf32> to vector<8x4xf32>
    %112 = vector.extract_strided_slice %34 {offsets = [0, 84], sizes = [8, 4], strides = [1, 1]} : vector<8x96xf32> to vector<8x4xf32>
    %cst_37 = arith.constant dense<0.000000e+00> : vector<8x8xf32>
    %113 = tpu.matmul %110, %111, %cst_37 {dimension_numbers = #tpu.dot_dimension_numbers<[1], [1], [0], [0], [0, 0, 1, 0], [], []>} : vector<8x4xf32>, vector<8x4xf32>, vector<8x8xf32> -> vector<8x8xf32>
    %cst_38 = arith.constant dense<0xFF800000> : vector<8xf32>
    %114 = vector.multi_reduction <maximumf>, %113, %cst_38 [1] : vector<8x8xf32> to vector<8xf32>
    %115 = vector.shape_cast %114 : vector<8xf32> to vector<8x1xf32>
    %116 = vector.broadcast %115 : vector<8x1xf32> to vector<8x8xf32>
    %117 = arith.subf %113, %116 : vector<8x8xf32>
    %118 = math.exp %117 : vector<8x8xf32>
    %cst_39 = arith.constant dense<0.000000e+00> : vector<8xf32>
    %119 = vector.multi_reduction <add>, %118, %cst_39 [1] : vector<8x8xf32> to vector<8xf32>
    %120 = vector.shape_cast %119 : vector<8xf32> to vector<8x1xf32>
    %121 = tpu.reciprocal %120 : vector<8x1xf32> -> vector<8x1xf32>
    %122 = vector.broadcast %121 : vector<8x1xf32> to vector<8x8xf32>
    %123 = arith.mulf %118, %122 : vector<8x8xf32>
    %cst_40 = arith.constant dense<0.000000e+00> : vector<8x4xf32>
    %124 = tpu.matmul %123, %112, %cst_40 {dimension_numbers = #tpu.dot_dimension_numbers<[1], [0], [0], [1], [0, 0, 1, 1], [], []>} : vector<8x8xf32>, vector<8x4xf32>, vector<8x4xf32> -> vector<8x4xf32>
    %125 = vector.extract_strided_slice %34 {offsets = [0, 24], sizes = [8, 4], strides = [1, 1]} : vector<8x96xf32> to vector<8x4xf32>
    %126 = vector.extract_strided_slice %34 {offsets = [0, 56], sizes = [8, 4], strides = [1, 1]} : vector<8x96xf32> to vector<8x4xf32>
    %127 = vector.extract_strided_slice %34 {offsets = [0, 88], sizes = [8, 4], strides = [1, 1]} : vector<8x96xf32> to vector<8x4xf32>
    %cst_41 = arith.constant dense<0.000000e+00> : vector<8x8xf32>
    %128 = tpu.matmul %125, %126, %cst_41 {dimension_numbers = #tpu.dot_dimension_numbers<[1], [1], [0], [0], [0, 0, 1, 0], [], []>} : vector<8x4xf32>, vector<8x4xf32>, vector<8x8xf32> -> vector<8x8xf32>
    %cst_42 = arith.constant dense<0xFF800000> : vector<8xf32>
    %129 = vector.multi_reduction <maximumf>, %128, %cst_42 [1] : vector<8x8xf32> to vector<8xf32>
    %130 = vector.shape_cast %129 : vector<8xf32> to vector<8x1xf32>
    %131 = vector.broadcast %130 : vector<8x1xf32> to vector<8x8xf32>
    %132 = arith.subf %128, %131 : vector<8x8xf32>
    %133 = math.exp %132 : vector<8x8xf32>
    %cst_43 = arith.constant dense<0.000000e+00> : vector<8xf32>
    %134 = vector.multi_reduction <add>, %133, %cst_43 [1] : vector<8x8xf32> to vector<8xf32>
    %135 = vector.shape_cast %134 : vector<8xf32> to vector<8x1xf32>
    %136 = tpu.reciprocal %135 : vector<8x1xf32> -> vector<8x1xf32>
    %137 = vector.broadcast %136 : vector<8x1xf32> to vector<8x8xf32>
    %138 = arith.mulf %133, %137 : vector<8x8xf32>
    %cst_44 = arith.constant dense<0.000000e+00> : vector<8x4xf32>
    %139 = tpu.matmul %138, %127, %cst_44 {dimension_numbers = #tpu.dot_dimension_numbers<[1], [0], [0], [1], [0, 0, 1, 1], [], []>} : vector<8x8xf32>, vector<8x4xf32>, vector<8x4xf32> -> vector<8x4xf32>
    %140 = vector.extract_strided_slice %34 {offsets = [0, 28], sizes = [8, 4], strides = [1, 1]} : vector<8x96xf32> to vector<8x4xf32>
    %141 = vector.extract_strided_slice %34 {offsets = [0, 60], sizes = [8, 4], strides = [1, 1]} : vector<8x96xf32> to vector<8x4xf32>
    %142 = vector.extract_strided_slice %34 {offsets = [0, 92], sizes = [8, 4], strides = [1, 1]} : vector<8x96xf32> to vector<8x4xf32>
    %cst_45 = arith.constant dense<0.000000e+00> : vector<8x8xf32>
    %143 = tpu.matmul %140, %141, %cst_45 {dimension_numbers = #tpu.dot_dimension_numbers<[1], [1], [0], [0], [0, 0, 1, 0], [], []>} : vector<8x4xf32>, vector<8x4xf32>, vector<8x8xf32> -> vector<8x8xf32>
    %cst_46 = arith.constant dense<0xFF800000> : vector<8xf32>
    %144 = vector.multi_reduction <maximumf>, %143, %cst_46 [1] : vector<8x8xf32> to vector<8xf32>
    %145 = vector.shape_cast %144 : vector<8xf32> to vector<8x1xf32>
    %146 = vector.broadcast %145 : vector<8x1xf32> to vector<8x8xf32>
    %147 = arith.subf %143, %146 : vector<8x8xf32>
    %148 = math.exp %147 : vector<8x8xf32>
    %cst_47 = arith.constant dense<0.000000e+00> : vector<8xf32>
    %149 = vector.multi_reduction <add>, %148, %cst_47 [1] : vector<8x8xf32> to vector<8xf32>
    %150 = vector.shape_cast %149 : vector<8xf32> to vector<8x1xf32>
    %151 = tpu.reciprocal %150 : vector<8x1xf32> -> vector<8x1xf32>
    %152 = vector.broadcast %151 : vector<8x1xf32> to vector<8x8xf32>
    %153 = arith.mulf %148, %152 : vector<8x8xf32>
    %cst_48 = arith.constant dense<0.000000e+00> : vector<8x4xf32>
    %154 = tpu.matmul %153, %142, %cst_48 {dimension_numbers = #tpu.dot_dimension_numbers<[1], [0], [0], [1], [0, 0, 1, 1], [], []>} : vector<8x8xf32>, vector<8x4xf32>, vector<8x4xf32> -> vector<8x4xf32>
    %155 = tpu.concatenate %49, %64, %79, %94, %109, %124, %139, %154 in 1 : vector<8x4xf32>, vector<8x4xf32>, vector<8x4xf32>, vector<8x4xf32>, vector<8x4xf32>, vector<8x4xf32>, vector<8x4xf32>, vector<8x4xf32> -> vector<8x32xf32>
    %156 = arith.index_cast %32 : i32 to index
    %c0_49 = arith.constant 0 : index
    %157 = vector.load %arg16[%156, %c0_49] : memref<8x32xf32, #tpu.memory_space<vmem>>, vector<8x32xf32>
    tpu.vector_store %arg16[%156, %c0_49], %155 {strides = array<i32>} : memref<8x32xf32, #tpu.memory_space<vmem>>, vector<8x32xf32>,
    %c1_i32 = arith.constant 1 : i32
    %c0_50 = arith.constant 0 : index
    %c0_51 = arith.constant 0 : index
    %158 = vector.load %arg16[%c0_50, %c0_51] : memref<8x32xf32, #tpu.memory_space<vmem>>, vector<8x32xf32>
    %c0_52 = arith.constant 0 : index
    %c0_53 = arith.constant 0 : index
    %159 = vector.load %arg6[%c0_52, %c0_53] : memref<32x32xf32, #tpu.memory_space<vmem>>, vector<32x32xf32>
    %cst_54 = arith.constant dense<0.000000e+00> : vector<8x32xf32>
    %160 = tpu.matmul %158, %159, %cst_54 {dimension_numbers = #tpu.dot_dimension_numbers<[1], [0], [0], [1], [0, 0, 1, 1], [], []>} : vector<8x32xf32>, vector<32x32xf32>, vector<8x32xf32> -> vector<8x32xf32>
    %c0_55 = arith.constant 0 : index
    %c0_56 = arith.constant 0 : index
    %161 = vector.load %arg7[%c0_55, %c0_56] : memref<1x32xf32, #tpu.memory_space<vmem>>, vector<1x32xf32>
    %162 = vector.broadcast %161 : vector<1x32xf32> to vector<8x32xf32>
    %163 = arith.addf %160, %162 : vector<8x32xf32>
    %164 = arith.addf %163, %0 : vector<8x32xf32>
    %c0_57 = arith.constant 0 : index
    %c0_58 = arith.constant 0 : index
    %165 = vector.load %arg8[%c0_57, %c0_58] : memref<1x32xf32, #tpu.memory_space<vmem>>, vector<1x32xf32>
    %c0_59 = arith.constant 0 : index
    %c0_60 = arith.constant 0 : index
    %166 = vector.load %arg9[%c0_59, %c0_60] : memref<1x32xf32, #tpu.memory_space<vmem>>, vector<1x32xf32>
    %cst_61 = arith.constant dense<0.000000e+00> : vector<8xf32>
    %167 = vector.multi_reduction <add>, %164, %cst_61 [1] : vector<8x32xf32> to vector<8xf32>
    %168 = vector.shape_cast %167 : vector<8xf32> to vector<8x1xf32>
    %cst_62 = arith.constant 3.200000e+01 : f32
    %169 = vector.broadcast %cst_62 : f32 to vector<8x1xf32>
    %170 = arith.divf %168, %169 : vector<8x1xf32>
    %171 = vector.broadcast %170 : vector<8x1xf32> to vector<8x32xf32>
    %172 = arith.subf %164, %171 : vector<8x32xf32>
    %173 = arith.mulf %172, %172 : vector<8x32xf32>
    %cst_63 = arith.constant dense<0.000000e+00> : vector<8xf32>
    %174 = vector.multi_reduction <add>, %173, %cst_63 [1] : vector<8x32xf32> to vector<8xf32>
    %175 = vector.shape_cast %174 : vector<8xf32> to vector<8x1xf32>
    %cst_64 = arith.constant 3.200000e+01 : f32
    %176 = vector.broadcast %cst_64 : f32 to vector<8x1xf32>
    %177 = arith.divf %175, %176 : vector<8x1xf32>
    %178 = vector.broadcast %170 : vector<8x1xf32> to vector<8x32xf32>
    %179 = arith.subf %164, %178 : vector<8x32xf32>
    %cst_65 = arith.constant 9.99999974E-6 : f32
    %180 = vector.broadcast %cst_65 : f32 to vector<8x1xf32>
    %181 = arith.addf %177, %180 : vector<8x1xf32>
    %182 = math.rsqrt %181 : vector<8x1xf32>
    %183 = vector.broadcast %182 : vector<8x1xf32> to vector<8x32xf32>
    %184 = arith.mulf %179, %183 : vector<8x32xf32>
    %185 = vector.broadcast %165 : vector<1x32xf32> to vector<8x32xf32>
    %186 = arith.mulf %184, %185 : vector<8x32xf32>
    %187 = vector.broadcast %166 : vector<1x32xf32> to vector<8x32xf32>
    %188 = arith.addf %186, %187 : vector<8x32xf32>
    %c0_66 = arith.constant 0 : index
    %c0_67 = arith.constant 0 : index
    %189 = vector.load %arg10[%c0_66, %c0_67] : memref<32x64xf32, #tpu.memory_space<vmem>>, vector<32x64xf32>
    %cst_68 = arith.constant dense<0.000000e+00> : vector<8x64xf32>
    %190 = tpu.matmul %188, %189, %cst_68 {dimension_numbers = #tpu.dot_dimension_numbers<[1], [0], [0], [1], [0, 0, 1, 1], [], []>} : vector<8x32xf32>, vector<32x64xf32>, vector<8x64xf32> -> vector<8x64xf32>
    %c0_69 = arith.constant 0 : index
    %c0_70 = arith.constant 0 : index
    %191 = vector.load %arg11[%c0_69, %c0_70] : memref<1x64xf32, #tpu.memory_space<vmem>>, vector<1x64xf32>
    %192 = vector.broadcast %191 : vector<1x64xf32> to vector<8x64xf32>
    %193 = arith.addf %190, %192 : vector<8x64xf32>
    %cst_71 = arith.constant 5.000000e-01 : f32
    %194 = vector.broadcast %cst_71 : f32 to vector<8x64xf32>
    %195 = arith.mulf %194, %193 : vector<8x64xf32>
    %cst_72 = arith.constant 4.471500e-02 : f32
    %196 = vector.broadcast %cst_72 : f32 to vector<8x64xf32>
    %197 = arith.mulf %196, %193 : vector<8x64xf32>
    %198 = arith.mulf %197, %193 : vector<8x64xf32>
    %199 = arith.mulf %198, %193 : vector<8x64xf32>
    %200 = arith.addf %193, %199 : vector<8x64xf32>
    %cst_73 = arith.constant 0.797884583 : f32
    %201 = vector.broadcast %cst_73 : f32 to vector<8x64xf32>
    %202 = arith.mulf %201, %200 : vector<8x64xf32>
    %203 = math.tanh %202 : vector<8x64xf32>
    %cst_74 = arith.constant 1.000000e+00 : f32
    %204 = vector.broadcast %cst_74 : f32 to vector<8x64xf32>
    %205 = arith.addf %204, %203 : vector<8x64xf32>
    %206 = arith.mulf %195, %205 : vector<8x64xf32>
    %c0_75 = arith.constant 0 : index
    %c0_76 = arith.constant 0 : index
    %207 = vector.load %arg12[%c0_75, %c0_76] : memref<64x32xf32, #tpu.memory_space<vmem>>, vector<64x32xf32>
    %cst_77 = arith.constant dense<0.000000e+00> : vector<8x32xf32>
    %208 = tpu.matmul %206, %207, %cst_77 {dimension_numbers = #tpu.dot_dimension_numbers<[1], [0], [0], [1], [0, 0, 1, 1], [], []>} : vector<8x64xf32>, vector<64x32xf32>, vector<8x32xf32> -> vector<8x32xf32>
    %c0_78 = arith.constant 0 : index
    %c0_79 = arith.constant 0 : index
    %209 = vector.load %arg13[%c0_78, %c0_79] : memref<1x32xf32, #tpu.memory_space<vmem>>, vector<1x32xf32>
    %210 = vector.broadcast %209 : vector<1x32xf32> to vector<8x32xf32>
    %211 = arith.addf %208, %210 : vector<8x32xf32>
    %cst_80 = arith.constant 5.000000e-01 : f32
    %212 = vector.broadcast %cst_80 : f32 to vector<8x32xf32>
    %213 = arith.mulf %212, %211 : vector<8x32xf32>
    %cst_81 = arith.constant 4.471500e-02 : f32
    %214 = vector.broadcast %cst_81 : f32 to vector<8x32xf32>
    %215 = arith.mulf %214, %211 : vector<8x32xf32>
    %216 = arith.mulf %215, %211 : vector<8x32xf32>
    %217 = arith.mulf %216, %211 : vector<8x32xf32>
    %218 = arith.addf %211, %217 : vector<8x32xf32>
    %cst_82 = arith.constant 0.797884583 : f32
    %219 = vector.broadcast %cst_82 : f32 to vector<8x32xf32>
    %220 = arith.mulf %219, %218 : vector<8x32xf32>
    %221 = math.tanh %220 : vector<8x32xf32>
    %cst_83 = arith.constant 1.000000e+00 : f32
    %222 = vector.broadcast %cst_83 : f32 to vector<8x32xf32>
    %223 = arith.addf %222, %221 : vector<8x32xf32>
    %224 = arith.mulf %213, %223 : vector<8x32xf32>
    %225 = arith.addf %224, %164 : vector<8x32xf32>
    %c0_84 = arith.constant 0 : index
    %c0_85 = arith.constant 0 : index
    %226 = vector.load %arg14[%c0_84, %c0_85] : memref<8x32xf32, #tpu.memory_space<vmem>>, vector<8x32xf32>
    tpu.vector_store %arg14[%c0_84, %c0_85], %225 {strides = array<i32>} : memref<8x32xf32, #tpu.memory_space<vmem>>, vector<8x32xf32>,
    return
  }
  func.func @transform_0(%arg0: i32) -> (i32, i32) {
    %c0_i32 = arith.constant 0 : i32
    %c0_i32_0 = arith.constant 0 : i32
    return %arg0, %c0_i32 : i32, i32
  }
  func.func @transform_1(%arg0: i32) -> (i32, i32) {
    %c0_i32 = arith.constant 0 : i32
    %c0_i32_0 = arith.constant 0 : i32
    %c0_i32_1 = arith.constant 0 : i32
    return %c0_i32, %c0_i32_0 : i32, i32
  }
  func.func @transform_2(%arg0: i32) -> (i32, i32) {
    %c0_i32 = arith.constant 0 : i32
    %c0_i32_0 = arith.constant 0 : i32
    %c0_i32_1 = arith.constant 0 : i32
    return %c0_i32, %c0_i32_0 : i32, i32
  }
  func.func @transform_3(%arg0: i32) -> (i32, i32) {
    %c0_i32 = arith.constant 0 : i32
    %c0_i32_0 = arith.constant 0 : i32
    %c0_i32_1 = arith.constant 0 : i32
    return %c0_i32, %c0_i32_0 : i32, i32
  }
  func.func @transform_4(%arg0: i32) -> (i32, i32) {
    %c0_i32 = arith.constant 0 : i32
    %c0_i32_0 = arith.constant 0 : i32
    %c0_i32_1 = arith.constant 0 : i32
    return %c0_i32, %c0_i32_0 : i32, i32
  }
  func.func @transform_5(%arg0: i32) -> (i32, i32) {
    %c0_i32 = arith.constant 0 : i32
    %c0_i32_0 = arith.constant 0 : i32
    %c0_i32_1 = arith.constant 0 : i32
    return %c0_i32, %c0_i32_0 : i32, i32
  }
  func.func @transform_6(%arg0: i32) -> (i32, i32) {
    %c0_i32 = arith.constant 0 : i32
    %c0_i32_0 = arith.constant 0 : i32
    %c0_i32_1 = arith.constant 0 : i32
    return %c0_i32, %c0_i32_0 : i32, i32
  }
  func.func @transform_7(%arg0: i32) -> (i32, i32) {
    %c0_i32 = arith.constant 0 : i32
    %c0_i32_0 = arith.constant 0 : i32
    %c0_i32_1 = arith.constant 0 : i32
    return %c0_i32, %c0_i32_0 : i32, i32
  }
  func.func @transform_8(%arg0: i32) -> (i32, i32) {
    %c0_i32 = arith.constant 0 : i32
    %c0_i32_0 = arith.constant 0 : i32
    %c0_i32_1 = arith.constant 0 : i32
    return %c0_i32, %c0_i32_0 : i32, i32
  }
  func.func @transform_9(%arg0: i32) -> (i32, i32) {
    %c0_i32 = arith.constant 0 : i32
    %c0_i32_0 = arith.constant 0 : i32
    %c0_i32_1 = arith.constant 0 : i32
    return %c0_i32, %c0_i32_0 : i32, i32
  }
  func.func @transform_10(%arg0: i32) -> (i32, i32) {
    %c0_i32 = arith.constant 0 : i32
    %c0_i32_0 = arith.constant 0 : i32
    %c0_i32_1 = arith.constant 0 : i32
    return %c0_i32, %c0_i32_0 : i32, i32
  }
  func.func @transform_11(%arg0: i32) -> (i32, i32) {
    %c0_i32 = arith.constant 0 : i32
    %c0_i32_0 = arith.constant 0 : i32
    %c0_i32_1 = arith.constant 0 : i32
    return %c0_i32, %c0_i32_0 : i32, i32
  }
  func.func @transform_12(%arg0: i32) -> (i32, i32) {
    %c0_i32 = arith.constant 0 : i32
    %c0_i32_0 = arith.constant 0 : i32
    %c0_i32_1 = arith.constant 0 : i32
    return %c0_i32, %c0_i32_0 : i32, i32
  }
  func.func @transform_13(%arg0: i32) -> (i32, i32) {
    %c0_i32 = arith.constant 0 : i32
    %c0_i32_0 = arith.constant 0 : i32
    return %arg0, %c0_i32 : i32, i32
  }
}

</mosaic_0001>

<llo_original>
// kernel: tpu_custom_call.1
$region0: #{tpu_custom_call.1}
  #allocation0 [shape = 'u32[]', space=smem, size = 0x4, offset = 0x4, fixed_abs, tag = 'smem constant byte address 0x4 - core index']
  #allocation1 [shape = 'u32[144,128]{1,0:T(1,128)}', space=vmem, size = 0x12000, scoped, tag = 'internal scratch']
  #allocation2 [shape = 'f32[8,96]{1,0:T(8,128)}', space=vmem, size = 0x1000, scoped, tag = 'scratch operand']
  #allocation3 [shape = 'f32[8,32]{1,0:T(8,128)}', space=vmem, size = 0x1000, scoped, tag = 'scratch operand']
  %s0 = inlined_call_operand.hbm [shape: f32[16,32], index: 0, kind: input, shape index: {}]
  %s1 = inlined_call_operand.hbm [shape: f32[1,32], index: 1, kind: input, shape index: {}]
  %s2 = inlined_call_operand.hbm [shape: f32[1,32], index: 2, kind: input, shape index: {}]
  %s3 = inlined_call_operand.hbm [shape: f32[32,96], index: 3, kind: input, shape index: {}]
  %s4 = inlined_call_operand.hbm [shape: f32[1,96], index: 4, kind: input, shape index: {}]
  %s5 = inlined_call_operand.hbm [shape: f32[32,32], index: 5, kind: input, shape index: {}]
  %s6 = inlined_call_operand.hbm [shape: f32[1,32], index: 6, kind: input, shape index: {}]
  %s7 = inlined_call_operand.hbm [shape: f32[1,32], index: 7, kind: input, shape index: {}]
  %s8 = inlined_call_operand.hbm [shape: f32[1,32], index: 8, kind: input, shape index: {}]
  %s9 = inlined_call_operand.hbm [shape: f32[32,64], index: 9, kind: input, shape index: {}]
  %s10 = inlined_call_operand.hbm [shape: f32[1,64], index: 10, kind: input, shape index: {}]
  %s11 = inlined_call_operand.hbm [shape: f32[64,32], index: 11, kind: input, shape index: {}]
  %s12 = inlined_call_operand.hbm [shape: f32[1,32], index: 12, kind: input, shape index: {}]
  %s13 = inlined_call_operand.hbm [shape: f32[16,32], index: 13, kind: output, shape index: {}]
  %s14 = sld [smem:[#allocation0]]
  $region137: #{tpu_custom_call.1} parent=0
    _
  %s16 = ssub.s32 1, %s14
  %s17 = scalar_select 0, %s16, %s14
  $region1: #{tpu_custom_call.1} parent=0
    #allocation4 [shape = 'u8[8192]{0}', space=vmem, size = 0x2000, scoped, tag = 'input window, operand 0']
    #allocation5 [shape = 's32[2]{0}', space=sflag, size = 0x8, scoped, tag = 'scoped memory for tpu_custom_call.1']
    #allocation6 [shape = 's32[2]{0}', space=sflag, size = 0x8, scoped, tag = 'scoped memory for tpu_custom_call.1']
    #allocation7 [shape = 'u8[512]{0}', space=vmem, size = 0x400, scoped, tag = 'input window, operand 1, single buffered']
    #allocation8 [shape = 's32[1]{0}', space=sflag, size = 0x4, scoped, tag = 'scoped memory for tpu_custom_call.1']
    #allocation9 [shape = 'u8[512]{0}', space=vmem, size = 0x400, scoped, tag = 'input window, operand 2, single buffered']
    #allocation10 [shape = 'u8[16384]{0}', space=vmem, size = 0x4000, scoped, tag = 'input window, operand 3, single buffered']
    #allocation11 [shape = 's32[1]{0}', space=sflag, size = 0x4, scoped, tag = 'scoped memory for tpu_custom_call.1']
    #allocation12 [shape = 'u8[512]{0}', space=vmem, size = 0x400, scoped, tag = 'input window, operand 4, single buffered']
    #allocation13 [shape = 'u8[16384]{0}', space=vmem, size = 0x4000, scoped, tag = 'input window, operand 5, single buffered']
    #allocation14 [shape = 's32[1]{0}', space=sflag, size = 0x4, scoped, tag = 'scoped memory for tpu_custom_call.1']
    #allocation15 [shape = 'u8[512]{0}', space=vmem, size = 0x400, scoped, tag = 'input window, operand 6, single buffered']
    #allocation16 [shape = 'u8[512]{0}', space=vmem, size = 0x400, scoped, tag = 'input window, operand 7, single buffered']
    #allocation17 [shape = 's32[1]{0}', space=sflag, size = 0x4, scoped, tag = 'scoped memory for tpu_custom_call.1']
    #allocation18 [shape = 'u8[512]{0}', space=vmem, size = 0x400, scoped, tag = 'input window, operand 8, single buffered']
    #allocation19 [shape = 'u8[16384]{0}', space=vmem, size = 0x4000, scoped, tag = 'input window, operand 9, single buffered']
    #allocation20 [shape = 's32[1]{0}', space=sflag, size = 0x4, scoped, tag = 'scoped memory for tpu_custom_call.1']
    #allocation21 [shape = 'u8[512]{0}', space=vmem, size = 0x400, scoped, tag = 'input window, operand 10, single buffered']
    #allocation22 [shape = 'u8[32768]{0}', space=vmem, size = 0x8000, scoped, tag = 'input window, operand 11, single buffered']
    #allocation23 [shape = 's32[1]{0}', space=sflag, size = 0x4, scoped, tag = 'scoped memory for tpu_custom_call.1']
    #allocation24 [shape = 'u8[512]{0}', space=vmem, size = 0x400, scoped, tag = 'input window, operand 12, single buffered']
    #allocation25 [shape = 'u8[8192]{0}', space=vmem, size = 0x2000, scoped, tag = 'output window, operand 0']
    %18 = vsyncpa [#allocation5], 0
    %s19 = scalar_lea.sflag [#allocation5], 1
    %20 = vsyncpa %s19, 0
    %21 = vsyncpa [#allocation8], 0
    %22 = vsyncpa [#allocation11], 0
    %23 = vsyncpa [#allocation14], 0
    %24 = vsyncpa [#allocation17], 0
    %25 = vsyncpa [#allocation20], 0
    %26 = vsyncpa [#allocation23], 0
    %27 = vsyncpa [#allocation6], 0
    %s28 = scalar_lea.sflag [#allocation6], 1
    %29 = vsyncpa %s28, 0
    loop: start=0, step=1, limit=4
    $region2: #{tpu_custom_call.1} parent=1 // loop_pre_header
      _
    $region3: #{tpu_custom_call.1} parent=1 // loop_header
      %s31 = sphi 0, %s35
      %p32 = scmp.ge.s32.totalorder %s31, 4
      %s41 = sphi 0, %s43
      %s44 = sphi 0, %s41
      %s45 = sphi 0, %s44
      %s61 = sphi 0, %s45
      %s65 = sphi 0, %s65
      %s67 = sphi 0, %s65
      %s68 = sphi 0, %s67
      %s82 = sphi 0, %s68
      %s86 = sphi 0, %s86
      %s88 = sphi 0, %s86
      %s89 = sphi 0, %s88
      %s103 = sphi 0, %s89
      %s107 = sphi 0, %s107
      %s109 = sphi 0, %s107
      %s110 = sphi 0, %s109
      %s124 = sphi 0, %s110
      %s128 = sphi 0, %s128
      %s130 = sphi 0, %s128
      %s131 = sphi 0, %s130
      %s145 = sphi 0, %s131
      %s149 = sphi 0, %s149
      %s151 = sphi 0, %s149
      %s152 = sphi 0, %s151
      %s166 = sphi 0, %s152
      %s170 = sphi 0, %s170
      %s172 = sphi 0, %s170
      %s173 = sphi 0, %s172
      %s187 = sphi 0, %s173
      %s191 = sphi 0, %s191
      %s193 = sphi 0, %s191
      %s194 = sphi 0, %s193
      %s208 = sphi 0, %s194
      %s212 = sphi 0, %s212
      %s214 = sphi 0, %s212
      %s215 = sphi 0, %s214
      %s229 = sphi 0, %s215
      %s233 = sphi 0, %s233
      %s235 = sphi 0, %s233
      %s236 = sphi 0, %s235
      %s250 = sphi 0, %s236
      %s254 = sphi 0, %s254
      %s256 = sphi 0, %s254
      %s257 = sphi 0, %s256
      %s271 = sphi 0, %s257
      %s275 = sphi 0, %s275
      %s277 = sphi 0, %s275
      %s278 = sphi 0, %s277
      %s292 = sphi 0, %s278
      %s296 = sphi 0, %s296
      %s298 = sphi 0, %s296
      %s299 = sphi 0, %s298
      %s313 = sphi 0, %s299
      %s319 = sphi 0, %s321
      %s322 = sphi 0, %s319
      %s323 = sphi 0, %s322
      %s339 = sphi 0, %s323
    $region4: #{tpu_custom_call.1} parent=1 // loop_header_branch
      %34 = sbr.rel (%p32) target = $region8
    $region5: #{tpu_custom_call.1} parent=1 // loop_body
      %s36 = ssub.s32 %s31, 1
      %s37 = ssub.s32 %s31, 2
      %s38 = sadd.s32 %s31, 1
      %s39 = ssub.s32 %s31, %s38
      %p40 = scmp.eq.s32.totalorder %s39, 0
      %s42 = sadd.s32 %s41, 1
      %s43 = scalar_select %p40, %s41, %s42
      %p46 = pneg %p40
      %p47 = scmp.eq.s32.totalorder %s31, 1
      %p48 = por %p46, %p47
      %p49 = scmp.ne.s32.totalorder %s41, %s44
      %p50 = scmp.eq.s32.totalorder %s31, 0
      %p51 = por %p49, %p50
      %p52 = scmp.ne.s32.totalorder %s41, %s44
      %p53 = scmp.eq.s32.totalorder %s36, 1
      %p54 = por %p52, %p53
      %p55 = scmp.ne.s32.totalorder %s44, %s45
      %p56 = scmp.eq.s32.totalorder %s36, 0
      %p57 = por %p55, %p56
      %p58 = scmp.ne.s32.totalorder %s44, %s45
      %p59 = scmp.eq.s32.totalorder %s37, 1
      %p60 = por %p58, %p59
      %p62 = scmp.ne.s32.totalorder %s45, %s61
      %p63 = scmp.eq.s32.totalorder %s37, 0
      %p64 = por %p62, %p63
      %s66 = sadd.s32 %s65, 1
      %p69 = scmp.eq.s32.totalorder %s31, 1
      %p70 = scmp.ne.s32.totalorder %s65, %s67
      %p71 = scmp.eq.s32.totalorder %s31, 0
      %p72 = por %p70, %p71
      %p73 = scmp.ne.s32.totalorder %s65, %s67
      %p74 = scmp.eq.s32.totalorder %s36, 1
      %p75 = por %p73, %p74
      %p76 = scmp.ne.s32.totalorder %s67, %s68
      %p77 = scmp.eq.s32.totalorder %s36, 0
      %p78 = por %p76, %p77
      %p79 = scmp.ne.s32.totalorder %s67, %s68
      %p80 = scmp.eq.s32.totalorder %s37, 1
      %p81 = por %p79, %p80
      %p83 = scmp.ne.s32.totalorder %s68, %s82
      %p84 = scmp.eq.s32.totalorder %s37, 0
      %p85 = por %p83, %p84
      %s87 = sadd.s32 %s86, 1
      %p90 = scmp.eq.s32.totalorder %s31, 1
      %p91 = scmp.ne.s32.totalorder %s86, %s88
      %p92 = scmp.eq.s32.totalorder %s31, 0
      %p93 = por %p91, %p92
      %p94 = scmp.ne.s32.totalorder %s86, %s88
      %p95 = scmp.eq.s32.totalorder %s36, 1
      %p96 = por %p94, %p95
      %p97 = scmp.ne.s32.totalorder %s88, %s89
      %p98 = scmp.eq.s32.totalorder %s36, 0
      %p99 = por %p97, %p98
      %p100 = scmp.ne.s32.totalorder %s88, %s89
      %p101 = scmp.eq.s32.totalorder %s37, 1
      %p102 = por %p100, %p101
      %p104 = scmp.ne.s32.totalorder %s89, %s103
      %p105 = scmp.eq.s32.totalorder %s37, 0
      %p106 = por %p104, %p105
      %s108 = sadd.s32 %s107, 1
      %p111 = scmp.eq.s32.totalorder %s31, 1
      %p112 = scmp.ne.s32.totalorder %s107, %s109
      %p113 = scmp.eq.s32.totalorder %s31, 0
      %p114 = por %p112, %p113
      %p115 = scmp.ne.s32.totalorder %s107, %s109
      %p116 = scmp.eq.s32.totalorder %s36, 1
      %p117 = por %p115, %p116
      %p118 = scmp.ne.s32.totalorder %s109, %s110
      %p119 = scmp.eq.s32.totalorder %s36, 0
      %p120 = por %p118, %p119
      %p121 = scmp.ne.s32.totalorder %s109, %s110
      %p122 = scmp.eq.s32.totalorder %s37, 1
      %p123 = por %p121, %p122
      %p125 = scmp.ne.s32.totalorder %s110, %s124
      %p126 = scmp.eq.s32.totalorder %s37, 0
      %p127 = por %p125, %p126
      %s129 = sadd.s32 %s128, 1
      %p132 = scmp.eq.s32.totalorder %s31, 1
      %p133 = scmp.ne.s32.totalorder %s128, %s130
      %p134 = scmp.eq.s32.totalorder %s31, 0
      %p135 = por %p133, %p134
      %p136 = scmp.ne.s32.totalorder %s128, %s130
      %p137 = scmp.eq.s32.totalorder %s36, 1
      %p138 = por %p136, %p137
      %p139 = scmp.ne.s32.totalorder %s130, %s131
      %p140 = scmp.eq.s32.totalorder %s36, 0
      %p141 = por %p139, %p140
      %p142 = scmp.ne.s32.totalorder %s130, %s131
      %p143 = scmp.eq.s32.totalorder %s37, 1
      %p144 = por %p142, %p143
      %p146 = scmp.ne.s32.totalorder %s131, %s145
      %p147 = scmp.eq.s32.totalorder %s37, 0
      %p148 = por %p146, %p147
      %s150 = sadd.s32 %s149, 1
      %p153 = scmp.eq.s32.totalorder %s31, 1
      %p154 = scmp.ne.s32.totalorder %s149, %s151
      %p155 = scmp.eq.s32.totalorder %s31, 0
      %p156 = por %p154, %p155
      %p157 = scmp.ne.s32.totalorder %s149, %s151
      %p158 = scmp.eq.s32.totalorder %s36, 1
      %p159 = por %p157, %p158
      %p160 = scmp.ne.s32.totalorder %s151, %s152
      %p161 = scmp.eq.s32.totalorder %s36, 0
      %p162 = por %p160, %p161
      %p163 = scmp.ne.s32.totalorder %s151, %s152
      %p164 = scmp.eq.s32.totalorder %s37, 1
      %p165 = por %p163, %p164
      %p167 = scmp.ne.s32.totalorder %s152, %s166
      %p168 = scmp.eq.s32.totalorder %s37, 0
      %p169 = por %p167, %p168
      %s171 = sadd.s32 %s170, 1
      %p174 = scmp.eq.s32.totalorder %s31, 1
      %p175 = scmp.ne.s32.totalorder %s170, %s172
      %p176 = scmp.eq.s32.totalorder %s31, 0
      %p177 = por %p175, %p176
      %p178 = scmp.ne.s32.totalorder %s170, %s172
      %p179 = scmp.eq.s32.totalorder %s36, 1
      %p180 = por %p178, %p179
      %p181 = scmp.ne.s32.totalorder %s172, %s173
      %p182 = scmp.eq.s32.totalorder %s36, 0
      %p183 = por %p181, %p182
      %p184 = scmp.ne.s32.totalorder %s172, %s173
      %p185 = scmp.eq.s32.totalorder %s37, 1
      %p186 = por %p184, %p185
      %p188 = scmp.ne.s32.totalorder %s173, %s187
      %p189 = scmp.eq.s32.totalorder %s37, 0
      %p190 = por %p188, %p189
      %s192 = sadd.s32 %s191, 1
      %p195 = scmp.eq.s32.totalorder %s31, 1
      %p196 = scmp.ne.s32.totalorder %s191, %s193
      %p197 = scmp.eq.s32.totalorder %s31, 0
      %p198 = por %p196, %p197
      %p199 = scmp.ne.s32.totalorder %s191, %s193
      %p200 = scmp.eq.s32.totalorder %s36, 1
      %p201 = por %p199, %p200
      %p202 = scmp.ne.s32.totalorder %s193, %s194
      %p203 = scmp.eq.s32.totalorder %s36, 0
      %p204 = por %p202, %p203
      %p205 = scmp.ne.s32.totalorder %s193, %s194
      %p206 = scmp.eq.s32.totalorder %s37, 1
      %p207 = por %p205, %p206
      %p209 = scmp.ne.s32.totalorder %s194, %s208
      %p210 = scmp.eq.s32.totalorder %s37, 0
      %p211 = por %p209, %p210
      %s213 = sadd.s32 %s212, 1
      %p216 = scmp.eq.s32.totalorder %s31, 1
      %p217 = scmp.ne.s32.totalorder %s212, %s214
      %p218 = scmp.eq.s32.totalorder %s31, 0
      %p219 = por %p217, %p218
      %p220 = scmp.ne.s32.totalorder %s212, %s214
      %p221 = scmp.eq.s32.totalorder %s36, 1
      %p222 = por %p220, %p221
      %p223 = scmp.ne.s32.totalorder %s214, %s215
      %p224 = scmp.eq.s32.totalorder %s36, 0
      %p225 = por %p223, %p224
      %p226 = scmp.ne.s32.totalorder %s214, %s215
      %p227 = scmp.eq.s32.totalorder %s37, 1
      %p228 = por %p226, %p227
      %p230 = scmp.ne.s32.totalorder %s215, %s229
      %p231 = scmp.eq.s32.totalorder %s37, 0
      %p232 = por %p230, %p231
      %s234 = sadd.s32 %s233, 1
      %p237 = scmp.eq.s32.totalorder %s31, 1
      %p238 = scmp.ne.s32.totalorder %s233, %s235
      %p239 = scmp.eq.s32.totalorder %s31, 0
      %p240 = por %p238, %p239
      %p241 = scmp.ne.s32.totalorder %s233, %s235
      %p242 = scmp.eq.s32.totalorder %s36, 1
      %p243 = por %p241, %p242
      %p244 = scmp.ne.s32.totalorder %s235, %s236
      %p245 = scmp.eq.s32.totalorder %s36, 0
      %p246 = por %p244, %p245
      %p247 = scmp.ne.s32.totalorder %s235, %s236
      %p248 = scmp.eq.s32.totalorder %s37, 1
      %p249 = por %p247, %p248
      %p251 = scmp.ne.s32.totalorder %s236, %s250
      %p252 = scmp.eq.s32.totalorder %s37, 0
      %p253 = por %p251, %p252
      %s255 = sadd.s32 %s254, 1
      %p258 = scmp.eq.s32.totalorder %s31, 1
      %p259 = scmp.ne.s32.totalorder %s254, %s256
      %p260 = scmp.eq.s32.totalorder %s31, 0
      %p261 = por %p259, %p260
      %p262 = scmp.ne.s32.totalorder %s254, %s256
      %p263 = scmp.eq.s32.totalorder %s36, 1
      %p264 = por %p262, %p263
      %p265 = scmp.ne.s32.totalorder %s256, %s257
      %p266 = scmp.eq.s32.totalorder %s36, 0
      %p267 = por %p265, %p266
      %p268 = scmp.ne.s32.totalorder %s256, %s257
      %p269 = scmp.eq.s32.totalorder %s37, 1
      %p270 = por %p268, %p269
      %p272 = scmp.ne.s32.totalorder %s257, %s271
      %p273 = scmp.eq.s32.totalorder %s37, 0
      %p274 = por %p272, %p273
      %s276 = sadd.s32 %s275, 1
      %p279 = scmp.eq.s32.totalorder %s31, 1
      %p280 = scmp.ne.s32.totalorder %s275, %s277
      %p281 = scmp.eq.s32.totalorder %s31, 0
      %p282 = por %p280, %p281
      %p283 = scmp.ne.s32.totalorder %s275, %s277
      %p284 = scmp.eq.s32.totalorder %s36, 1
      %p285 = por %p283, %p284
      %p286 = scmp.ne.s32.totalorder %s277, %s278
      %p287 = scmp.eq.s32.totalorder %s36, 0
      %p288 = por %p286, %p287
      %p289 = scmp.ne.s32.totalorder %s277, %s278
      %p290 = scmp.eq.s32.totalorder %s37, 1
      %p291 = por %p289, %p290
      %p293 = scmp.ne.s32.totalorder %s278, %s292
      %p294 = scmp.eq.s32.totalorder %s37, 0
      %p295 = por %p293, %p294
      %s297 = sadd.s32 %s296, 1
      %p300 = scmp.eq.s32.totalorder %s31, 1
      %p301 = scmp.ne.s32.totalorder %s296, %s298
      %p302 = scmp.eq.s32.totalorder %s31, 0
      %p303 = por %p301, %p302
      %p304 = scmp.ne.s32.totalorder %s296, %s298
      %p305 = scmp.eq.s32.totalorder %s36, 1
      %p306 = por %p304, %p305
      %p307 = scmp.ne.s32.totalorder %s298, %s299
      %p308 = scmp.eq.s32.totalorder %s36, 0
      %p309 = por %p307, %p308
      %p310 = scmp.ne.s32.totalorder %s298, %s299
      %p311 = scmp.eq.s32.totalorder %s37, 1
      %p312 = por %p310, %p311
      %p314 = scmp.ne.s32.totalorder %s299, %s313
      %p315 = scmp.eq.s32.totalorder %s37, 0
      %p316 = por %p314, %p315
      %s317 = ssub.s32 %s31, %s38
      %p318 = scmp.eq.s32.totalorder %s317, 0
      %s320 = sadd.s32 %s319, 1
      %s321 = scalar_select %p318, %s319, %s320
      %p324 = pneg %p318
      %p325 = scmp.eq.s32.totalorder %s31, 1
      %p326 = por %p324, %p325
      %p327 = scmp.ne.s32.totalorder %s319, %s322
      %p328 = scmp.eq.s32.totalorder %s31, 0
      %p329 = por %p327, %p328
      %p330 = scmp.ne.s32.totalorder %s319, %s322
      %p331 = scmp.eq.s32.totalorder %s36, 1
      %p332 = por %p330, %p331
      %p333 = scmp.ne.s32.totalorder %s322, %s323
      %p334 = scmp.eq.s32.totalorder %s36, 0
      %p335 = por %p333, %p334
      %p336 = scmp.ne.s32.totalorder %s322, %s323
      %p337 = scmp.eq.s32.totalorder %s37, 1
      %p338 = por %p336, %p337
      %p340 = scmp.ne.s32.totalorder %s323, %s339
      %p341 = scmp.eq.s32.totalorder %s37, 0
      %p342 = por %p340, %p341
      %p343 = scmp.le.s32.totalorder 1, %s31
      %p344 = scmp.lt.s32.totalorder %s31, 3
      %p345 = pnand %p343, %p344
      %p346 = pneg %p345
      // Predicated region
      $region9: #{tpu_custom_call.1} parent=5 // pred_check
        _
      $region10: #{tpu_custom_call.1} parent=5 // pred_check_branch
        %348 = sbr.rel (%p345) target = $region12
      $region11: #{tpu_custom_call.1} parent=5 // pred_region
        %s349 = ssub.s32 %s31, 1
        // Predicated region
        $region13: #{tpu_custom_call.1} parent=11 // pred_check
          %p350 = pneg %p78
        $region14: #{tpu_custom_call.1} parent=11 // pred_check_branch
          %352 = sbr.rel (%p350) target = $region16
        $region15: #{tpu_custom_call.1} parent=11 // pred_region
          %s354 = ssub.s32 16, 16
          %355 = vsyncadd [#allocation8], %s354
          %s357 = sshll.u32 [#allocation7], 4
          %s358 = int_to_ptr.vmem [resolvable:$true] %s357
          %360 = dma.hbm_to_vmem [thread:$0]  %s1, 16, %s358, [#allocation8]
        $region16: #{tpu_custom_call.1} parent=11 // pred_fallthru
          _
        // Predicated region
        $region17: #{tpu_custom_call.1} parent=11 // pred_check
          %p361 = pneg %p99
        $region18: #{tpu_custom_call.1} parent=11 // pred_check_branch
          %363 = sbr.rel (%p361) target = $region20
        $region19: #{tpu_custom_call.1} parent=11 // pred_region
          %s365 = ssub.s32 16, 16
          %366 = vsyncadd [#allocation8], %s365
          %s368 = sshll.u32 [#allocation9], 4
          %s369 = int_to_ptr.vmem [resolvable:$true] %s368
          %371 = dma.hbm_to_vmem [thread:$0]  %s2, 16, %s369, [#allocation8]
        $region20: #{tpu_custom_call.1} parent=11 // pred_fallthru
          _
        // Predicated region
        $region21: #{tpu_custom_call.1} parent=11 // pred_check
          %p372 = pneg %p120
        $region22: #{tpu_custom_call.1} parent=11 // pred_check_branch
          %374 = sbr.rel (%p372) target = $region24
        $region23: #{tpu_custom_call.1} parent=11 // pred_region
          %s376 = ssub.s32 512, 512
          %377 = vsyncadd [#allocation11], %s376
          %s378 = sshll.u32 [#allocation10], 4
          %s379 = int_to_ptr.vmem [resolvable:$true] %s378
          %384 = dma.hbm_to_vmem [thread:$0]  %s3, 512, %s379, [#allocation11], 128, 128, 8
        $region24: #{tpu_custom_call.1} parent=11 // pred_fallthru
          _
        // Predicated region
        $region25: #{tpu_custom_call.1} parent=11 // pred_check
          %p385 = pneg %p141
        $region26: #{tpu_custom_call.1} parent=11 // pred_check_branch
          %387 = sbr.rel (%p385) target = $region28
        $region27: #{tpu_custom_call.1} parent=11 // pred_region
          %s389 = ssub.s32 16, 16
          %390 = vsyncadd [#allocation11], %s389
          %s392 = sshll.u32 [#allocation12], 4
          %s393 = int_to_ptr.vmem [resolvable:$true] %s392
          %395 = dma.hbm_to_vmem [thread:$0]  %s4, 16, %s393, [#allocation11]
        $region28: #{tpu_custom_call.1} parent=11 // pred_fallthru
          _
        // Predicated region
        $region29: #{tpu_custom_call.1} parent=11 // pred_check
          %p396 = pneg %p162
        $region30: #{tpu_custom_call.1} parent=11 // pred_check_branch
          %398 = sbr.rel (%p396) target = $region32
        $region31: #{tpu_custom_call.1} parent=11 // pred_region
          %s400 = ssub.s32 512, 512
          %401 = vsyncadd [#allocation14], %s400
          %s402 = sshll.u32 [#allocation13], 4
          %s403 = int_to_ptr.vmem [resolvable:$true] %s402
          %408 = dma.hbm_to_vmem [thread:$0]  %s5, 512, %s403, [#allocation14], 128, 128, 8
        $region32: #{tpu_custom_call.1} parent=11 // pred_fallthru
          _
        // Predicated region
        $region33: #{tpu_custom_call.1} parent=11 // pred_check
          %p409 = pneg %p183
        $region34: #{tpu_custom_call.1} parent=11 // pred_check_branch
          %411 = sbr.rel (%p409) target = $region36
        $region35: #{tpu_custom_call.1} parent=11 // pred_region
          %s413 = ssub.s32 16, 16
          %414 = vsyncadd [#allocation14], %s413
          %s416 = sshll.u32 [#allocation15], 4
          %s417 = int_to_ptr.vmem [resolvable:$true] %s416
          %419 = dma.hbm_to_vmem [thread:$0]  %s6, 16, %s417, [#allocation14]
        $region36: #{tpu_custom_call.1} parent=11 // pred_fallthru
          _
        // Predicated region
        $region37: #{tpu_custom_call.1} parent=11 // pred_check
          %p420 = pneg %p204
        $region38: #{tpu_custom_call.1} parent=11 // pred_check_branch
          %422 = sbr.rel (%p420) target = $region40
        $region39: #{tpu_custom_call.1} parent=11 // pred_region
          %s424 = ssub.s32 16, 16
          %425 = vsyncadd [#allocation17], %s424
          %s427 = sshll.u32 [#allocation16], 4
          %s428 = int_to_ptr.vmem [resolvable:$true] %s427
          %430 = dma.hbm_to_vmem [thread:$0]  %s7, 16, %s428, [#allocation17]
        $region40: #{tpu_custom_call.1} parent=11 // pred_fallthru
          _
        // Predicated region
        $region41: #{tpu_custom_call.1} parent=11 // pred_check
          %p431 = pneg %p225
        $region42: #{tpu_custom_call.1} parent=11 // pred_check_branch
          %433 = sbr.rel (%p431) target = $region44
        $region43: #{tpu_custom_call.1} parent=11 // pred_region
          %s435 = ssub.s32 16, 16
          %436 = vsyncadd [#allocation17], %s435
          %s438 = sshll.u32 [#allocation18], 4
          %s439 = int_to_ptr.vmem [resolvable:$true] %s438
          %441 = dma.hbm_to_vmem [thread:$0]  %s8, 16, %s439, [#allocation17]
        $region44: #{tpu_custom_call.1} parent=11 // pred_fallthru
          _
        // Predicated region
        $region45: #{tpu_custom_call.1} parent=11 // pred_check
          %p442 = pneg %p246
        $region46: #{tpu_custom_call.1} parent=11 // pred_check_branch
          %444 = sbr.rel (%p442) target = $region48
        $region47: #{tpu_custom_call.1} parent=11 // pred_region
          %s446 = ssub.s32 512, 512
          %447 = vsyncadd [#allocation20], %s446
          %s448 = sshll.u32 [#allocation19], 4
          %s449 = int_to_ptr.vmem [resolvable:$true] %s448
          %454 = dma.hbm_to_vmem [thread:$0]  %s9, 512, %s449, [#allocation20], 128, 128, 8
        $region48: #{tpu_custom_call.1} parent=11 // pred_fallthru
          _
        // Predicated region
        $region49: #{tpu_custom_call.1} parent=11 // pred_check
          %p455 = pneg %p267
        $region50: #{tpu_custom_call.1} parent=11 // pred_check_branch
          %457 = sbr.rel (%p455) target = $region52
        $region51: #{tpu_custom_call.1} parent=11 // pred_region
          %s459 = ssub.s32 16, 16
          %460 = vsyncadd [#allocation20], %s459
          %s462 = sshll.u32 [#allocation21], 4
          %s463 = int_to_ptr.vmem [resolvable:$true] %s462
          %465 = dma.hbm_to_vmem [thread:$0]  %s10, 16, %s463, [#allocation20]
        $region52: #{tpu_custom_call.1} parent=11 // pred_fallthru
          _
        // Predicated region
        $region53: #{tpu_custom_call.1} parent=11 // pred_check
          %p466 = pneg %p288
        $region54: #{tpu_custom_call.1} parent=11 // pred_check_branch
          %468 = sbr.rel (%p466) target = $region56
        $region55: #{tpu_custom_call.1} parent=11 // pred_region
          %s470 = ssub.s32 1024, 1024
          %471 = vsyncadd [#allocation23], %s470
          %s472 = sshll.u32 [#allocation22], 4
          %s473 = int_to_ptr.vmem [resolvable:$true] %s472
          %478 = dma.hbm_to_vmem [thread:$0]  %s11, 1024, %s473, [#allocation23], 128, 128, 8
        $region56: #{tpu_custom_call.1} parent=11 // pred_fallthru
          _
        // Predicated region
        $region57: #{tpu_custom_call.1} parent=11 // pred_check
          %p479 = pneg %p309
        $region58: #{tpu_custom_call.1} parent=11 // pred_check_branch
          %481 = sbr.rel (%p479) target = $region60
        $region59: #{tpu_custom_call.1} parent=11 // pred_region
          %s483 = ssub.s32 16, 16
          %484 = vsyncadd [#allocation23], %s483
          %s486 = sshll.u32 [#allocation24], 4
          %s487 = int_to_ptr.vmem [resolvable:$true] %s486
          %489 = dma.hbm_to_vmem [thread:$0]  %s12, 16, %s487, [#allocation23]
        $region60: #{tpu_custom_call.1} parent=11 // pred_fallthru
          _
      $region12: #{tpu_custom_call.1} parent=5 // pred_fallthru
        _
      %p490 = scmp.lt.s32.totalorder %s31, 2
      // Predicated region
      $region61: #{tpu_custom_call.1} parent=5 // pred_check
        %p491 = pneg %p490
      $region62: #{tpu_custom_call.1} parent=5 // pred_check_branch
        %493 = sbr.rel (%p491) target = $region64
      $region63: #{tpu_custom_call.1} parent=5 // pred_region
        // Predicated region
        $region65: #{tpu_custom_call.1} parent=63 // pred_check
          %p494 = pneg %p51
        $region66: #{tpu_custom_call.1} parent=63 // pred_check_branch
          %496 = sbr.rel (%p494) target = $region68
        $region67: #{tpu_custom_call.1} parent=63 // pred_region
          %s497 = sand.u32 %s41, 1
          %s498 = scalar_lea.sflag [#allocation5], %s497
          %s499 = sand.u32 %s41, 1
          %s500 = smul.addr %s499, 8
          %s501 = scalar_lea.vmem [#allocation4], %s500
          %s503 = ssub.s32 128, 128
          %504 = vsyncadd %s498, %s503
          %s505 = smul.addr %s31, 128
          %s506 = scalar_lea.hbm %s0, %s505
          %s508 = sshll.u32 %s501, 4
          %s509 = int_to_ptr.vmem [resolvable:$true] %s508
          %511 = dma.hbm_to_vmem [thread:$0]  %s506, 128, %s509, %s498
        $region68: #{tpu_custom_call.1} parent=63 // pred_fallthru
          _
      $region64: #{tpu_custom_call.1} parent=5 // pred_fallthru
        _
      %p512 = scmp.le.s32.totalorder 1, %s31
      %p513 = scmp.lt.s32.totalorder %s31, 3
      %p514 = pnand %p512, %p513
      %p515 = pneg %p514
      // Predicated region
      $region69: #{tpu_custom_call.1} parent=5 // pred_check
        _
      $region70: #{tpu_custom_call.1} parent=5 // pred_check_branch
        %517 = sbr.rel (%p514) target = $region72
      $region71: #{tpu_custom_call.1} parent=5 // pred_region
        %s518 = ssub.s32 %s31, 1
        %s519 = sand.u32 %s44, 1
        %s520 = scalar_lea.sflag [#allocation5], %s519
        %s521 = sand.u32 %s44, 1
        %s522 = smul.addr %s521, 8
        %s523 = scalar_lea.vmem [#allocation4], %s522
        // Predicated region
        $region73: #{tpu_custom_call.1} parent=71 // pred_check
          %p524 = pneg %p57
        $region74: #{tpu_custom_call.1} parent=71 // pred_check_branch
          %526 = sbr.rel (%p524) target = $region76
        $region75: #{tpu_custom_call.1} parent=71 // pred_region
          %527 = dma.done %s520, 128
        $region76: #{tpu_custom_call.1} parent=71 // pred_fallthru
          _
        // Predicated region
        $region77: #{tpu_custom_call.1} parent=71 // pred_check
          %p528 = pneg %p78
        $region78: #{tpu_custom_call.1} parent=71 // pred_check_branch
          %530 = sbr.rel (%p528) target = $region80
        $region79: #{tpu_custom_call.1} parent=71 // pred_region
          %531 = dma.done [#allocation8], 16
        $region80: #{tpu_custom_call.1} parent=71 // pred_fallthru
          _
        // Predicated region
        $region81: #{tpu_custom_call.1} parent=71 // pred_check
          %p532 = pneg %p99
        $region82: #{tpu_custom_call.1} parent=71 // pred_check_branch
          %534 = sbr.rel (%p532) target = $region84
        $region83: #{tpu_custom_call.1} parent=71 // pred_region
          %535 = dma.done [#allocation8], 16
        $region84: #{tpu_custom_call.1} parent=71 // pred_fallthru
          _
        // Predicated region
        $region85: #{tpu_custom_call.1} parent=71 // pred_check
          %p536 = pneg %p120
        $region86: #{tpu_custom_call.1} parent=71 // pred_check_branch
          %538 = sbr.rel (%p536) target = $region88
        $region87: #{tpu_custom_call.1} parent=71 // pred_region
          %539 = dma.done [#allocation11], 512
        $region88: #{tpu_custom_call.1} parent=71 // pred_fallthru
          _
        // Predicated region
        $region89: #{tpu_custom_call.1} parent=71 // pred_check
          %p540 = pneg %p141
        $region90: #{tpu_custom_call.1} parent=71 // pred_check_branch
          %542 = sbr.rel (%p540) target = $region92
        $region91: #{tpu_custom_call.1} parent=71 // pred_region
          %543 = dma.done [#allocation11], 16
        $region92: #{tpu_custom_call.1} parent=71 // pred_fallthru
          _
        // Predicated region
        $region93: #{tpu_custom_call.1} parent=71 // pred_check
          %p544 = pneg %p162
        $region94: #{tpu_custom_call.1} parent=71 // pred_check_branch
          %546 = sbr.rel (%p544) target = $region96
        $region95: #{tpu_custom_call.1} parent=71 // pred_region
          %547 = dma.done [#allocation14], 512
        $region96: #{tpu_custom_call.1} parent=71 // pred_fallthru
          _
        // Predicated region
        $region97: #{tpu_custom_call.1} parent=71 // pred_check
          %p548 = pneg %p183
        $region98: #{tpu_custom_call.1} parent=71 // pred_check_branch
          %550 = sbr.rel (%p548) target = $region100
        $region99: #{tpu_custom_call.1} parent=71 // pred_region
          %551 = dma.done [#allocation14], 16
        $region100: #{tpu_custom_call.1} parent=71 // pred_fallthru
          _
        // Predicated region
        $region101: #{tpu_custom_call.1} parent=71 // pred_check
          %p552 = pneg %p204
        $region102: #{tpu_custom_call.1} parent=71 // pred_check_branch
          %554 = sbr.rel (%p552) target = $region104
        $region103: #{tpu_custom_call.1} parent=71 // pred_region
          %555 = dma.done [#allocation17], 16
        $region104: #{tpu_custom_call.1} parent=71 // pred_fallthru
          _
        // Predicated region
        $region105: #{tpu_custom_call.1} parent=71 // pred_check
          %p556 = pneg %p225
        $region106: #{tpu_custom_call.1} parent=71 // pred_check_branch
          %558 = sbr.rel (%p556) target = $region108
        $region107: #{tpu_custom_call.1} parent=71 // pred_region
          %559 = dma.done [#allocation17], 16
        $region108: #{tpu_custom_call.1} parent=71 // pred_fallthru
          _
        // Predicated region
        $region109: #{tpu_custom_call.1} parent=71 // pred_check
          %p560 = pneg %p246
        $region110: #{tpu_custom_call.1} parent=71 // pred_check_branch
          %562 = sbr.rel (%p560) target = $region112
        $region111: #{tpu_custom_call.1} parent=71 // pred_region
          %563 = dma.done [#allocation20], 512
        $region112: #{tpu_custom_call.1} parent=71 // pred_fallthru
          _
        // Predicated region
        $region113: #{tpu_custom_call.1} parent=71 // pred_check
          %p564 = pneg %p267
        $region114: #{tpu_custom_call.1} parent=71 // pred_check_branch
          %566 = sbr.rel (%p564) target = $region116
        $region115: #{tpu_custom_call.1} parent=71 // pred_region
          %567 = dma.done [#allocation20], 16
        $region116: #{tpu_custom_call.1} parent=71 // pred_fallthru
          _
        // Predicated region
        $region117: #{tpu_custom_call.1} parent=71 // pred_check
          %p568 = pneg %p288
        $region118: #{tpu_custom_call.1} parent=71 // pred_check_branch
          %570 = sbr.rel (%p568) target = $region120
        $region119: #{tpu_custom_call.1} parent=71 // pred_region
          %571 = dma.done [#allocation23], 1024
        $region120: #{tpu_custom_call.1} parent=71 // pred_fallthru
          _
        // Predicated region
        $region121: #{tpu_custom_call.1} parent=71 // pred_check
          %p572 = pneg %p309
        $region122: #{tpu_custom_call.1} parent=71 // pred_check_branch
          %574 = sbr.rel (%p572) target = $region124
        $region123: #{tpu_custom_call.1} parent=71 // pred_region
          %575 = dma.done [#allocation23], 16
        $region124: #{tpu_custom_call.1} parent=71 // pred_fallthru
          _
        %s576 = sand.u32 %s44, 1
        %s577 = scalar_lea.sflag [#allocation5], %s576
        %s578 = sand.u32 %s44, 1
        %s579 = smul.addr %s578, 8
        %s580 = scalar_lea.vmem [#allocation4], %s579
        %p581 = pneg %p57
        %p582 = pneg %p54
        %p583 = pneg %p78
        %p584 = pneg %p75
        %p585 = pneg %p99
        %p586 = pneg %p96
        %p587 = pneg %p120
        %p588 = pneg %p117
        %p589 = pneg %p141
        %p590 = pneg %p138
        %p591 = pneg %p162
        %p592 = pneg %p159
        %p593 = pneg %p183
        %p594 = pneg %p180
        %p595 = pneg %p204
        %p596 = pneg %p201
        %p597 = pneg %p225
        %p598 = pneg %p222
        %p599 = pneg %p246
        %p600 = pneg %p243
        %p601 = pneg %p267
        %p602 = pneg %p264
        %p603 = pneg %p288
        %p604 = pneg %p285
        %p605 = pneg %p309
        %p606 = pneg %p306
        %p607 = pneg %p335
        %p608 = pneg %p332
        %s609 = sand.u32 %s322, 1
        %s610 = scalar_lea.sflag [#allocation6], %s609
        %s611 = sand.u32 %s322, 1
        %s612 = smul.addr %s611, 8
        %s613 = scalar_lea.vmem [#allocation25], %s612
        %v614 = vld [vmem:[%s523] sm:$0xff]
        %v615 = vld [vmem:[#allocation7] sm:$0x1]
        %v616 = vld [vmem:[#allocation9] sm:$0x1]
        %vm617 = vcmask 261120
        %v618 = vsel %vm617, %v614, 0.0
        %619 = vadd.xlane.f32.xlu0 %v618
        %v620 = vpop.xlane.xlu0 %619
        %v621 = vrcp.pop 32.0
        %v622 = vmul.f32 %v620, %v621
        %v623 = vsub.f32 %v614, %v622
        %v624 = vmul.f32 %v623, %v623
        %v625 = vsel %vm617, %v624, 0.0
        %626 = vadd.xlane.f32.xlu0 %v625
        %v627 = vpop.xlane.xlu0 %626
        %v628 = vmul.f32 %v627, %v621
        %v629 = vadd.f32 %v628, 1e-05
        %v630 = vrsqrt.pop %v629
        %v631 = vmul.f32 %v623, %v630
        %v633 = vlaneseq
        %v634 = vshrl.u32 %v633, 7
        %v635 = vsub.s32 0, %v634
        %v636 = vrot.slane %v615, %v635
        %v638 = vmul.f32 %v631, %v636
        %v640 = vlaneseq
        %v641 = vshrl.u32 %v640, 7
        %v642 = vsub.s32 0, %v641
        %v643 = vrot.slane %v616, %v642
        %v645 = vadd.f32 %v638, %v643
        %v646 = vld [vmem:[#allocation10] sm:$0xff]
        %v647 = vld [vmem:[#allocation10 + $0x8] sm:$0xff]
        %v648 = vld [vmem:[#allocation10 + $0x10] sm:$0xff]
        %v649 = vld [vmem:[#allocation10 + $0x18] sm:$0xff]
        %v650 = vld [vmem:[#allocation12] sm:$0x1]
        %v652 = vlaneseq
        %v653 = vshrl.u32 %v652, 7
        %v654 = vsub.s32 0, %v653
        %v655 = vrot.slane %v650, %v654
        %v658 = vsel %vm617, %v645, 0
        %660 = vmatprep.subr.mxu0 0.0
        %661 = vmatpush1.msra.mxu0 %v646
        %662 = vmatprep.subr.mxu0 0.0
        %663 = vmatpush1.msra.mxu0 %v647
        %664 = vmatprep.subr.mxu0 0.0
        %665 = vmatpush1.msra.mxu0 %v648
        %666 = vmatprep.subr.mxu0 0.0
        %667 = vmatpush1.msra.mxu0 %v649
        %668 = vmatprep.subr.mxu0 0.0
        %669 = vmatpush1.msra.mxu0 0.0
        %670 = vmatprep.subr.mxu0 0.0
        %671 = vmatpush1.msra.mxu0 0.0
        %672 = vmatprep.subr.mxu0 0.0
        %673 = vmatpush1.msra.mxu0 0.0
        %674 = vmatprep.subr.mxu0 0.0
        %675 = vmatpush1.msra.mxu0 0.0
        %676 = vmatprep.subr.mxu0 0.0
        %677 = vmatpush1.msra.mxu0 0.0
        %678 = vmatprep.subr.mxu0 0.0
        %679 = vmatpush1.msra.mxu0 0.0
        %680 = vmatprep.subr.mxu0 0.0
        %681 = vmatpush1.msra.mxu0 0.0
        %682 = vmatprep.subr.mxu0 0.0
        %683 = vmatpush1.msra.mxu0 0.0
        %684 = vmatprep.subr.mxu0 0.0
        %685 = vmatpush1.msra.mxu0 0.0
        %686 = vmatprep.subr.mxu0 0.0
        %687 = vmatpush1.msra.mxu0 0.0
        %688 = vmatprep.subr.mxu0 0.0
        %689 = vmatpush1.msra.mxu0 0.0
        %690 = vmatprep.subr.mxu0 0.0
        %691 = vmatpush1.msra.mxu0 0.0
        %692 = vmatprep.subr.mxu0 0.0
        %693 = vmatpush1.msra.mxu0 0.0
        %694 = vmatprep.subr.mxu0 0.0
        %695 = vmatpush1.msra.mxu0 0.0
        %696 = vmatprep.subr.mxu0 0.0
        %697 = vmatpush1.msra.mxu0 0.0
        %698 = vmatprep.subr.mxu0 0.0
        %699 = vmatpush1.msra.mxu0 0.0
        %700 = vmatprep.subr.mxu0 0.0
        %701 = vmatpush1.msra.mxu0 0.0
        %702 = vmatprep.subr.mxu0 0.0
        %703 = vmatpush1.msra.mxu0 0.0
        %704 = vmatprep.subr.mxu0 0.0
        %705 = vmatpush1.msra.mxu0 0.0
        %706 = vmatprep.subr.mxu0 0.0
        %707 = vmatpush1.msra.mxu0 0.0
        %708 = vmatprep.subr.mxu0 0.0
        %709 = vmatpush1.msra.mxu0 0.0
        %710 = vmatprep.subr.mxu0 0.0
        %711 = vmatpush1.msra.mxu0 0.0
        %712 = vmatprep.subr.mxu0 0.0
        %713 = vmatpush1.msra.mxu0 0.0
        %714 = vmatprep.subr.mxu0 0.0
        %715 = vmatpush1.msra.mxu0 0.0
        %716 = vmatprep.subr.mxu0 0.0
        %717 = vmatpush1.msra.mxu0 0.0
        %718 = vmatprep.subr.mxu0 0.0
        %719 = vmatpush1.msra.mxu0 0.0
        %720 = vmatprep.subr.mxu0 0.0
        %721 = vmatpush1.msra.mxu0 0.0
        %722 = vmatprep.subr.mxu0 0.0
        %723 = vmatpush1.msra.mxu0 0.0
        %724 = vmatprep.mubr.f32.mxu0 0.0
        %725 = vmatmul.mubr.f32.gmra.mrb[0].mxu0 %v658
        %v726 = vpop.f32.mrb[0].mxu0
        %v727 = vadd.f32 %v655, %v726
        %v728 = vpop.f32.mrb[0].mxu0
        %729 = vdwg.mxu0
        %vm730 = vcmask 785408
        %731 = vst.msk [vmem:[#allocation2] sm:$0xff] %vm730, %v727
        %v732 = vld [vmem:[#allocation2] sm:$0xff]
        %734 = vrot.lane.b32.xlu0 %v732, 96
        %v735 = vpop.permute.xlu0 %734
        %vm736 = vcmask 31744
        %v737 = vsel %vm736, %v732, 0
        %v739 = vsel %vm736, %v735, 0
        %741 = vmatprep.subr.mxu0 0.0
        %742 = vmatpush1.xpose.msra.mxu0 %v739
        %743 = vmatprep.subr.mxu0 0.0
        %744 = vmatpush1.xpose.msra.mxu0 0.0
        %745 = vmatprep.subr.mxu0 0.0
        %746 = vmatpush1.xpose.msra.mxu0 0.0
        %747 = vmatprep.subr.mxu0 0.0
        %748 = vmatpush1.xpose.msra.mxu0 0.0
        %749 = vmatprep.subr.mxu0 0.0
        %750 = vmatpush1.xpose.msra.mxu0 0.0
        %751 = vmatprep.subr.mxu0 0.0
        %752 = vmatpush1.xpose.msra.mxu0 0.0
        %753 = vmatprep.subr.mxu0 0.0
        %754 = vmatpush1.xpose.msra.mxu0 0.0
        %755 = vmatprep.subr.mxu0 0.0
        %756 = vmatpush1.xpose.msra.mxu0 0.0
        %757 = vmatprep.subr.mxu0 0.0
        %758 = vmatpush1.xpose.msra.mxu0 0.0
        %759 = vmatprep.subr.mxu0 0.0
        %760 = vmatpush1.xpose.msra.mxu0 0.0
        %761 = vmatprep.subr.mxu0 0.0
        %762 = vmatpush1.xpose.msra.mxu0 0.0
        %763 = vmatprep.subr.mxu0 0.0
        %764 = vmatpush1.xpose.msra.mxu0 0.0
        %765 = vmatprep.subr.mxu0 0.0
        %766 = vmatpush1.xpose.msra.mxu0 0.0
        %767 = vmatprep.subr.mxu0 0.0
        %768 = vmatpush1.xpose.msra.mxu0 0.0
        %769 = vmatprep.subr.mxu0 0.0
        %770 = vmatpush1.xpose.msra.mxu0 0.0
        %771 = vmatprep.subr.mxu0 0.0
        %772 = vmatpush1.xpose.msra.mxu0 0.0
        %773 = vmatprep.subr.mxu0 0.0
        %774 = vmatpush1.xpose.msra.mxu0 0.0
        %775 = vmatprep.subr.mxu0 0.0
        %776 = vmatpush1.xpose.msra.mxu0 0.0
        %777 = vmatprep.subr.mxu0 0.0
        %778 = vmatpush1.xpose.msra.mxu0 0.0
        %779 = vmatprep.subr.mxu0 0.0
        %780 = vmatpush1.xpose.msra.mxu0 0.0
        %781 = vmatprep.subr.mxu0 0.0
        %782 = vmatpush1.xpose.msra.mxu0 0.0
        %783 = vmatprep.subr.mxu0 0.0
        %784 = vmatpush1.xpose.msra.mxu0 0.0
        %785 = vmatprep.subr.mxu0 0.0
        %786 = vmatpush1.xpose.msra.mxu0 0.0
        %787 = vmatprep.subr.mxu0 0.0
        %788 = vmatpush1.xpose.msra.mxu0 0.0
        %789 = vmatprep.subr.mxu0 0.0
        %790 = vmatpush1.xpose.msra.mxu0 0.0
        %791 = vmatprep.subr.mxu0 0.0
        %792 = vmatpush1.xpose.msra.mxu0 0.0
        %793 = vmatprep.subr.mxu0 0.0
        %794 = vmatpush1.xpose.msra.mxu0 0.0
        %795 = vmatprep.subr.mxu0 0.0
        %796 = vmatpush1.xpose.msra.mxu0 0.0
        %797 = vmatprep.subr.mxu0 0.0
        %798 = vmatpush1.xpose.msra.mxu0 0.0
        %799 = vmatprep.subr.mxu0 0.0
        %800 = vmatpush1.xpose.msra.mxu0 0.0
        %801 = vmatprep.subr.mxu0 0.0
        %802 = vmatpush1.xpose.msra.mxu0 0.0
        %803 = vmatprep.subr.mxu0 0.0
        %804 = vmatpush1.xpose.msra.mxu0 0.0
        %805 = vmatprep.mubr.f32.mxu0 0.0
        %806 = vmatmul.mubr.f32.gmra.mrb[0].mxu0 %v737
        %v807 = vpop.f32.mrb[0].mxu0
        %v808 = vadd.f32 0.0, %v807
        %v809 = vpop.f32.mrb[0].mxu0
        %810 = vdwg.mxu0
        %vm811 = vcmask 64512
        %v812 = vsel %vm811, %v808, -inf
        %813 = vmax.xlane.f32.xlu0 %v812
        %v814 = vpop.xlane.xlu0 %813
        %v815 = vsub.f32 %v808, %v814
        %v816 = vmul.f32 %v815, 1.442695
        %v817 = vpow.pop %v816
        %v818 = vsel %vm811, %v817, 0.0
        %819 = vadd.xlane.f32.xlu0 %v818
        %v820 = vpop.xlane.xlu0 %819
        %v821 = vrcp.pop %v820
        %v822 = vmul.f32 %v817, %v821
        %823 = vrot.lane.b32.xlu0 %v732, 64
        %v824 = vpop.permute.xlu0 %823
        %v827 = vsel %vm811, %v822, 0
        %829 = vmatprep.subr.mxu0 0.0
        %830 = vmatpush1.msra.mxu0 %v824
        %831 = vmatprep.subr.mxu0 0.0
        %832 = vmatpush1.msra.mxu0 0.0
        %833 = vmatprep.subr.mxu0 0.0
        %834 = vmatpush1.msra.mxu0 0.0
        %835 = vmatprep.subr.mxu0 0.0
        %836 = vmatpush1.msra.mxu0 0.0
        %837 = vmatprep.subr.mxu0 0.0
        %838 = vmatpush1.msra.mxu0 0.0
        %839 = vmatprep.subr.mxu0 0.0
        %840 = vmatpush1.msra.mxu0 0.0
        %841 = vmatprep.subr.mxu0 0.0
        %842 = vmatpush1.msra.mxu0 0.0
        %843 = vmatprep.subr.mxu0 0.0
        %844 = vmatpush1.msra.mxu0 0.0
        %845 = vmatprep.subr.mxu0 0.0
        %846 = vmatpush1.msra.mxu0 0.0
        %847 = vmatprep.subr.mxu0 0.0
        %848 = vmatpush1.msra.mxu0 0.0
        %849 = vmatprep.subr.mxu0 0.0
        %850 = vmatpush1.msra.mxu0 0.0
        %851 = vmatprep.subr.mxu0 0.0
        %852 = vmatpush1.msra.mxu0 0.0
        %853 = vmatprep.subr.mxu0 0.0
        %854 = vmatpush1.msra.mxu0 0.0
        %855 = vmatprep.subr.mxu0 0.0
        %856 = vmatpush1.msra.mxu0 0.0
        %857 = vmatprep.subr.mxu0 0.0
        %858 = vmatpush1.msra.mxu0 0.0
        %859 = vmatprep.subr.mxu0 0.0
        %860 = vmatpush1.msra.mxu0 0.0
        %861 = vmatprep.subr.mxu0 0.0
        %862 = vmatpush1.msra.mxu0 0.0
        %863 = vmatprep.subr.mxu0 0.0
        %864 = vmatpush1.msra.mxu0 0.0
        %865 = vmatprep.subr.mxu0 0.0
        %866 = vmatpush1.msra.mxu0 0.0
        %867 = vmatprep.subr.mxu0 0.0
        %868 = vmatpush1.msra.mxu0 0.0
        %869 = vmatprep.subr.mxu0 0.0
        %870 = vmatpush1.msra.mxu0 0.0
        %871 = vmatprep.subr.mxu0 0.0
        %872 = vmatpush1.msra.mxu0 0.0
        %873 = vmatprep.subr.mxu0 0.0
        %874 = vmatpush1.msra.mxu0 0.0
        %875 = vmatprep.subr.mxu0 0.0
        %876 = vmatpush1.msra.mxu0 0.0
        %877 = vmatprep.subr.mxu0 0.0
        %878 = vmatpush1.msra.mxu0 0.0
        %879 = vmatprep.subr.mxu0 0.0
        %880 = vmatpush1.msra.mxu0 0.0
        %881 = vmatprep.subr.mxu0 0.0
        %882 = vmatpush1.msra.mxu0 0.0
        %883 = vmatprep.subr.mxu0 0.0
        %884 = vmatpush1.msra.mxu0 0.0
        %885 = vmatprep.subr.mxu0 0.0
        %886 = vmatpush1.msra.mxu0 0.0
        %887 = vmatprep.subr.mxu0 0.0
        %888 = vmatpush1.msra.mxu0 0.0
        %889 = vmatprep.subr.mxu0 0.0
        %890 = vmatpush1.msra.mxu0 0.0
        %891 = vmatprep.subr.mxu0 0.0
        %892 = vmatpush1.msra.mxu0 0.0
        %893 = vmatprep.mubr.f32.mxu0 0.0
        %894 = vmatmul.mubr.f32.gmra.mrb[0].mxu0 %v827
        %v895 = vpop.f32.mrb[0].mxu0
        %v896 = vadd.f32 0.0, %v895
        %v897 = vpop.f32.mrb[0].mxu0
        %898 = vdwg.mxu0
        %899 = vrot.lane.b32.xlu0 %v732, 124
        %v900 = vpop.permute.xlu0 %899
        %901 = vrot.lane.b32.xlu0 %v732, 92
        %v902 = vpop.permute.xlu0 %901
        %v903 = vsel %vm736, %v900, 0
        %v905 = vsel %vm736, %v902, 0
        %907 = vmatprep.subr.mxu0 0.0
        %908 = vmatpush1.xpose.msra.mxu0 %v905
        %909 = vmatprep.subr.mxu0 0.0
        %910 = vmatpush1.xpose.msra.mxu0 0.0
        %911 = vmatprep.subr.mxu0 0.0
        %912 = vmatpush1.xpose.msra.mxu0 0.0
        %913 = vmatprep.subr.mxu0 0.0
        %914 = vmatpush1.xpose.msra.mxu0 0.0
        %915 = vmatprep.subr.mxu0 0.0
        %916 = vmatpush1.xpose.msra.mxu0 0.0
        %917 = vmatprep.subr.mxu0 0.0
        %918 = vmatpush1.xpose.msra.mxu0 0.0
        %919 = vmatprep.subr.mxu0 0.0
        %920 = vmatpush1.xpose.msra.mxu0 0.0
        %921 = vmatprep.subr.mxu0 0.0
        %922 = vmatpush1.xpose.msra.mxu0 0.0
        %923 = vmatprep.subr.mxu0 0.0
        %924 = vmatpush1.xpose.msra.mxu0 0.0
        %925 = vmatprep.subr.mxu0 0.0
        %926 = vmatpush1.xpose.msra.mxu0 0.0
        %927 = vmatprep.subr.mxu0 0.0
        %928 = vmatpush1.xpose.msra.mxu0 0.0
        %929 = vmatprep.subr.mxu0 0.0
        %930 = vmatpush1.xpose.msra.mxu0 0.0
        %931 = vmatprep.subr.mxu0 0.0
        %932 = vmatpush1.xpose.msra.mxu0 0.0
        %933 = vmatprep.subr.mxu0 0.0
        %934 = vmatpush1.xpose.msra.mxu0 0.0
        %935 = vmatprep.subr.mxu0 0.0
        %936 = vmatpush1.xpose.msra.mxu0 0.0
        %937 = vmatprep.subr.mxu0 0.0
        %938 = vmatpush1.xpose.msra.mxu0 0.0
        %939 = vmatprep.subr.mxu0 0.0
        %940 = vmatpush1.xpose.msra.mxu0 0.0
        %941 = vmatprep.subr.mxu0 0.0
        %942 = vmatpush1.xpose.msra.mxu0 0.0
        %943 = vmatprep.subr.mxu0 0.0
        %944 = vmatpush1.xpose.msra.mxu0 0.0
        %945 = vmatprep.subr.mxu0 0.0
        %946 = vmatpush1.xpose.msra.mxu0 0.0
        %947 = vmatprep.subr.mxu0 0.0
        %948 = vmatpush1.xpose.msra.mxu0 0.0
        %949 = vmatprep.subr.mxu0 0.0
        %950 = vmatpush1.xpose.msra.mxu0 0.0
        %951 = vmatprep.subr.mxu0 0.0
        %952 = vmatpush1.xpose.msra.mxu0 0.0
        %953 = vmatprep.subr.mxu0 0.0
        %954 = vmatpush1.xpose.msra.mxu0 0.0
        %955 = vmatprep.subr.mxu0 0.0
        %956 = vmatpush1.xpose.msra.mxu0 0.0
        %957 = vmatprep.subr.mxu0 0.0
        %958 = vmatpush1.xpose.msra.mxu0 0.0
        %959 = vmatprep.subr.mxu0 0.0
        %960 = vmatpush1.xpose.msra.mxu0 0.0
        %961 = vmatprep.subr.mxu0 0.0
        %962 = vmatpush1.xpose.msra.mxu0 0.0
        %963 = vmatprep.subr.mxu0 0.0
        %964 = vmatpush1.xpose.msra.mxu0 0.0
        %965 = vmatprep.subr.mxu0 0.0
        %966 = vmatpush1.xpose.msra.mxu0 0.0
        %967 = vmatprep.subr.mxu0 0.0
        %968 = vmatpush1.xpose.msra.mxu0 0.0
        %969 = vmatprep.subr.mxu0 0.0
        %970 = vmatpush1.xpose.msra.mxu0 0.0
        %971 = vmatprep.mubr.f32.mxu0 0.0
        %972 = vmatmul.mubr.f32.gmra.mrb[0].mxu0 %v903
        %v973 = vpop.f32.mrb[0].mxu0
        %v974 = vadd.f32 0.0, %v973
        %v975 = vpop.f32.mrb[0].mxu0
        %976 = vdwg.mxu0
        %v977 = vsel %vm811, %v974, -inf
        %978 = vmax.xlane.f32.xlu0 %v977
        %v979 = vpop.xlane.xlu0 %978
        %v980 = vsub.f32 %v974, %v979
        %v981 = vmul.f32 %v980, 1.442695
        %v982 = vpow.pop %v981
        %v983 = vsel %vm811, %v982, 0.0
        %984 = vadd.xlane.f32.xlu0 %v983
        %v985 = vpop.xlane.xlu0 %984
        %v986 = vrcp.pop %v985
        %v987 = vmul.f32 %v982, %v986
        %988 = vrot.lane.b32.xlu0 %v732, 60
        %v989 = vpop.permute.xlu0 %988
        %v992 = vsel %vm811, %v987, 0
        %994 = vmatprep.subr.mxu0 0.0
        %995 = vmatpush1.msra.mxu0 %v989
        %996 = vmatprep.subr.mxu0 0.0
        %997 = vmatpush1.msra.mxu0 0.0
        %998 = vmatprep.subr.mxu0 0.0
        %999 = vmatpush1.msra.mxu0 0.0
        %1000 = vmatprep.subr.mxu0 0.0
        %1001 = vmatpush1.msra.mxu0 0.0
        %1002 = vmatprep.subr.mxu0 0.0
        %1003 = vmatpush1.msra.mxu0 0.0
        %1004 = vmatprep.subr.mxu0 0.0
        %1005 = vmatpush1.msra.mxu0 0.0
        %1006 = vmatprep.subr.mxu0 0.0
        %1007 = vmatpush1.msra.mxu0 0.0
        %1008 = vmatprep.subr.mxu0 0.0
        %1009 = vmatpush1.msra.mxu0 0.0
        %1010 = vmatprep.subr.mxu0 0.0
        %1011 = vmatpush1.msra.mxu0 0.0
        %1012 = vmatprep.subr.mxu0 0.0
        %1013 = vmatpush1.msra.mxu0 0.0
        %1014 = vmatprep.subr.mxu0 0.0
        %1015 = vmatpush1.msra.mxu0 0.0
        %1016 = vmatprep.subr.mxu0 0.0
        %1017 = vmatpush1.msra.mxu0 0.0
        %1018 = vmatprep.subr.mxu0 0.0
        %1019 = vmatpush1.msra.mxu0 0.0
        %1020 = vmatprep.subr.mxu0 0.0
        %1021 = vmatpush1.msra.mxu0 0.0
        %1022 = vmatprep.subr.mxu0 0.0
        %1023 = vmatpush1.msra.mxu0 0.0
        %1024 = vmatprep.subr.mxu0 0.0
        %1025 = vmatpush1.msra.mxu0 0.0
        %1026 = vmatprep.subr.mxu0 0.0
        %1027 = vmatpush1.msra.mxu0 0.0
        %1028 = vmatprep.subr.mxu0 0.0
        %1029 = vmatpush1.msra.mxu0 0.0
        %1030 = vmatprep.subr.mxu0 0.0
        %1031 = vmatpush1.msra.mxu0 0.0
        %1032 = vmatprep.subr.mxu0 0.0
        %1033 = vmatpush1.msra.mxu0 0.0
        %1034 = vmatprep.subr.mxu0 0.0
        %1035 = vmatpush1.msra.mxu0 0.0
        %1036 = vmatprep.subr.mxu0 0.0
        %1037 = vmatpush1.msra.mxu0 0.0
        %1038 = vmatprep.subr.mxu0 0.0
        %1039 = vmatpush1.msra.mxu0 0.0
        %1040 = vmatprep.subr.mxu0 0.0
        %1041 = vmatpush1.msra.mxu0 0.0
        %1042 = vmatprep.subr.mxu0 0.0
        %1043 = vmatpush1.msra.mxu0 0.0
        %1044 = vmatprep.subr.mxu0 0.0
        %1045 = vmatpush1.msra.mxu0 0.0
        %1046 = vmatprep.subr.mxu0 0.0
        %1047 = vmatpush1.msra.mxu0 0.0
        %1048 = vmatprep.subr.mxu0 0.0
        %1049 = vmatpush1.msra.mxu0 0.0
        %1050 = vmatprep.subr.mxu0 0.0
        %1051 = vmatpush1.msra.mxu0 0.0
        %1052 = vmatprep.subr.mxu0 0.0
        %1053 = vmatpush1.msra.mxu0 0.0
        %1054 = vmatprep.subr.mxu0 0.0
        %1055 = vmatpush1.msra.mxu0 0.0
        %1056 = vmatprep.subr.mxu0 0.0
        %1057 = vmatpush1.msra.mxu0 0.0
        %1058 = vmatprep.mubr.f32.mxu0 0.0
        %1059 = vmatmul.mubr.f32.gmra.mrb[0].mxu0 %v992
        %v1060 = vpop.f32.mrb[0].mxu0
        %v1061 = vadd.f32 0.0, %v1060
        %v1062 = vpop.f32.mrb[0].mxu0
        %1063 = vdwg.mxu0
        %1064 = vrot.lane.b32.xlu0 %v732, 120
        %v1065 = vpop.permute.xlu0 %1064
        %1066 = vrot.lane.b32.xlu0 %v732, 88
        %v1067 = vpop.permute.xlu0 %1066
        %v1068 = vsel %vm736, %v1065, 0
        %v1070 = vsel %vm736, %v1067, 0
        %1072 = vmatprep.subr.mxu0 0.0
        %1073 = vmatpush1.xpose.msra.mxu0 %v1070
        %1074 = vmatprep.subr.mxu0 0.0
        %1075 = vmatpush1.xpose.msra.mxu0 0.0
        %1076 = vmatprep.subr.mxu0 0.0
        %1077 = vmatpush1.xpose.msra.mxu0 0.0
        %1078 = vmatprep.subr.mxu0 0.0
        %1079 = vmatpush1.xpose.msra.mxu0 0.0
        %1080 = vmatprep.subr.mxu0 0.0
        %1081 = vmatpush1.xpose.msra.mxu0 0.0
        %1082 = vmatprep.subr.mxu0 0.0
        %1083 = vmatpush1.xpose.msra.mxu0 0.0
        %1084 = vmatprep.subr.mxu0 0.0
        %1085 = vmatpush1.xpose.msra.mxu0 0.0
        %1086 = vmatprep.subr.mxu0 0.0
        %1087 = vmatpush1.xpose.msra.mxu0 0.0
        %1088 = vmatprep.subr.mxu0 0.0
        %1089 = vmatpush1.xpose.msra.mxu0 0.0
        %1090 = vmatprep.subr.mxu0 0.0
        %1091 = vmatpush1.xpose.msra.mxu0 0.0
        %1092 = vmatprep.subr.mxu0 0.0
        %1093 = vmatpush1.xpose.msra.mxu0 0.0
        %1094 = vmatprep.subr.mxu0 0.0
        %1095 = vmatpush1.xpose.msra.mxu0 0.0
        %1096 = vmatprep.subr.mxu0 0.0
        %1097 = vmatpush1.xpose.msra.mxu0 0.0
        %1098 = vmatprep.subr.mxu0 0.0
        %1099 = vmatpush1.xpose.msra.mxu0 0.0
        %1100 = vmatprep.subr.mxu0 0.0
        %1101 = vmatpush1.xpose.msra.mxu0 0.0
        %1102 = vmatprep.subr.mxu0 0.0
        %1103 = vmatpush1.xpose.msra.mxu0 0.0
        %1104 = vmatprep.subr.mxu0 0.0
        %1105 = vmatpush1.xpose.msra.mxu0 0.0
        %1106 = vmatprep.subr.mxu0 0.0
        %1107 = vmatpush1.xpose.msra.mxu0 0.0
        %1108 = vmatprep.subr.mxu0 0.0
        %1109 = vmatpush1.xpose.msra.mxu0 0.0
        %1110 = vmatprep.subr.mxu0 0.0
        %1111 = vmatpush1.xpose.msra.mxu0 0.0
        %1112 = vmatprep.subr.mxu0 0.0
        %1113 = vmatpush1.xpose.msra.mxu0 0.0
        %1114 = vmatprep.subr.mxu0 0.0
        %1115 = vmatpush1.xpose.msra.mxu0 0.0
        %1116 = vmatprep.subr.mxu0 0.0
        %1117 = vmatpush1.xpose.msra.mxu0 0.0
        %1118 = vmatprep.subr.mxu0 0.0
        %1119 = vmatpush1.xpose.msra.mxu0 0.0
        %1120 = vmatprep.subr.mxu0 0.0
        %1121 = vmatpush1.xpose.msra.mxu0 0.0
        %1122 = vmatprep.subr.mxu0 0.0
        %1123 = vmatpush1.xpose.msra.mxu0 0.0
        %1124 = vmatprep.subr.mxu0 0.0
        %1125 = vmatpush1.xpose.msra.mxu0 0.0
        %1126 = vmatprep.subr.mxu0 0.0
        %1127 = vmatpush1.xpose.msra.mxu0 0.0
        %1128 = vmatprep.subr.mxu0 0.0
        %1129 = vmatpush1.xpose.msra.mxu0 0.0
        %1130 = vmatprep.subr.mxu0 0.0
        %1131 = vmatpush1.xpose.msra.mxu0 0.0
        %1132 = vmatprep.subr.mxu0 0.0
        %1133 = vmatpush1.xpose.msra.mxu0 0.0
        %1134 = vmatprep.subr.mxu0 0.0
        %1135 = vmatpush1.xpose.msra.mxu0 0.0
        %1136 = vmatprep.mubr.f32.mxu0 0.0
        %1137 = vmatmul.mubr.f32.gmra.mrb[0].mxu0 %v1068
        %v1138 = vpop.f32.mrb[0].mxu0
        %v1139 = vadd.f32 0.0, %v1138
        %v1140 = vpop.f32.mrb[0].mxu0
        %1141 = vdwg.mxu0
        %v1142 = vsel %vm811, %v1139, -inf
        %1143 = vmax.xlane.f32.xlu0 %v1142
        %v1144 = vpop.xlane.xlu0 %1143
        %v1145 = vsub.f32 %v1139, %v1144
        %v1146 = vmul.f32 %v1145, 1.442695
        %v1147 = vpow.pop %v1146
        %v1148 = vsel %vm811, %v1147, 0.0
        %1149 = vadd.xlane.f32.xlu0 %v1148
        %v1150 = vpop.xlane.xlu0 %1149
        %v1151 = vrcp.pop %v1150
        %v1152 = vmul.f32 %v1147, %v1151
        %1153 = vrot.lane.b32.xlu0 %v732, 56
        %v1154 = vpop.permute.xlu0 %1153
        %v1157 = vsel %vm811, %v1152, 0
        %1159 = vmatprep.subr.mxu0 0.0
        %1160 = vmatpush1.msra.mxu0 %v1154
        %1161 = vmatprep.subr.mxu0 0.0
        %1162 = vmatpush1.msra.mxu0 0.0
        %1163 = vmatprep.subr.mxu0 0.0
        %1164 = vmatpush1.msra.mxu0 0.0
        %1165 = vmatprep.subr.mxu0 0.0
        %1166 = vmatpush1.msra.mxu0 0.0
        %1167 = vmatprep.subr.mxu0 0.0
        %1168 = vmatpush1.msra.mxu0 0.0
        %1169 = vmatprep.subr.mxu0 0.0
        %1170 = vmatpush1.msra.mxu0 0.0
        %1171 = vmatprep.subr.mxu0 0.0
        %1172 = vmatpush1.msra.mxu0 0.0
        %1173 = vmatprep.subr.mxu0 0.0
        %1174 = vmatpush1.msra.mxu0 0.0
        %1175 = vmatprep.subr.mxu0 0.0
        %1176 = vmatpush1.msra.mxu0 0.0
        %1177 = vmatprep.subr.mxu0 0.0
        %1178 = vmatpush1.msra.mxu0 0.0
        %1179 = vmatprep.subr.mxu0 0.0
        %1180 = vmatpush1.msra.mxu0 0.0
        %1181 = vmatprep.subr.mxu0 0.0
        %1182 = vmatpush1.msra.mxu0 0.0
        %1183 = vmatprep.subr.mxu0 0.0
        %1184 = vmatpush1.msra.mxu0 0.0
        %1185 = vmatprep.subr.mxu0 0.0
        %1186 = vmatpush1.msra.mxu0 0.0
        %1187 = vmatprep.subr.mxu0 0.0
        %1188 = vmatpush1.msra.mxu0 0.0
        %1189 = vmatprep.subr.mxu0 0.0
        %1190 = vmatpush1.msra.mxu0 0.0
        %1191 = vmatprep.subr.mxu0 0.0
        %1192 = vmatpush1.msra.mxu0 0.0
        %1193 = vmatprep.subr.mxu0 0.0
        %1194 = vmatpush1.msra.mxu0 0.0
        %1195 = vmatprep.subr.mxu0 0.0
        %1196 = vmatpush1.msra.mxu0 0.0
        %1197 = vmatprep.subr.mxu0 0.0
        %1198 = vmatpush1.msra.mxu0 0.0
        %1199 = vmatprep.subr.mxu0 0.0
        %1200 = vmatpush1.msra.mxu0 0.0
        %1201 = vmatprep.subr.mxu0 0.0
        %1202 = vmatpush1.msra.mxu0 0.0
        %1203 = vmatprep.subr.mxu0 0.0
        %1204 = vmatpush1.msra.mxu0 0.0
        %1205 = vmatprep.subr.mxu0 0.0
        %1206 = vmatpush1.msra.mxu0 0.0
        %1207 = vmatprep.subr.mxu0 0.0
        %1208 = vmatpush1.msra.mxu0 0.0
        %1209 = vmatprep.subr.mxu0 0.0
        %1210 = vmatpush1.msra.mxu0 0.0
        %1211 = vmatprep.subr.mxu0 0.0
        %1212 = vmatpush1.msra.mxu0 0.0
        %1213 = vmatprep.subr.mxu0 0.0
        %1214 = vmatpush1.msra.mxu0 0.0
        %1215 = vmatprep.subr.mxu0 0.0
        %1216 = vmatpush1.msra.mxu0 0.0
        %1217 = vmatprep.subr.mxu0 0.0
        %1218 = vmatpush1.msra.mxu0 0.0
        %1219 = vmatprep.subr.mxu0 0.0
        %1220 = vmatpush1.msra.mxu0 0.0
        %1221 = vmatprep.subr.mxu0 0.0
        %1222 = vmatpush1.msra.mxu0 0.0
        %1223 = vmatprep.mubr.f32.mxu0 0.0
        %1224 = vmatmul.mubr.f32.gmra.mrb[0].mxu0 %v1157
        %v1225 = vpop.f32.mrb[0].mxu0
        %v1226 = vadd.f32 0.0, %v1225
        %v1227 = vpop.f32.mrb[0].mxu0
        %1228 = vdwg.mxu0
        %1229 = vrot.lane.b32.xlu0 %v732, 116
        %v1230 = vpop.permute.xlu0 %1229
        %1231 = vrot.lane.b32.xlu0 %v732, 84
        %v1232 = vpop.permute.xlu0 %1231
        %v1233 = vsel %vm736, %v1230, 0
        %v1235 = vsel %vm736, %v1232, 0
        %1237 = vmatprep.subr.mxu0 0.0
        %1238 = vmatpush1.xpose.msra.mxu0 %v1235
        %1239 = vmatprep.subr.mxu0 0.0
        %1240 = vmatpush1.xpose.msra.mxu0 0.0
        %1241 = vmatprep.subr.mxu0 0.0
        %1242 = vmatpush1.xpose.msra.mxu0 0.0
        %1243 = vmatprep.subr.mxu0 0.0
        %1244 = vmatpush1.xpose.msra.mxu0 0.0
        %1245 = vmatprep.subr.mxu0 0.0
        %1246 = vmatpush1.xpose.msra.mxu0 0.0
        %1247 = vmatprep.subr.mxu0 0.0
        %1248 = vmatpush1.xpose.msra.mxu0 0.0
        %1249 = vmatprep.subr.mxu0 0.0
        %1250 = vmatpush1.xpose.msra.mxu0 0.0
        %1251 = vmatprep.subr.mxu0 0.0
        %1252 = vmatpush1.xpose.msra.mxu0 0.0
        %1253 = vmatprep.subr.mxu0 0.0
        %1254 = vmatpush1.xpose.msra.mxu0 0.0
        %1255 = vmatprep.subr.mxu0 0.0
        %1256 = vmatpush1.xpose.msra.mxu0 0.0
        %1257 = vmatprep.subr.mxu0 0.0
        %1258 = vmatpush1.xpose.msra.mxu0 0.0
        %1259 = vmatprep.subr.mxu0 0.0
        %1260 = vmatpush1.xpose.msra.mxu0 0.0
        %1261 = vmatprep.subr.mxu0 0.0
        %1262 = vmatpush1.xpose.msra.mxu0 0.0
        %1263 = vmatprep.subr.mxu0 0.0
        %1264 = vmatpush1.xpose.msra.mxu0 0.0
        %1265 = vmatprep.subr.mxu0 0.0
        %1266 = vmatpush1.xpose.msra.mxu0 0.0
        %1267 = vmatprep.subr.mxu0 0.0
        %1268 = vmatpush1.xpose.msra.mxu0 0.0
        %1269 = vmatprep.subr.mxu0 0.0
        %1270 = vmatpush1.xpose.msra.mxu0 0.0
        %1271 = vmatprep.subr.mxu0 0.0
        %1272 = vmatpush1.xpose.msra.mxu0 0.0
        %1273 = vmatprep.subr.mxu0 0.0
        %1274 = vmatpush1.xpose.msra.mxu0 0.0
        %1275 = vmatprep.subr.mxu0 0.0
        %1276 = vmatpush1.xpose.msra.mxu0 0.0
        %1277 = vmatprep.subr.mxu0 0.0
        %1278 = vmatpush1.xpose.msra.mxu0 0.0
        %1279 = vmatprep.subr.mxu0 0.0
        %1280 = vmatpush1.xpose.msra.mxu0 0.0
        %1281 = vmatprep.subr.mxu0 0.0
        %1282 = vmatpush1.xpose.msra.mxu0 0.0
        %1283 = vmatprep.subr.mxu0 0.0
        %1284 = vmatpush1.xpose.msra.mxu0 0.0
        %1285 = vmatprep.subr.mxu0 0.0
        %1286 = vmatpush1.xpose.msra.mxu0 0.0
        %1287 = vmatprep.subr.mxu0 0.0
        %1288 = vmatpush1.xpose.msra.mxu0 0.0
        %1289 = vmatprep.subr.mxu0 0.0
        %1290 = vmatpush1.xpose.msra.mxu0 0.0
        %1291 = vmatprep.subr.mxu0 0.0
        %1292 = vmatpush1.xpose.msra.mxu0 0.0
        %1293 = vmatprep.subr.mxu0 0.0
        %1294 = vmatpush1.xpose.msra.mxu0 0.0
        %1295 = vmatprep.subr.mxu0 0.0
        %1296 = vmatpush1.xpose.msra.mxu0 0.0
        %1297 = vmatprep.subr.mxu0 0.0
        %1298 = vmatpush1.xpose.msra.mxu0 0.0
        %1299 = vmatprep.subr.mxu0 0.0
        %1300 = vmatpush1.xpose.msra.mxu0 0.0
        %1301 = vmatprep.mubr.f32.mxu0 0.0
        %1302 = vmatmul.mubr.f32.gmra.mrb[0].mxu0 %v1233
        %v1303 = vpop.f32.mrb[0].mxu0
        %v1304 = vadd.f32 0.0, %v1303
        %v1305 = vpop.f32.mrb[0].mxu0
        %1306 = vdwg.mxu0
        %v1307 = vsel %vm811, %v1304, -inf
        %1308 = vmax.xlane.f32.xlu0 %v1307
        %v1309 = vpop.xlane.xlu0 %1308
        %v1310 = vsub.f32 %v1304, %v1309
        %v1311 = vmul.f32 %v1310, 1.442695
        %v1312 = vpow.pop %v1311
        %v1313 = vsel %vm811, %v1312, 0.0
        %1314 = vadd.xlane.f32.xlu0 %v1313
        %v1315 = vpop.xlane.xlu0 %1314
        %v1316 = vrcp.pop %v1315
        %v1317 = vmul.f32 %v1312, %v1316
        %1318 = vrot.lane.b32.xlu0 %v732, 52
        %v1319 = vpop.permute.xlu0 %1318
        %v1322 = vsel %vm811, %v1317, 0
        %1324 = vmatprep.subr.mxu0 0.0
        %1325 = vmatpush1.msra.mxu0 %v1319
        %1326 = vmatprep.subr.mxu0 0.0
        %1327 = vmatpush1.msra.mxu0 0.0
        %1328 = vmatprep.subr.mxu0 0.0
        %1329 = vmatpush1.msra.mxu0 0.0
        %1330 = vmatprep.subr.mxu0 0.0
        %1331 = vmatpush1.msra.mxu0 0.0
        %1332 = vmatprep.subr.mxu0 0.0
        %1333 = vmatpush1.msra.mxu0 0.0
        %1334 = vmatprep.subr.mxu0 0.0
        %1335 = vmatpush1.msra.mxu0 0.0
        %1336 = vmatprep.subr.mxu0 0.0
        %1337 = vmatpush1.msra.mxu0 0.0
        %1338 = vmatprep.subr.mxu0 0.0
        %1339 = vmatpush1.msra.mxu0 0.0
        %1340 = vmatprep.subr.mxu0 0.0
        %1341 = vmatpush1.msra.mxu0 0.0
        %1342 = vmatprep.subr.mxu0 0.0
        %1343 = vmatpush1.msra.mxu0 0.0
        %1344 = vmatprep.subr.mxu0 0.0
        %1345 = vmatpush1.msra.mxu0 0.0
        %1346 = vmatprep.subr.mxu0 0.0
        %1347 = vmatpush1.msra.mxu0 0.0
        %1348 = vmatprep.subr.mxu0 0.0
        %1349 = vmatpush1.msra.mxu0 0.0
        %1350 = vmatprep.subr.mxu0 0.0
        %1351 = vmatpush1.msra.mxu0 0.0
        %1352 = vmatprep.subr.mxu0 0.0
        %1353 = vmatpush1.msra.mxu0 0.0
        %1354 = vmatprep.subr.mxu0 0.0
        %1355 = vmatpush1.msra.mxu0 0.0
        %1356 = vmatprep.subr.mxu0 0.0
        %1357 = vmatpush1.msra.mxu0 0.0
        %1358 = vmatprep.subr.mxu0 0.0
        %1359 = vmatpush1.msra.mxu0 0.0
        %1360 = vmatprep.subr.mxu0 0.0
        %1361 = vmatpush1.msra.mxu0 0.0
        %1362 = vmatprep.subr.mxu0 0.0
        %1363 = vmatpush1.msra.mxu0 0.0
        %1364 = vmatprep.subr.mxu0 0.0
        %1365 = vmatpush1.msra.mxu0 0.0
        %1366 = vmatprep.subr.mxu0 0.0
        %1367 = vmatpush1.msra.mxu0 0.0
        %1368 = vmatprep.subr.mxu0 0.0
        %1369 = vmatpush1.msra.mxu0 0.0
        %1370 = vmatprep.subr.mxu0 0.0
        %1371 = vmatpush1.msra.mxu0 0.0
        %1372 = vmatprep.subr.mxu0 0.0
        %1373 = vmatpush1.msra.mxu0 0.0
        %1374 = vmatprep.subr.mxu0 0.0
        %1375 = vmatpush1.msra.mxu0 0.0
        %1376 = vmatprep.subr.mxu0 0.0
        %1377 = vmatpush1.msra.mxu0 0.0
        %1378 = vmatprep.subr.mxu0 0.0
        %1379 = vmatpush1.msra.mxu0 0.0
        %1380 = vmatprep.subr.mxu0 0.0
        %1381 = vmatpush1.msra.mxu0 0.0
        %1382 = vmatprep.subr.mxu0 0.0
        %1383 = vmatpush1.msra.mxu0 0.0
        %1384 = vmatprep.subr.mxu0 0.0
        %1385 = vmatpush1.msra.mxu0 0.0
        %1386 = vmatprep.subr.mxu0 0.0
        %1387 = vmatpush1.msra.mxu0 0.0
        %1388 = vmatprep.mubr.f32.mxu0 0.0
        %1389 = vmatmul.mubr.f32.gmra.mrb[0].mxu0 %v1322
        %v1390 = vpop.f32.mrb[0].mxu0
        %v1391 = vadd.f32 0.0, %v1390
        %v1392 = vpop.f32.mrb[0].mxu0
        %1393 = vdwg.mxu0
        %1394 = vrot.lane.b32.xlu0 %v732, 112
        %v1395 = vpop.permute.xlu0 %1394
        %1396 = vrot.lane.b32.xlu0 %v732, 80
        %v1397 = vpop.permute.xlu0 %1396
        %v1398 = vsel %vm736, %v1395, 0
        %v1400 = vsel %vm736, %v1397, 0
        %1402 = vmatprep.subr.mxu0 0.0
        %1403 = vmatpush1.xpose.msra.mxu0 %v1400
        %1404 = vmatprep.subr.mxu0 0.0
        %1405 = vmatpush1.xpose.msra.mxu0 0.0
        %1406 = vmatprep.subr.mxu0 0.0
        %1407 = vmatpush1.xpose.msra.mxu0 0.0
        %1408 = vmatprep.subr.mxu0 0.0
        %1409 = vmatpush1.xpose.msra.mxu0 0.0
        %1410 = vmatprep.subr.mxu0 0.0
        %1411 = vmatpush1.xpose.msra.mxu0 0.0
        %1412 = vmatprep.subr.mxu0 0.0
        %1413 = vmatpush1.xpose.msra.mxu0 0.0
        %1414 = vmatprep.subr.mxu0 0.0
        %1415 = vmatpush1.xpose.msra.mxu0 0.0
        %1416 = vmatprep.subr.mxu0 0.0
        %1417 = vmatpush1.xpose.msra.mxu0 0.0
        %1418 = vmatprep.subr.mxu0 0.0
        %1419 = vmatpush1.xpose.msra.mxu0 0.0
        %1420 = vmatprep.subr.mxu0 0.0
        %1421 = vmatpush1.xpose.msra.mxu0 0.0
        %1422 = vmatprep.subr.mxu0 0.0
        %1423 = vmatpush1.xpose.msra.mxu0 0.0
        %1424 = vmatprep.subr.mxu0 0.0
        %1425 = vmatpush1.xpose.msra.mxu0 0.0
        %1426 = vmatprep.subr.mxu0 0.0
        %1427 = vmatpush1.xpose.msra.mxu0 0.0
        %1428 = vmatprep.subr.mxu0 0.0
        %1429 = vmatpush1.xpose.msra.mxu0 0.0
        %1430 = vmatprep.subr.mxu0 0.0
        %1431 = vmatpush1.xpose.msra.mxu0 0.0
        %1432 = vmatprep.subr.mxu0 0.0
        %1433 = vmatpush1.xpose.msra.mxu0 0.0
        %1434 = vmatprep.subr.mxu0 0.0
        %1435 = vmatpush1.xpose.msra.mxu0 0.0
        %1436 = vmatprep.subr.mxu0 0.0
        %1437 = vmatpush1.xpose.msra.mxu0 0.0
        %1438 = vmatprep.subr.mxu0 0.0
        %1439 = vmatpush1.xpose.msra.mxu0 0.0
        %1440 = vmatprep.subr.mxu0 0.0
        %1441 = vmatpush1.xpose.msra.mxu0 0.0
        %1442 = vmatprep.subr.mxu0 0.0
        %1443 = vmatpush1.xpose.msra.mxu0 0.0
        %1444 = vmatprep.subr.mxu0 0.0
        %1445 = vmatpush1.xpose.msra.mxu0 0.0
        %1446 = vmatprep.subr.mxu0 0.0
        %1447 = vmatpush1.xpose.msra.mxu0 0.0
        %1448 = vmatprep.subr.mxu0 0.0
        %1449 = vmatpush1.xpose.msra.mxu0 0.0
        %1450 = vmatprep.subr.mxu0 0.0
        %1451 = vmatpush1.xpose.msra.mxu0 0.0
        %1452 = vmatprep.subr.mxu0 0.0
        %1453 = vmatpush1.xpose.msra.mxu0 0.0
        %1454 = vmatprep.subr.mxu0 0.0
        %1455 = vmatpush1.xpose.msra.mxu0 0.0
        %1456 = vmatprep.subr.mxu0 0.0
        %1457 = vmatpush1.xpose.msra.mxu0 0.0
        %1458 = vmatprep.subr.mxu0 0.0
        %1459 = vmatpush1.xpose.msra.mxu0 0.0
        %1460 = vmatprep.subr.mxu0 0.0
        %1461 = vmatpush1.xpose.msra.mxu0 0.0
        %1462 = vmatprep.subr.mxu0 0.0
        %1463 = vmatpush1.xpose.msra.mxu0 0.0
        %1464 = vmatprep.subr.mxu0 0.0
        %1465 = vmatpush1.xpose.msra.mxu0 0.0
        %1466 = vmatprep.mubr.f32.mxu0 0.0
        %1467 = vmatmul.mubr.f32.gmra.mrb[0].mxu0 %v1398
        %v1468 = vpop.f32.mrb[0].mxu0
        %v1469 = vadd.f32 0.0, %v1468
        %v1470 = vpop.f32.mrb[0].mxu0
        %1471 = vdwg.mxu0
        %v1472 = vsel %vm811, %v1469, -inf
        %1473 = vmax.xlane.f32.xlu0 %v1472
        %v1474 = vpop.xlane.xlu0 %1473
        %v1475 = vsub.f32 %v1469, %v1474
        %v1476 = vmul.f32 %v1475, 1.442695
        %v1477 = vpow.pop %v1476
        %v1478 = vsel %vm811, %v1477, 0.0
        %1479 = vadd.xlane.f32.xlu0 %v1478
        %v1480 = vpop.xlane.xlu0 %1479
        %v1481 = vrcp.pop %v1480
        %v1482 = vmul.f32 %v1477, %v1481
        %1483 = vrot.lane.b32.xlu0 %v732, 48
        %v1484 = vpop.permute.xlu0 %1483
        %v1487 = vsel %vm811, %v1482, 0
        %1489 = vmatprep.subr.mxu0 0.0
        %1490 = vmatpush1.msra.mxu0 %v1484
        %1491 = vmatprep.subr.mxu0 0.0
        %1492 = vmatpush1.msra.mxu0 0.0
        %1493 = vmatprep.subr.mxu0 0.0
        %1494 = vmatpush1.msra.mxu0 0.0
        %1495 = vmatprep.subr.mxu0 0.0
        %1496 = vmatpush1.msra.mxu0 0.0
        %1497 = vmatprep.subr.mxu0 0.0
        %1498 = vmatpush1.msra.mxu0 0.0
        %1499 = vmatprep.subr.mxu0 0.0
        %1500 = vmatpush1.msra.mxu0 0.0
        %1501 = vmatprep.subr.mxu0 0.0
        %1502 = vmatpush1.msra.mxu0 0.0
        %1503 = vmatprep.subr.mxu0 0.0
        %1504 = vmatpush1.msra.mxu0 0.0
        %1505 = vmatprep.subr.mxu0 0.0
        %1506 = vmatpush1.msra.mxu0 0.0
        %1507 = vmatprep.subr.mxu0 0.0
        %1508 = vmatpush1.msra.mxu0 0.0
        %1509 = vmatprep.subr.mxu0 0.0
        %1510 = vmatpush1.msra.mxu0 0.0
        %1511 = vmatprep.subr.mxu0 0.0
        %1512 = vmatpush1.msra.mxu0 0.0
        %1513 = vmatprep.subr.mxu0 0.0
        %1514 = vmatpush1.msra.mxu0 0.0
        %1515 = vmatprep.subr.mxu0 0.0
        %1516 = vmatpush1.msra.mxu0 0.0
        %1517 = vmatprep.subr.mxu0 0.0
        %1518 = vmatpush1.msra.mxu0 0.0
        %1519 = vmatprep.subr.mxu0 0.0
        %1520 = vmatpush1.msra.mxu0 0.0
        %1521 = vmatprep.subr.mxu0 0.0
        %1522 = vmatpush1.msra.mxu0 0.0
        %1523 = vmatprep.subr.mxu0 0.0
        %1524 = vmatpush1.msra.mxu0 0.0
        %1525 = vmatprep.subr.mxu0 0.0
        %1526 = vmatpush1.msra.mxu0 0.0
        %1527 = vmatprep.subr.mxu0 0.0
        %1528 = vmatpush1.msra.mxu0 0.0
        %1529 = vmatprep.subr.mxu0 0.0
        %1530 = vmatpush1.msra.mxu0 0.0
        %1531 = vmatprep.subr.mxu0 0.0
        %1532 = vmatpush1.msra.mxu0 0.0
        %1533 = vmatprep.subr.mxu0 0.0
        %1534 = vmatpush1.msra.mxu0 0.0
        %1535 = vmatprep.subr.mxu0 0.0
        %1536 = vmatpush1.msra.mxu0 0.0
        %1537 = vmatprep.subr.mxu0 0.0
        %1538 = vmatpush1.msra.mxu0 0.0
        %1539 = vmatprep.subr.mxu0 0.0
        %1540 = vmatpush1.msra.mxu0 0.0
        %1541 = vmatprep.subr.mxu0 0.0
        %1542 = vmatpush1.msra.mxu0 0.0
        %1543 = vmatprep.subr.mxu0 0.0
        %1544 = vmatpush1.msra.mxu0 0.0
        %1545 = vmatprep.subr.mxu0 0.0
        %1546 = vmatpush1.msra.mxu0 0.0
        %1547 = vmatprep.subr.mxu0 0.0
        %1548 = vmatpush1.msra.mxu0 0.0
        %1549 = vmatprep.subr.mxu0 0.0
        %1550 = vmatpush1.msra.mxu0 0.0
        %1551 = vmatprep.subr.mxu0 0.0
        %1552 = vmatpush1.msra.mxu0 0.0
        %1553 = vmatprep.mubr.f32.mxu0 0.0
        %1554 = vmatmul.mubr.f32.gmra.mrb[0].mxu0 %v1487
        %v1555 = vpop.f32.mrb[0].mxu0
        %v1556 = vadd.f32 0.0, %v1555
        %v1557 = vpop.f32.mrb[0].mxu0
        %1558 = vdwg.mxu0
        %1559 = vrot.lane.b32.xlu0 %v732, 108
        %v1560 = vpop.permute.xlu0 %1559
        %1561 = vrot.lane.b32.xlu0 %v732, 76
        %v1562 = vpop.permute.xlu0 %1561
        %v1563 = vsel %vm736, %v1560, 0
        %v1565 = vsel %vm736, %v1562, 0
        %1567 = vmatprep.subr.mxu0 0.0
        %1568 = vmatpush1.xpose.msra.mxu0 %v1565
        %1569 = vmatprep.subr.mxu0 0.0
        %1570 = vmatpush1.xpose.msra.mxu0 0.0
        %1571 = vmatprep.subr.mxu0 0.0
        %1572 = vmatpush1.xpose.msra.mxu0 0.0
        %1573 = vmatprep.subr.mxu0 0.0
        %1574 = vmatpush1.xpose.msra.mxu0 0.0
        %1575 = vmatprep.subr.mxu0 0.0
        %1576 = vmatpush1.xpose.msra.mxu0 0.0
        %1577 = vmatprep.subr.mxu0 0.0
        %1578 = vmatpush1.xpose.msra.mxu0 0.0
        %1579 = vmatprep.subr.mxu0 0.0
        %1580 = vmatpush1.xpose.msra.mxu0 0.0
        %1581 = vmatprep.subr.mxu0 0.0
        %1582 = vmatpush1.xpose.msra.mxu0 0.0
        %1583 = vmatprep.subr.mxu0 0.0
        %1584 = vmatpush1.xpose.msra.mxu0 0.0
        %1585 = vmatprep.subr.mxu0 0.0
        %1586 = vmatpush1.xpose.msra.mxu0 0.0
        %1587 = vmatprep.subr.mxu0 0.0
        %1588 = vmatpush1.xpose.msra.mxu0 0.0
        %1589 = vmatprep.subr.mxu0 0.0
        %1590 = vmatpush1.xpose.msra.mxu0 0.0
        %1591 = vmatprep.subr.mxu0 0.0
        %1592 = vmatpush1.xpose.msra.mxu0 0.0
        %1593 = vmatprep.subr.mxu0 0.0
        %1594 = vmatpush1.xpose.msra.mxu0 0.0
        %1595 = vmatprep.subr.mxu0 0.0
        %1596 = vmatpush1.xpose.msra.mxu0 0.0
        %1597 = vmatprep.subr.mxu0 0.0
        %1598 = vmatpush1.xpose.msra.mxu0 0.0
        %1599 = vmatprep.subr.mxu0 0.0
        %1600 = vmatpush1.xpose.msra.mxu0 0.0
        %1601 = vmatprep.subr.mxu0 0.0
        %1602 = vmatpush1.xpose.msra.mxu0 0.0
        %1603 = vmatprep.subr.mxu0 0.0
        %1604 = vmatpush1.xpose.msra.mxu0 0.0
        %1605 = vmatprep.subr.mxu0 0.0
        %1606 = vmatpush1.xpose.msra.mxu0 0.0
        %1607 = vmatprep.subr.mxu0 0.0
        %1608 = vmatpush1.xpose.msra.mxu0 0.0
        %1609 = vmatprep.subr.mxu0 0.0
        %1610 = vmatpush1.xpose.msra.mxu0 0.0
        %1611 = vmatprep.subr.mxu0 0.0
        %1612 = vmatpush1.xpose.msra.mxu0 0.0
        %1613 = vmatprep.subr.mxu0 0.0
        %1614 = vmatpush1.xpose.msra.mxu0 0.0
        %1615 = vmatprep.subr.mxu0 0.0
        %1616 = vmatpush1.xpose.msra.mxu0 0.0
        %1617 = vmatprep.subr.mxu0 0.0
        %1618 = vmatpush1.xpose.msra.mxu0 0.0
        %1619 = vmatprep.subr.mxu0 0.0
        %1620 = vmatpush1.xpose.msra.mxu0 0.0
        %1621 = vmatprep.subr.mxu0 0.0
        %1622 = vmatpush1.xpose.msra.mxu0 0.0
        %1623 = vmatprep.subr.mxu0 0.0
        %1624 = vmatpush1.xpose.msra.mxu0 0.0
        %1625 = vmatprep.subr.mxu0 0.0
        %1626 = vmatpush1.xpose.msra.mxu0 0.0
        %1627 = vmatprep.subr.mxu0 0.0
        %1628 = vmatpush1.xpose.msra.mxu0 0.0
        %1629 = vmatprep.subr.mxu0 0.0
        %1630 = vmatpush1.xpose.msra.mxu0 0.0
        %1631 = vmatprep.mubr.f32.mxu0 0.0
        %1632 = vmatmul.mubr.f32.gmra.mrb[0].mxu0 %v1563
        %v1633 = vpop.f32.mrb[0].mxu0
        %v1634 = vadd.f32 0.0, %v1633
        %v1635 = vpop.f32.mrb[0].mxu0
        %1636 = vdwg.mxu0
        %v1637 = vsel %vm811, %v1634, -inf
        %1638 = vmax.xlane.f32.xlu0 %v1637
        %v1639 = vpop.xlane.xlu0 %1638
        %v1640 = vsub.f32 %v1634, %v1639
        %v1641 = vmul.f32 %v1640, 1.442695
        %v1642 = vpow.pop %v1641
        %v1643 = vsel %vm811, %v1642, 0.0
        %1644 = vadd.xlane.f32.xlu0 %v1643
        %v1645 = vpop.xlane.xlu0 %1644
        %v1646 = vrcp.pop %v1645
        %v1647 = vmul.f32 %v1642, %v1646
        %1648 = vrot.lane.b32.xlu0 %v732, 44
        %v1649 = vpop.permute.xlu0 %1648
        %v1652 = vsel %vm811, %v1647, 0
        %1654 = vmatprep.subr.mxu0 0.0
        %1655 = vmatpush1.msra.mxu0 %v1649
        %1656 = vmatprep.subr.mxu0 0.0
        %1657 = vmatpush1.msra.mxu0 0.0
        %1658 = vmatprep.subr.mxu0 0.0
        %1659 = vmatpush1.msra.mxu0 0.0
        %1660 = vmatprep.subr.mxu0 0.0
        %1661 = vmatpush1.msra.mxu0 0.0
        %1662 = vmatprep.subr.mxu0 0.0
        %1663 = vmatpush1.msra.mxu0 0.0
        %1664 = vmatprep.subr.mxu0 0.0
        %1665 = vmatpush1.msra.mxu0 0.0
        %1666 = vmatprep.subr.mxu0 0.0
        %1667 = vmatpush1.msra.mxu0 0.0
        %1668 = vmatprep.subr.mxu0 0.0
        %1669 = vmatpush1.msra.mxu0 0.0
        %1670 = vmatprep.subr.mxu0 0.0
        %1671 = vmatpush1.msra.mxu0 0.0
        %1672 = vmatprep.subr.mxu0 0.0
        %1673 = vmatpush1.msra.mxu0 0.0
        %1674 = vmatprep.subr.mxu0 0.0
        %1675 = vmatpush1.msra.mxu0 0.0
        %1676 = vmatprep.subr.mxu0 0.0
        %1677 = vmatpush1.msra.mxu0 0.0
        %1678 = vmatprep.subr.mxu0 0.0
        %1679 = vmatpush1.msra.mxu0 0.0
        %1680 = vmatprep.subr.mxu0 0.0
        %1681 = vmatpush1.msra.mxu0 0.0
        %1682 = vmatprep.subr.mxu0 0.0
        %1683 = vmatpush1.msra.mxu0 0.0
        %1684 = vmatprep.subr.mxu0 0.0
        %1685 = vmatpush1.msra.mxu0 0.0
        %1686 = vmatprep.subr.mxu0 0.0
        %1687 = vmatpush1.msra.mxu0 0.0
        %1688 = vmatprep.subr.mxu0 0.0
        %1689 = vmatpush1.msra.mxu0 0.0
        %1690 = vmatprep.subr.mxu0 0.0
        %1691 = vmatpush1.msra.mxu0 0.0
        %1692 = vmatprep.subr.mxu0 0.0
        %1693 = vmatpush1.msra.mxu0 0.0
        %1694 = vmatprep.subr.mxu0 0.0
        %1695 = vmatpush1.msra.mxu0 0.0
        %1696 = vmatprep.subr.mxu0 0.0
        %1697 = vmatpush1.msra.mxu0 0.0
        %1698 = vmatprep.subr.mxu0 0.0
        %1699 = vmatpush1.msra.mxu0 0.0
        %1700 = vmatprep.subr.mxu0 0.0
        %1701 = vmatpush1.msra.mxu0 0.0
        %1702 = vmatprep.subr.mxu0 0.0
        %1703 = vmatpush1.msra.mxu0 0.0
        %1704 = vmatprep.subr.mxu0 0.0
        %1705 = vmatpush1.msra.mxu0 0.0
        %1706 = vmatprep.subr.mxu0 0.0
        %1707 = vmatpush1.msra.mxu0 0.0
        %1708 = vmatprep.subr.mxu0 0.0
        %1709 = vmatpush1.msra.mxu0 0.0
        %1710 = vmatprep.subr.mxu0 0.0
        %1711 = vmatpush1.msra.mxu0 0.0
        %1712 = vmatprep.subr.mxu0 0.0
        %1713 = vmatpush1.msra.mxu0 0.0
        %1714 = vmatprep.subr.mxu0 0.0
        %1715 = vmatpush1.msra.mxu0 0.0
        %1716 = vmatprep.subr.mxu0 0.0
        %1717 = vmatpush1.msra.mxu0 0.0
        %1718 = vmatprep.mubr.f32.mxu0 0.0
        %1719 = vmatmul.mubr.f32.gmra.mrb[0].mxu0 %v1652
        %v1720 = vpop.f32.mrb[0].mxu0
        %v1721 = vadd.f32 0.0, %v1720
        %v1722 = vpop.f32.mrb[0].mxu0
        %1723 = vdwg.mxu0
        %1724 = vrot.lane.b32.xlu0 %v732, 104
        %v1725 = vpop.permute.xlu0 %1724
        %1726 = vrot.lane.b32.xlu0 %v732, 72
        %v1727 = vpop.permute.xlu0 %1726
        %v1728 = vsel %vm736, %v1725, 0
        %v1730 = vsel %vm736, %v1727, 0
        %1732 = vmatprep.subr.mxu0 0.0
        %1733 = vmatpush1.xpose.msra.mxu0 %v1730
        %1734 = vmatprep.subr.mxu0 0.0
        %1735 = vmatpush1.xpose.msra.mxu0 0.0
        %1736 = vmatprep.subr.mxu0 0.0
        %1737 = vmatpush1.xpose.msra.mxu0 0.0
        %1738 = vmatprep.subr.mxu0 0.0
        %1739 = vmatpush1.xpose.msra.mxu0 0.0
        %1740 = vmatprep.subr.mxu0 0.0
        %1741 = vmatpush1.xpose.msra.mxu0 0.0
        %1742 = vmatprep.subr.mxu0 0.0
        %1743 = vmatpush1.xpose.msra.mxu0 0.0
        %1744 = vmatprep.subr.mxu0 0.0
        %1745 = vmatpush1.xpose.msra.mxu0 0.0
        %1746 = vmatprep.subr.mxu0 0.0
        %1747 = vmatpush1.xpose.msra.mxu0 0.0
        %1748 = vmatprep.subr.mxu0 0.0
        %1749 = vmatpush1.xpose.msra.mxu0 0.0
        %1750 = vmatprep.subr.mxu0 0.0
        %1751 = vmatpush1.xpose.msra.mxu0 0.0
        %1752 = vmatprep.subr.mxu0 0.0
        %1753 = vmatpush1.xpose.msra.mxu0 0.0
        %1754 = vmatprep.subr.mxu0 0.0
        %1755 = vmatpush1.xpose.msra.mxu0 0.0
        %1756 = vmatprep.subr.mxu0 0.0
        %1757 = vmatpush1.xpose.msra.mxu0 0.0
        %1758 = vmatprep.subr.mxu0 0.0
        %1759 = vmatpush1.xpose.msra.mxu0 0.0
        %1760 = vmatprep.subr.mxu0 0.0
        %1761 = vmatpush1.xpose.msra.mxu0 0.0
        %1762 = vmatprep.subr.mxu0 0.0
        %1763 = vmatpush1.xpose.msra.mxu0 0.0
        %1764 = vmatprep.subr.mxu0 0.0
        %1765 = vmatpush1.xpose.msra.mxu0 0.0
        %1766 = vmatprep.subr.mxu0 0.0
        %1767 = vmatpush1.xpose.msra.mxu0 0.0
        %1768 = vmatprep.subr.mxu0 0.0
        %1769 = vmatpush1.xpose.msra.mxu0 0.0
        %1770 = vmatprep.subr.mxu0 0.0
        %1771 = vmatpush1.xpose.msra.mxu0 0.0
        %1772 = vmatprep.subr.mxu0 0.0
        %1773 = vmatpush1.xpose.msra.mxu0 0.0
        %1774 = vmatprep.subr.mxu0 0.0
        %1775 = vmatpush1.xpose.msra.mxu0 0.0
        %1776 = vmatprep.subr.mxu0 0.0
        %1777 = vmatpush1.xpose.msra.mxu0 0.0
        %1778 = vmatprep.subr.mxu0 0.0
        %1779 = vmatpush1.xpose.msra.mxu0 0.0
        %1780 = vmatprep.subr.mxu0 0.0
        %1781 = vmatpush1.xpose.msra.mxu0 0.0
        %1782 = vmatprep.subr.mxu0 0.0
        %1783 = vmatpush1.xpose.msra.mxu0 0.0
        %1784 = vmatprep.subr.mxu0 0.0
        %1785 = vmatpush1.xpose.msra.mxu0 0.0
        %1786 = vmatprep.subr.mxu0 0.0
        %1787 = vmatpush1.xpose.msra.mxu0 0.0
        %1788 = vmatprep.subr.mxu0 0.0
        %1789 = vmatpush1.xpose.msra.mxu0 0.0
        %1790 = vmatprep.subr.mxu0 0.0
        %1791 = vmatpush1.xpose.msra.mxu0 0.0
        %1792 = vmatprep.subr.mxu0 0.0
        %1793 = vmatpush1.xpose.msra.mxu0 0.0
        %1794 = vmatprep.subr.mxu0 0.0
        %1795 = vmatpush1.xpose.msra.mxu0 0.0
        %1796 = vmatprep.mubr.f32.mxu0 0.0
        %1797 = vmatmul.mubr.f32.gmra.mrb[0].mxu0 %v1728
        %v1798 = vpop.f32.mrb[0].mxu0
        %v1799 = vadd.f32 0.0, %v1798
        %v1800 = vpop.f32.mrb[0].mxu0
        %1801 = vdwg.mxu0
        %v1802 = vsel %vm811, %v1799, -inf
        %1803 = vmax.xlane.f32.xlu0 %v1802
        %v1804 = vpop.xlane.xlu0 %1803
        %v1805 = vsub.f32 %v1799, %v1804
        %v1806 = vmul.f32 %v1805, 1.442695
        %v1807 = vpow.pop %v1806
        %v1808 = vsel %vm811, %v1807, 0.0
        %1809 = vadd.xlane.f32.xlu0 %v1808
        %v1810 = vpop.xlane.xlu0 %1809
        %v1811 = vrcp.pop %v1810
        %v1812 = vmul.f32 %v1807, %v1811
        %1813 = vrot.lane.b32.xlu0 %v732, 40
        %v1814 = vpop.permute.xlu0 %1813
        %v1817 = vsel %vm811, %v1812, 0
        %1819 = vmatprep.subr.mxu0 0.0
        %1820 = vmatpush1.msra.mxu0 %v1814
        %1821 = vmatprep.subr.mxu0 0.0
        %1822 = vmatpush1.msra.mxu0 0.0
        %1823 = vmatprep.subr.mxu0 0.0
        %1824 = vmatpush1.msra.mxu0 0.0
        %1825 = vmatprep.subr.mxu0 0.0
        %1826 = vmatpush1.msra.mxu0 0.0
        %1827 = vmatprep.subr.mxu0 0.0
        %1828 = vmatpush1.msra.mxu0 0.0
        %1829 = vmatprep.subr.mxu0 0.0
        %1830 = vmatpush1.msra.mxu0 0.0
        %1831 = vmatprep.subr.mxu0 0.0
        %1832 = vmatpush1.msra.mxu0 0.0
        %1833 = vmatprep.subr.mxu0 0.0
        %1834 = vmatpush1.msra.mxu0 0.0
        %1835 = vmatprep.subr.mxu0 0.0
        %1836 = vmatpush1.msra.mxu0 0.0
        %1837 = vmatprep.subr.mxu0 0.0
        %1838 = vmatpush1.msra.mxu0 0.0
        %1839 = vmatprep.subr.mxu0 0.0
        %1840 = vmatpush1.msra.mxu0 0.0
        %1841 = vmatprep.subr.mxu0 0.0
        %1842 = vmatpush1.msra.mxu0 0.0
        %1843 = vmatprep.subr.mxu0 0.0
        %1844 = vmatpush1.msra.mxu0 0.0
        %1845 = vmatprep.subr.mxu0 0.0
        %1846 = vmatpush1.msra.mxu0 0.0
        %1847 = vmatprep.subr.mxu0 0.0
        %1848 = vmatpush1.msra.mxu0 0.0
        %1849 = vmatprep.subr.mxu0 0.0
        %1850 = vmatpush1.msra.mxu0 0.0
        %1851 = vmatprep.subr.mxu0 0.0
        %1852 = vmatpush1.msra.mxu0 0.0
        %1853 = vmatprep.subr.mxu0 0.0
        %1854 = vmatpush1.msra.mxu0 0.0
        %1855 = vmatprep.subr.mxu0 0.0
        %1856 = vmatpush1.msra.mxu0 0.0
        %1857 = vmatprep.subr.mxu0 0.0
        %1858 = vmatpush1.msra.mxu0 0.0
        %1859 = vmatprep.subr.mxu0 0.0
        %1860 = vmatpush1.msra.mxu0 0.0
        %1861 = vmatprep.subr.mxu0 0.0
        %1862 = vmatpush1.msra.mxu0 0.0
        %1863 = vmatprep.subr.mxu0 0.0
        %1864 = vmatpush1.msra.mxu0 0.0
        %1865 = vmatprep.subr.mxu0 0.0
        %1866 = vmatpush1.msra.mxu0 0.0
        %1867 = vmatprep.subr.mxu0 0.0
        %1868 = vmatpush1.msra.mxu0 0.0
        %1869 = vmatprep.subr.mxu0 0.0
        %1870 = vmatpush1.msra.mxu0 0.0
        %1871 = vmatprep.subr.mxu0 0.0
        %1872 = vmatpush1.msra.mxu0 0.0
        %1873 = vmatprep.subr.mxu0 0.0
        %1874 = vmatpush1.msra.mxu0 0.0
        %1875 = vmatprep.subr.mxu0 0.0
        %1876 = vmatpush1.msra.mxu0 0.0
        %1877 = vmatprep.subr.mxu0 0.0
        %1878 = vmatpush1.msra.mxu0 0.0
        %1879 = vmatprep.subr.mxu0 0.0
        %1880 = vmatpush1.msra.mxu0 0.0
        %1881 = vmatprep.subr.mxu0 0.0
        %1882 = vmatpush1.msra.mxu0 0.0
        %1883 = vmatprep.mubr.f32.mxu0 0.0
        %1884 = vmatmul.mubr.f32.gmra.mrb[0].mxu0 %v1817
        %v1885 = vpop.f32.mrb[0].mxu0
        %v1886 = vadd.f32 0.0, %v1885
        %v1887 = vpop.f32.mrb[0].mxu0
        %1888 = vdwg.mxu0
        %1889 = vrot.lane.b32.xlu0 %v732, 100
        %v1890 = vpop.permute.xlu0 %1889
        %1891 = vrot.lane.b32.xlu0 %v732, 68
        %v1892 = vpop.permute.xlu0 %1891
        %v1893 = vsel %vm736, %v1890, 0
        %v1895 = vsel %vm736, %v1892, 0
        %1897 = vmatprep.subr.mxu0 0.0
        %1898 = vmatpush1.xpose.msra.mxu0 %v1895
        %1899 = vmatprep.subr.mxu0 0.0
        %1900 = vmatpush1.xpose.msra.mxu0 0.0
        %1901 = vmatprep.subr.mxu0 0.0
        %1902 = vmatpush1.xpose.msra.mxu0 0.0
        %1903 = vmatprep.subr.mxu0 0.0
        %1904 = vmatpush1.xpose.msra.mxu0 0.0
        %1905 = vmatprep.subr.mxu0 0.0
        %1906 = vmatpush1.xpose.msra.mxu0 0.0
        %1907 = vmatprep.subr.mxu0 0.0
        %1908 = vmatpush1.xpose.msra.mxu0 0.0
        %1909 = vmatprep.subr.mxu0 0.0
        %1910 = vmatpush1.xpose.msra.mxu0 0.0
        %1911 = vmatprep.subr.mxu0 0.0
        %1912 = vmatpush1.xpose.msra.mxu0 0.0
        %1913 = vmatprep.subr.mxu0 0.0
        %1914 = vmatpush1.xpose.msra.mxu0 0.0
        %1915 = vmatprep.subr.mxu0 0.0
        %1916 = vmatpush1.xpose.msra.mxu0 0.0
        %1917 = vmatprep.subr.mxu0 0.0
        %1918 = vmatpush1.xpose.msra.mxu0 0.0
        %1919 = vmatprep.subr.mxu0 0.0
        %1920 = vmatpush1.xpose.msra.mxu0 0.0
        %1921 = vmatprep.subr.mxu0 0.0
        %1922 = vmatpush1.xpose.msra.mxu0 0.0
        %1923 = vmatprep.subr.mxu0 0.0
        %1924 = vmatpush1.xpose.msra.mxu0 0.0
        %1925 = vmatprep.subr.mxu0 0.0
        %1926 = vmatpush1.xpose.msra.mxu0 0.0
        %1927 = vmatprep.subr.mxu0 0.0
        %1928 = vmatpush1.xpose.msra.mxu0 0.0
        %1929 = vmatprep.subr.mxu0 0.0
        %1930 = vmatpush1.xpose.msra.mxu0 0.0
        %1931 = vmatprep.subr.mxu0 0.0
        %1932 = vmatpush1.xpose.msra.mxu0 0.0
        %1933 = vmatprep.subr.mxu0 0.0
        %1934 = vmatpush1.xpose.msra.mxu0 0.0
        %1935 = vmatprep.subr.mxu0 0.0
        %1936 = vmatpush1.xpose.msra.mxu0 0.0
        %1937 = vmatprep.subr.mxu0 0.0
        %1938 = vmatpush1.xpose.msra.mxu0 0.0
        %1939 = vmatprep.subr.mxu0 0.0
        %1940 = vmatpush1.xpose.msra.mxu0 0.0
        %1941 = vmatprep.subr.mxu0 0.0
        %1942 = vmatpush1.xpose.msra.mxu0 0.0
        %1943 = vmatprep.subr.mxu0 0.0
        %1944 = vmatpush1.xpose.msra.mxu0 0.0
        %1945 = vmatprep.subr.mxu0 0.0
        %1946 = vmatpush1.xpose.msra.mxu0 0.0
        %1947 = vmatprep.subr.mxu0 0.0
        %1948 = vmatpush1.xpose.msra.mxu0 0.0
        %1949 = vmatprep.subr.mxu0 0.0
        %1950 = vmatpush1.xpose.msra.mxu0 0.0
        %1951 = vmatprep.subr.mxu0 0.0
        %1952 = vmatpush1.xpose.msra.mxu0 0.0
        %1953 = vmatprep.subr.mxu0 0.0
        %1954 = vmatpush1.xpose.msra.mxu0 0.0
        %1955 = vmatprep.subr.mxu0 0.0
        %1956 = vmatpush1.xpose.msra.mxu0 0.0
        %1957 = vmatprep.subr.mxu0 0.0
        %1958 = vmatpush1.xpose.msra.mxu0 0.0
        %1959 = vmatprep.subr.mxu0 0.0
        %1960 = vmatpush1.xpose.msra.mxu0 0.0
        %1961 = vmatprep.mubr.f32.mxu0 0.0
        %1962 = vmatmul.mubr.f32.gmra.mrb[0].mxu0 %v1893
        %v1963 = vpop.f32.mrb[0].mxu0
        %v1964 = vadd.f32 0.0, %v1963
        %v1965 = vpop.f32.mrb[0].mxu0
        %1966 = vdwg.mxu0
        %v1967 = vsel %vm811, %v1964, -inf
        %1968 = vmax.xlane.f32.xlu0 %v1967
        %v1969 = vpop.xlane.xlu0 %1968
        %v1970 = vsub.f32 %v1964, %v1969
        %v1971 = vmul.f32 %v1970, 1.442695
        %v1972 = vpow.pop %v1971
        %v1973 = vsel %vm811, %v1972, 0.0
        %1974 = vadd.xlane.f32.xlu0 %v1973
        %v1975 = vpop.xlane.xlu0 %1974
        %v1976 = vrcp.pop %v1975
        %v1977 = vmul.f32 %v1972, %v1976
        %1978 = vrot.lane.b32.xlu0 %v732, 36
        %v1979 = vpop.permute.xlu0 %1978
        %v1982 = vsel %vm811, %v1977, 0
        %1984 = vmatprep.subr.mxu0 0.0
        %1985 = vmatpush1.msra.mxu0 %v1979
        %1986 = vmatprep.subr.mxu0 0.0
        %1987 = vmatpush1.msra.mxu0 0.0
        %1988 = vmatprep.subr.mxu0 0.0
        %1989 = vmatpush1.msra.mxu0 0.0
        %1990 = vmatprep.subr.mxu0 0.0
        %1991 = vmatpush1.msra.mxu0 0.0
        %1992 = vmatprep.subr.mxu0 0.0
        %1993 = vmatpush1.msra.mxu0 0.0
        %1994 = vmatprep.subr.mxu0 0.0
        %1995 = vmatpush1.msra.mxu0 0.0
        %1996 = vmatprep.subr.mxu0 0.0
        %1997 = vmatpush1.msra.mxu0 0.0
        %1998 = vmatprep.subr.mxu0 0.0
        %1999 = vmatpush1.msra.mxu0 0.0
        %2000 = vmatprep.subr.mxu0 0.0
        %2001 = vmatpush1.msra.mxu0 0.0
        %2002 = vmatprep.subr.mxu0 0.0
        %2003 = vmatpush1.msra.mxu0 0.0
        %2004 = vmatprep.subr.mxu0 0.0
        %2005 = vmatpush1.msra.mxu0 0.0
        %2006 = vmatprep.subr.mxu0 0.0
        %2007 = vmatpush1.msra.mxu0 0.0
        %2008 = vmatprep.subr.mxu0 0.0
        %2009 = vmatpush1.msra.mxu0 0.0
        %2010 = vmatprep.subr.mxu0 0.0
        %2011 = vmatpush1.msra.mxu0 0.0
        %2012 = vmatprep.subr.mxu0 0.0
        %2013 = vmatpush1.msra.mxu0 0.0
        %2014 = vmatprep.subr.mxu0 0.0
        %2015 = vmatpush1.msra.mxu0 0.0
        %2016 = vmatprep.subr.mxu0 0.0
        %2017 = vmatpush1.msra.mxu0 0.0
        %2018 = vmatprep.subr.mxu0 0.0
        %2019 = vmatpush1.msra.mxu0 0.0
        %2020 = vmatprep.subr.mxu0 0.0
        %2021 = vmatpush1.msra.mxu0 0.0
        %2022 = vmatprep.subr.mxu0 0.0
        %2023 = vmatpush1.msra.mxu0 0.0
        %2024 = vmatprep.subr.mxu0 0.0
        %2025 = vmatpush1.msra.mxu0 0.0
        %2026 = vmatprep.subr.mxu0 0.0
        %2027 = vmatpush1.msra.mxu0 0.0
        %2028 = vmatprep.subr.mxu0 0.0
        %2029 = vmatpush1.msra.mxu0 0.0
        %2030 = vmatprep.subr.mxu0 0.0
        %2031 = vmatpush1.msra.mxu0 0.0
        %2032 = vmatprep.subr.mxu0 0.0
        %2033 = vmatpush1.msra.mxu0 0.0
        %2034 = vmatprep.subr.mxu0 0.0
        %2035 = vmatpush1.msra.mxu0 0.0
        %2036 = vmatprep.subr.mxu0 0.0
        %2037 = vmatpush1.msra.mxu0 0.0
        %2038 = vmatprep.subr.mxu0 0.0
        %2039 = vmatpush1.msra.mxu0 0.0
        %2040 = vmatprep.subr.mxu0 0.0
        %2041 = vmatpush1.msra.mxu0 0.0
        %2042 = vmatprep.subr.mxu0 0.0
        %2043 = vmatpush1.msra.mxu0 0.0
        %2044 = vmatprep.subr.mxu0 0.0
        %2045 = vmatpush1.msra.mxu0 0.0
        %2046 = vmatprep.subr.mxu0 0.0
        %2047 = vmatpush1.msra.mxu0 0.0
        %2048 = vmatprep.mubr.f32.mxu0 0.0
        %2049 = vmatmul.mubr.f32.gmra.mrb[0].mxu0 %v1982
        %v2050 = vpop.f32.mrb[0].mxu0
        %v2051 = vadd.f32 0.0, %v2050
        %v2052 = vpop.f32.mrb[0].mxu0
        %2053 = vdwg.mxu0
        %2055 = vrot.lane.b32.xlu0 %v1061, 4
        %v2056 = vpop.permute.xlu0 %2055
        %2059 = vrot.lane.b32.xlu0 %v1226, 8
        %v2060 = vpop.permute.xlu0 %2059
        %2063 = vrot.lane.b32.xlu0 %v1391, 12
        %v2064 = vpop.permute.xlu0 %2063
        %2067 = vrot.lane.b32.xlu0 %v1556, 16
        %v2068 = vpop.permute.xlu0 %2067
        %2071 = vrot.lane.b32.xlu0 %v1721, 20
        %v2072 = vpop.permute.xlu0 %2071
        %2075 = vrot.lane.b32.xlu0 %v1886, 24
        %v2076 = vpop.permute.xlu0 %2075
        %2079 = vrot.lane.b32.xlu0 %v2051, 28
        %v2080 = vpop.permute.xlu0 %2079
        %v2082 = vsel %vm736, %v896, %v2056
        %v2083 = vsel %vm811, %v2082, %v2060
        %vm2084 = vcmask 97280
        %v2085 = vsel %vm2084, %v2083, %v2064
        %vm2086 = vcmask 130048
        %v2087 = vsel %vm2086, %v2085, %v2068
        %vm2088 = vcmask 162816
        %v2089 = vsel %vm2088, %v2087, %v2072
        %vm2090 = vcmask 195584
        %v2091 = vsel %vm2090, %v2089, %v2076
        %vm2092 = vcmask 228352
        %v2093 = vsel %vm2092, %v2091, %v2080
        %2094 = vst.msk [vmem:[#allocation3] sm:$0xff] %vm617, %v2093
        %v2095 = vld [vmem:[#allocation3] sm:$0xff]
        %v2096 = vld [vmem:[#allocation13] sm:$0xff]
        %v2097 = vld [vmem:[#allocation13 + $0x8] sm:$0xff]
        %v2098 = vld [vmem:[#allocation13 + $0x10] sm:$0xff]
        %v2099 = vld [vmem:[#allocation13 + $0x18] sm:$0xff]
        %v2100 = vld [vmem:[#allocation15] sm:$0x1]
        %v2102 = vlaneseq
        %v2103 = vshrl.u32 %v2102, 7
        %v2104 = vsub.s32 0, %v2103
        %v2105 = vrot.slane %v2100, %v2104
        %v2108 = vsel %vm617, %v2095, 0
        %2110 = vmatprep.subr.mxu0 0.0
        %2111 = vmatpush1.msra.mxu0 %v2096
        %2112 = vmatprep.subr.mxu0 0.0
        %2113 = vmatpush1.msra.mxu0 %v2097
        %2114 = vmatprep.subr.mxu0 0.0
        %2115 = vmatpush1.msra.mxu0 %v2098
        %2116 = vmatprep.subr.mxu0 0.0
        %2117 = vmatpush1.msra.mxu0 %v2099
        %2118 = vmatprep.subr.mxu0 0.0
        %2119 = vmatpush1.msra.mxu0 0.0
        %2120 = vmatprep.subr.mxu0 0.0
        %2121 = vmatpush1.msra.mxu0 0.0
        %2122 = vmatprep.subr.mxu0 0.0
        %2123 = vmatpush1.msra.mxu0 0.0
        %2124 = vmatprep.subr.mxu0 0.0
        %2125 = vmatpush1.msra.mxu0 0.0
        %2126 = vmatprep.subr.mxu0 0.0
        %2127 = vmatpush1.msra.mxu0 0.0
        %2128 = vmatprep.subr.mxu0 0.0
        %2129 = vmatpush1.msra.mxu0 0.0
        %2130 = vmatprep.subr.mxu0 0.0
        %2131 = vmatpush1.msra.mxu0 0.0
        %2132 = vmatprep.subr.mxu0 0.0
        %2133 = vmatpush1.msra.mxu0 0.0
        %2134 = vmatprep.subr.mxu0 0.0
        %2135 = vmatpush1.msra.mxu0 0.0
        %2136 = vmatprep.subr.mxu0 0.0
        %2137 = vmatpush1.msra.mxu0 0.0
        %2138 = vmatprep.subr.mxu0 0.0
        %2139 = vmatpush1.msra.mxu0 0.0
        %2140 = vmatprep.subr.mxu0 0.0
        %2141 = vmatpush1.msra.mxu0 0.0
        %2142 = vmatprep.subr.mxu0 0.0
        %2143 = vmatpush1.msra.mxu0 0.0
        %2144 = vmatprep.subr.mxu0 0.0
        %2145 = vmatpush1.msra.mxu0 0.0
        %2146 = vmatprep.subr.mxu0 0.0
        %2147 = vmatpush1.msra.mxu0 0.0
        %2148 = vmatprep.subr.mxu0 0.0
        %2149 = vmatpush1.msra.mxu0 0.0
        %2150 = vmatprep.subr.mxu0 0.0
        %2151 = vmatpush1.msra.mxu0 0.0
        %2152 = vmatprep.subr.mxu0 0.0
        %2153 = vmatpush1.msra.mxu0 0.0
        %2154 = vmatprep.subr.mxu0 0.0
        %2155 = vmatpush1.msra.mxu0 0.0
        %2156 = vmatprep.subr.mxu0 0.0
        %2157 = vmatpush1.msra.mxu0 0.0
        %2158 = vmatprep.subr.mxu0 0.0
        %2159 = vmatpush1.msra.mxu0 0.0
        %2160 = vmatprep.subr.mxu0 0.0
        %2161 = vmatpush1.msra.mxu0 0.0
        %2162 = vmatprep.subr.mxu0 0.0
        %2163 = vmatpush1.msra.mxu0 0.0
        %2164 = vmatprep.subr.mxu0 0.0
        %2165 = vmatpush1.msra.mxu0 0.0
        %2166 = vmatprep.subr.mxu0 0.0
        %2167 = vmatpush1.msra.mxu0 0.0
        %2168 = vmatprep.subr.mxu0 0.0
        %2169 = vmatpush1.msra.mxu0 0.0
        %2170 = vmatprep.subr.mxu0 0.0
        %2171 = vmatpush1.msra.mxu0 0.0
        %2172 = vmatprep.subr.mxu0 0.0
        %2173 = vmatpush1.msra.mxu0 0.0
        %2174 = vmatprep.mubr.f32.mxu0 0.0
        %2175 = vmatmul.mubr.f32.gmra.mrb[0].mxu0 %v2108
        %v2176 = vpop.f32.mrb[0].mxu0
        %v2177 = vadd.f32 %v2105, %v2176
        %v2178 = vpop.f32.mrb[0].mxu0
        %2179 = vdwg.mxu0
        %v2180 = vadd.f32 %v2177, %v614
        %v2181 = vld [vmem:[#allocation16] sm:$0x1]
        %v2182 = vld [vmem:[#allocation18] sm:$0x1]
        %v2183 = vsel %vm617, %v2180, 0.0
        %2184 = vadd.xlane.f32.xlu0 %v2183
        %v2185 = vpop.xlane.xlu0 %2184
        %v2186 = vmul.f32 %v2185, %v621
        %v2187 = vsub.f32 %v2180, %v2186
        %v2188 = vmul.f32 %v2187, %v2187
        %v2189 = vsel %vm617, %v2188, 0.0
        %2190 = vadd.xlane.f32.xlu0 %v2189
        %v2191 = vpop.xlane.xlu0 %2190
        %v2192 = vmul.f32 %v2191, %v621
        %v2193 = vadd.f32 %v2192, 1e-05
        %v2194 = vrsqrt.pop %v2193
        %v2195 = vmul.f32 %v2187, %v2194
        %v2197 = vlaneseq
        %v2198 = vshrl.u32 %v2197, 7
        %v2199 = vsub.s32 0, %v2198
        %v2200 = vrot.slane %v2181, %v2199
        %v2202 = vmul.f32 %v2195, %v2200
        %v2204 = vlaneseq
        %v2205 = vshrl.u32 %v2204, 7
        %v2206 = vsub.s32 0, %v2205
        %v2207 = vrot.slane %v2182, %v2206
        %v2209 = vadd.f32 %v2202, %v2207
        %v2210 = vld [vmem:[#allocation19] sm:$0xff]
        %v2211 = vld [vmem:[#allocation19 + $0x8] sm:$0xff]
        %v2212 = vld [vmem:[#allocation19 + $0x10] sm:$0xff]
        %v2213 = vld [vmem:[#allocation19 + $0x18] sm:$0xff]
        %v2214 = vld [vmem:[#allocation21] sm:$0x1]
        %v2216 = vlaneseq
        %v2217 = vshrl.u32 %v2216, 7
        %v2218 = vsub.s32 0, %v2217
        %v2219 = vrot.slane %v2214, %v2218
        %v2222 = vsel %vm617, %v2209, 0
        %2224 = vmatprep.subr.mxu0 0.0
        %2225 = vmatpush1.msra.mxu0 %v2210
        %2226 = vmatprep.subr.mxu0 0.0
        %2227 = vmatpush1.msra.mxu0 %v2211
        %2228 = vmatprep.subr.mxu0 0.0
        %2229 = vmatpush1.msra.mxu0 %v2212
        %2230 = vmatprep.subr.mxu0 0.0
        %2231 = vmatpush1.msra.mxu0 %v2213
        %2232 = vmatprep.subr.mxu0 0.0
        %2233 = vmatpush1.msra.mxu0 0.0
        %2234 = vmatprep.subr.mxu0 0.0
        %2235 = vmatpush1.msra.mxu0 0.0
        %2236 = vmatprep.subr.mxu0 0.0
        %2237 = vmatpush1.msra.mxu0 0.0
        %2238 = vmatprep.subr.mxu0 0.0
        %2239 = vmatpush1.msra.mxu0 0.0
        %2240 = vmatprep.subr.mxu0 0.0
        %2241 = vmatpush1.msra.mxu0 0.0
        %2242 = vmatprep.subr.mxu0 0.0
        %2243 = vmatpush1.msra.mxu0 0.0
        %2244 = vmatprep.subr.mxu0 0.0
        %2245 = vmatpush1.msra.mxu0 0.0
        %2246 = vmatprep.subr.mxu0 0.0
        %2247 = vmatpush1.msra.mxu0 0.0
        %2248 = vmatprep.subr.mxu0 0.0
        %2249 = vmatpush1.msra.mxu0 0.0
        %2250 = vmatprep.subr.mxu0 0.0
        %2251 = vmatpush1.msra.mxu0 0.0
        %2252 = vmatprep.subr.mxu0 0.0
        %2253 = vmatpush1.msra.mxu0 0.0
        %2254 = vmatprep.subr.mxu0 0.0
        %2255 = vmatpush1.msra.mxu0 0.0
        %2256 = vmatprep.subr.mxu0 0.0
        %2257 = vmatpush1.msra.mxu0 0.0
        %2258 = vmatprep.subr.mxu0 0.0
        %2259 = vmatpush1.msra.mxu0 0.0
        %2260 = vmatprep.subr.mxu0 0.0
        %2261 = vmatpush1.msra.mxu0 0.0
        %2262 = vmatprep.subr.mxu0 0.0
        %2263 = vmatpush1.msra.mxu0 0.0
        %2264 = vmatprep.subr.mxu0 0.0
        %2265 = vmatpush1.msra.mxu0 0.0
        %2266 = vmatprep.subr.mxu0 0.0
        %2267 = vmatpush1.msra.mxu0 0.0
        %2268 = vmatprep.subr.mxu0 0.0
        %2269 = vmatpush1.msra.mxu0 0.0
        %2270 = vmatprep.subr.mxu0 0.0
        %2271 = vmatpush1.msra.mxu0 0.0
        %2272 = vmatprep.subr.mxu0 0.0
        %2273 = vmatpush1.msra.mxu0 0.0
        %2274 = vmatprep.subr.mxu0 0.0
        %2275 = vmatpush1.msra.mxu0 0.0
        %2276 = vmatprep.subr.mxu0 0.0
        %2277 = vmatpush1.msra.mxu0 0.0
        %2278 = vmatprep.subr.mxu0 0.0
        %2279 = vmatpush1.msra.mxu0 0.0
        %2280 = vmatprep.subr.mxu0 0.0
        %2281 = vmatpush1.msra.mxu0 0.0
        %2282 = vmatprep.subr.mxu0 0.0
        %2283 = vmatpush1.msra.mxu0 0.0
        %2284 = vmatprep.subr.mxu0 0.0
        %2285 = vmatpush1.msra.mxu0 0.0
        %2286 = vmatprep.subr.mxu0 0.0
        %2287 = vmatpush1.msra.mxu0 0.0
        %2288 = vmatprep.mubr.f32.mxu0 0.0
        %2289 = vmatmul.mubr.f32.gmra.mrb[0].mxu0 %v2222
        %v2290 = vpop.f32.mrb[0].mxu0
        %v2291 = vadd.f32 %v2219, %v2290
        %v2292 = vpop.f32.mrb[0].mxu0
        %2293 = vdwg.mxu0
        %v2294 = vmul.f32 %v2291, 0.5
        %v2295 = vmul.f32 %v2291, 0.044715
        %v2296 = vmul.f32 %v2295, %v2291
        %v2297 = vmul.f32 %v2296, %v2291
        %v2298 = vadd.f32 %v2291, %v2297
        %v2299 = vmul.f32 %v2298, 0.7978846
        %v2300 = vtanh.pop %v2299
        %v2301 = vadd.f32 %v2300, 1.0
        %v2302 = vmul.f32 %v2294, %v2301
        %v2303 = vld [vmem:[#allocation22] sm:$0xff]
        %v2304 = vld [vmem:[#allocation22 + $0x8] sm:$0xff]
        %v2305 = vld [vmem:[#allocation22 + $0x10] sm:$0xff]
        %v2306 = vld [vmem:[#allocation22 + $0x18] sm:$0xff]
        %v2307 = vld [vmem:[#allocation22 + $0x20] sm:$0xff]
        %v2308 = vld [vmem:[#allocation22 + $0x28] sm:$0xff]
        %v2309 = vld [vmem:[#allocation22 + $0x30] sm:$0xff]
        %v2310 = vld [vmem:[#allocation22 + $0x38] sm:$0xff]
        %v2311 = vld [vmem:[#allocation24] sm:$0x1]
        %v2313 = vlaneseq
        %v2314 = vshrl.u32 %v2313, 7
        %v2315 = vsub.s32 0, %v2314
        %v2316 = vrot.slane %v2311, %v2315
        %vm2318 = vcmask 523264
        %v2320 = vsel %vm2318, %v2302, 0
        %2322 = vmatprep.subr.mxu0 0.0
        %2323 = vmatpush1.msra.mxu0 %v2303
        %2324 = vmatprep.subr.mxu0 0.0
        %2325 = vmatpush1.msra.mxu0 %v2304
        %2326 = vmatprep.subr.mxu0 0.0
        %2327 = vmatpush1.msra.mxu0 %v2305
        %2328 = vmatprep.subr.mxu0 0.0
        %2329 = vmatpush1.msra.mxu0 %v2306
        %2330 = vmatprep.subr.mxu0 0.0
        %2331 = vmatpush1.msra.mxu0 %v2307
        %2332 = vmatprep.subr.mxu0 0.0
        %2333 = vmatpush1.msra.mxu0 %v2308
        %2334 = vmatprep.subr.mxu0 0.0
        %2335 = vmatpush1.msra.mxu0 %v2309
        %2336 = vmatprep.subr.mxu0 0.0
        %2337 = vmatpush1.msra.mxu0 %v2310
        %2338 = vmatprep.subr.mxu0 0.0
        %2339 = vmatpush1.msra.mxu0 0.0
        %2340 = vmatprep.subr.mxu0 0.0
        %2341 = vmatpush1.msra.mxu0 0.0
        %2342 = vmatprep.subr.mxu0 0.0
        %2343 = vmatpush1.msra.mxu0 0.0
        %2344 = vmatprep.subr.mxu0 0.0
        %2345 = vmatpush1.msra.mxu0 0.0
        %2346 = vmatprep.subr.mxu0 0.0
        %2347 = vmatpush1.msra.mxu0 0.0
        %2348 = vmatprep.subr.mxu0 0.0
        %2349 = vmatpush1.msra.mxu0 0.0
        %2350 = vmatprep.subr.mxu0 0.0
        %2351 = vmatpush1.msra.mxu0 0.0
        %2352 = vmatprep.subr.mxu0 0.0
        %2353 = vmatpush1.msra.mxu0 0.0
        %2354 = vmatprep.subr.mxu0 0.0
        %2355 = vmatpush1.msra.mxu0 0.0
        %2356 = vmatprep.subr.mxu0 0.0
        %2357 = vmatpush1.msra.mxu0 0.0
        %2358 = vmatprep.subr.mxu0 0.0
        %2359 = vmatpush1.msra.mxu0 0.0
        %2360 = vmatprep.subr.mxu0 0.0
        %2361 = vmatpush1.msra.mxu0 0.0
        %2362 = vmatprep.subr.mxu0 0.0
        %2363 = vmatpush1.msra.mxu0 0.0
        %2364 = vmatprep.subr.mxu0 0.0
        %2365 = vmatpush1.msra.mxu0 0.0
        %2366 = vmatprep.subr.mxu0 0.0
        %2367 = vmatpush1.msra.mxu0 0.0
        %2368 = vmatprep.subr.mxu0 0.0
        %2369 = vmatpush1.msra.mxu0 0.0
        %2370 = vmatprep.subr.mxu0 0.0
        %2371 = vmatpush1.msra.mxu0 0.0
        %2372 = vmatprep.subr.mxu0 0.0
        %2373 = vmatpush1.msra.mxu0 0.0
        %2374 = vmatprep.subr.mxu0 0.0
        %2375 = vmatpush1.msra.mxu0 0.0
        %2376 = vmatprep.subr.mxu0 0.0
        %2377 = vmatpush1.msra.mxu0 0.0
        %2378 = vmatprep.subr.mxu0 0.0
        %2379 = vmatpush1.msra.mxu0 0.0
        %2380 = vmatprep.subr.mxu0 0.0
        %2381 = vmatpush1.msra.mxu0 0.0
        %2382 = vmatprep.subr.mxu0 0.0
        %2383 = vmatpush1.msra.mxu0 0.0
        %2384 = vmatprep.subr.mxu0 0.0
        %2385 = vmatpush1.msra.mxu0 0.0
        %2386 = vmatprep.mubr.f32.mxu0 0.0
        %2387 = vmatmul.mubr.f32.gmra.mrb[0].mxu0 %v2320
        %v2388 = vpop.f32.mrb[0].mxu0
        %v2389 = vadd.f32 %v2316, %v2388
        %v2390 = vpop.f32.mrb[0].mxu0
        %2391 = vdwg.mxu0
        %v2392 = vmul.f32 %v2389, 0.5
        %v2393 = vmul.f32 %v2389, 0.044715
        %v2394 = vmul.f32 %v2393, %v2389
        %v2395 = vmul.f32 %v2394, %v2389
        %v2396 = vadd.f32 %v2389, %v2395
        %v2397 = vmul.f32 %v2396, 0.7978846
        %v2398 = vtanh.pop %v2397
        %v2399 = vadd.f32 %v2398, 1.0
        %v2400 = vmul.f32 %v2392, %v2399
        %v2401 = vadd.f32 %v2400, %v2180
        %2402 = vst.msk [vmem:[%s613] sm:$0xff] %vm617, %v2401
        %s2403 = sand.u32 %s322, 1
        %s2404 = scalar_lea.sflag [#allocation6], %s2403
        %s2405 = sand.u32 %s322, 1
        %s2406 = smul.addr %s2405, 8
        %s2407 = scalar_lea.vmem [#allocation25], %s2406
        // Predicated region
        $region125: #{tpu_custom_call.1} parent=71 // pred_check
          %p2408 = pneg %p332
        $region126: #{tpu_custom_call.1} parent=71 // pred_check_branch
          %2410 = sbr.rel (%p2408) target = $region128
        $region127: #{tpu_custom_call.1} parent=71 // pred_region
          %s2412 = ssub.s32 128, 128
          %2413 = vsyncadd %s2404, %s2412
          %s2414 = smul.addr %s36, 128
          %s2415 = scalar_lea.hbm %s13, %s2414
          %s2417 = sshll.u32 %s2407, 4
          %s2418 = int_to_ptr.vmem [resolvable:$true] %s2417
          %2420 = dma.vmem_to_hbm [thread:$0]  %s2418, 128, %s2415, %s2404
        $region128: #{tpu_custom_call.1} parent=71 // pred_fallthru
          _
      $region72: #{tpu_custom_call.1} parent=5 // pred_fallthru
        _
      %p2421 = scmp.le.s32.totalorder 2, %s31
      // Predicated region
      $region129: #{tpu_custom_call.1} parent=5 // pred_check
        %p2422 = pneg %p2421
      $region130: #{tpu_custom_call.1} parent=5 // pred_check_branch
        %2424 = sbr.rel (%p2422) target = $region132
      $region131: #{tpu_custom_call.1} parent=5 // pred_region
        %s2425 = ssub.s32 %s31, 2
        // Predicated region
        $region133: #{tpu_custom_call.1} parent=131 // pred_check
          %p2426 = pneg %p338
        $region134: #{tpu_custom_call.1} parent=131 // pred_check_branch
          %2428 = sbr.rel (%p2426) target = $region136
        $region135: #{tpu_custom_call.1} parent=131 // pred_region
          %s2429 = sand.u32 %s323, 1
          %s2430 = scalar_lea.sflag [#allocation6], %s2429
          %s2431 = sand.u32 %s323, 1
          %s2432 = smul.addr %s2431, 8
          %s2433 = scalar_lea.vmem [#allocation25], %s2432
          %2434 = dma.done %s2430, 128
        $region136: #{tpu_custom_call.1} parent=131 // pred_fallthru
          _
      $region132: #{tpu_custom_call.1} parent=5 // pred_fallthru
        _
    $region6: #{tpu_custom_call.1} parent=1 // loop_footer
      %s35 = sadd.s32 1, %s31
    $region7: #{tpu_custom_call.1} parent=1 // loop_footer_branch
      %30 = sbr.rel target = $region3
    $region8: #{tpu_custom_call.1} parent=1 // loop_exit
      _
    %2435 = vsyncpa [#allocation5], 1
    %s2436 = scalar_lea.sflag [#allocation5], 1
    %2437 = vsyncpa %s2436, 1
    %2438 = vsyncpa [#allocation8], 1
    %2439 = vsyncpa [#allocation11], 1
    %2440 = vsyncpa [#allocation14], 1
    %2441 = vsyncpa [#allocation17], 1
    %2442 = vsyncpa [#allocation20], 1
    %2443 = vsyncpa [#allocation23], 1
    %2444 = vsyncpa [#allocation6], 1
    %s2445 = scalar_lea.sflag [#allocation6], 1
    %2446 = vsyncpa %s2445, 1

</llo_original>
